<compile_context>
chip_gen: v7x
topology: tpu7x:2x2x1
jax: 0.10.0
libtpu: 0.0.40
codegen_flags: <defaults>
</compile_context>

<pallas_src>
import jax
import jax.numpy as jnp
from jax import lax
from jax.experimental import pallas as pl
from jax.experimental.pallas import tpu as pltpu


def _lstm_recurrence_kernel(zx_ref, wh_ref, o_ref, h_sc, c_sc):
    # zx_ref: (Tc, B, 4E) f32 -- precomputed x_t @ Wx + b for this time block
    # wh_ref: (E, 4E)     f32 -- fused [Wf|Wi|Wo|Wc] rows for h (VMEM-resident)
    # o_ref : (B, E)      f32 -- hidden state (final value after last step)
    # h_sc, c_sc: (B, E)  f32 VMEM scratch -- recurrent state across grid steps
    E = o_ref.shape[-1]
    Tc = zx_ref.shape[0]

    @pl.when(pl.program_id(0) == 0)
    def _init():
        h_sc[...] = jnp.zeros_like(h_sc)
        c_sc[...] = jnp.zeros_like(c_sc)

    wh = wh_ref[...]

    def step(i, carry):
        h, c = carry
        # Serial critical path: one (B,E)x(E,4E) matmul + elementwise tail.
        z = zx_ref[i] + jnp.dot(h, wh, preferred_element_type=jnp.float32)
        # Gate layout [f | i | o | c~]: one sigmoid over the first 3E lanes,
        # one tanh over the last E lanes (static 128-aligned slices).
        sig = jax.nn.sigmoid(z[:, :3 * E])
        f_t = sig[:, 0:E]
        i_t = sig[:, E:2 * E]
        o_t = sig[:, 2 * E:3 * E]
        c_tilde = jnp.tanh(z[:, 3 * E:])
        c_new = c * f_t + i_t * c_tilde
        h_new = o_t * jnp.tanh(c_new)
        return h_new, c_new

    h, c = lax.fori_loop(0, Tc, step, (h_sc[...], c_sc[...]), unroll=True)
    h_sc[...] = h
    c_sc[...] = c
    # Write the (resident, constant-index) output block every grid step --
    # negligible cost and robust against writeback-semantics changes.
    o_ref[...] = h.astype(o_ref.dtype)


def _pick_block_t(T, max_bt=8):
    """Largest divisor of T that is <= max_bt (timesteps per grid step)."""
    for bt in range(min(T, max_bt), 0, -1):
        if T % bt == 0:
            return bt
    return 1


@jax.jit
def lstm_forward(X, Wf, Wi, Wc, Wo, bf_, bi_, bc_, bo_):
    """Pallas-backed LSTM forward. X: (B, T, E); returns final hidden (B, E)."""
    B, T, E = X.shape
    block_t = _pick_block_t(T)

    # One-time parameter packing; fused gate order is [f | i | o | c~].
    Wx = jnp.concatenate([Wf[:E], Wi[:E], Wo[:E], Wc[:E]], axis=1)   # (E, 4E)
    Wh = jnp.concatenate([Wf[E:], Wi[E:], Wo[E:], Wc[E:]], axis=1)   # (E, 4E)
    b = jnp.concatenate([bf_, bi_, bo_, bc_], axis=1)                # (1, 4E)

    # Hoisted input projection: one MXU-filling (T*B, E) x (E, 4E) matmul over
    # all timesteps, produced directly time-major (relayout folded into the
    # matmul) with the bias pre-added. The kernel only sees the serial part.
    Zx = jnp.einsum("bte,ef->tbf", X, Wx,
                    preferred_element_type=jnp.float32) + b          # (T, B, 4E)

    return pl.pallas_call(
        _lstm_recurrence_kernel,
        out_shape=jax.ShapeDtypeStruct((B, E), jnp.float32),
        grid_spec=pltpu.PrefetchScalarGridSpec(
            num_scalar_prefetch=0,
            grid=(T // block_t,),
            in_specs=[
                # Tc precomputed gate pre-activations stream per grid step
                # (one lane-dense (Tc, B, 4E) DMA per block).
                pl.BlockSpec((block_t, B, 4 * E), lambda t: (t, 0, 0)),
                # Recurrent weight: constant block index -> resident in VMEM,
                # DMA'd from HBM only once for the whole sequence.
                # TODO(synk): for large E on v7x (64 MiB VMEM) single-buffer
                # this spec (pipeline_mode=pl.Buffered(1)) or tile the 4E gate
                # axis; unnecessary at E=256 (~1 MiB resident).
                pl.BlockSpec((E, 4 * E), lambda t: (0, 0)),
            ],
            # Output resident across the whole grid (constant block index).
            out_specs=pl.BlockSpec((B, E), lambda t: (0, 0)),
            scratch_shapes=[
                pltpu.VMEM((B, E), jnp.float32),   # hidden state carry
                pltpu.VMEM((B, E), jnp.float32),   # cell state carry
            ],
        ),
        compiler_params=pltpu.CompilerParams(
            # The time axis is a true recurrence -> sequential.
            dimension_semantics=("arbitrary",),
        ),
        # TODO(synk): on v7x (2 TensorCores) shard the batch across cores with
        # a leading "parallel" grid axis once B >= 16; at B=8 a (4, E) block
        # under-fills the 8-sublane tile, so keep a single core here.
    )(Zx, Wh)


# ----------------------------------------------------------------------------
# Pure-JAX reference mirroring the PyTorch module (f32 throughout).
# ----------------------------------------------------------------------------
def _lstm_ref(X, Wf, Wi, Wc, Wo, bf_, bi_, bc_, bo_):
    B, T, E = X.shape
    h = jnp.zeros((B, E), jnp.float32)
    c = jnp.zeros((B, E), jnp.float32)
    for t in range(T):
        xcat = jnp.concatenate([X[:, t, :], h], axis=-1)
        f_t = jax.nn.sigmoid(xcat @ Wf + bf_)
        i_t = jax.nn.sigmoid(xcat @ Wi + bi_)
        c_tilde = jnp.tanh(xcat @ Wc + bc_)
        o_t = jax.nn.sigmoid(xcat @ Wo + bo_)
        c = c * f_t + i_t * c_tilde
        h = o_t * jnp.tanh(c)
    return h


if __name__ == "__main__":
    # Module default emb_dim=256; small batch / sequence length.
    B, T, E = 8, 16, 256
    key = jax.random.PRNGKey(0)
    k_x, k_wf, k_wi, k_wc, k_wo = jax.random.split(key, 5)

    X = jax.random.normal(k_x, (B, T, E), dtype=jnp.float32)

    # Deterministic parameter init mirroring __init__: randn weights, zero bias.
    Wf = jax.random.normal(k_wf, (2 * E, E), dtype=jnp.float32)
    Wi = jax.random.normal(k_wi, (2 * E, E), dtype=jnp.float32)
    Wc = jax.random.normal(k_wc, (2 * E, E), dtype=jnp.float32)
    Wo = jax.random.normal(k_wo, (2 * E, E), dtype=jnp.float32)
    bf_ = jnp.zeros((1, E), dtype=jnp.float32)
    bi_ = jnp.zeros((1, E), dtype=jnp.float32)
    bc_ = jnp.zeros((1, E), dtype=jnp.float32)
    bo_ = jnp.zeros((1, E), dtype=jnp.float32)

    out = lstm_forward(X, Wf, Wi, Wc, Wo, bf_, bi_, bc_, bo_)
    jax.block_until_ready(out)
    assert out.shape == (B, E), out.shape

    ref = _lstm_ref(X, Wf, Wi, Wc, Wo, bf_, bi_, bc_, bo_)
    max_err = float(jnp.max(jnp.abs(out - ref)))
    assert jnp.allclose(out, ref, atol=5e-3, rtol=5e-3), max_err

    print("KERNEL_OK")
</pallas_src>

<mosaic_0001>
module attributes {stable_mosaic.version = 11 : i64} {
  func.func @_lstm_recurrence_kernel(%arg0: i32, %arg1: memref<8x8x1024xf32, #tpu.memory_space<vmem>>, %arg2: memref<256x1024xf32, #tpu.memory_space<vmem>>, %arg3: memref<8x256xf32, #tpu.memory_space<vmem>>, %arg4: memref<8x256xf32, #tpu.memory_space<vmem>>, %arg5: memref<8x256xf32, #tpu.memory_space<vmem>>) attributes {dimension_semantics = [#tpu.dimension_semantics<arbitrary>], iteration_bounds = array<i64: 2>, scalar_prefetch = 0 : i64, scratch_operands = 2 : i64, tpu.core_type = #tpu.core_type<tc>, window_params = [{transform_indices = @transform_0, window_bounds = array<i64: 8, 8, 1024>}, {pipeline_mode = #tpu.pipeline_mode<synchronous>, transform_indices = @transform_1, window_bounds = array<i64: 256, 1024>}, {pipeline_mode = #tpu.pipeline_mode<synchronous>, transform_indices = @transform_2, window_bounds = array<i64: 8, 256>}]} {
    %c0_i32 = arith.constant 0 : i32
    %0 = arith.cmpi eq, %arg0, %c0_i32 : i32
    %1 = arith.extui %0 : i1 to i32
    %c0_i32_0 = arith.constant 0 : i32
    %2 = arith.cmpi ne, %1, %c0_i32_0 : i32
    scf.if %2 {
      %cst_44 = arith.constant 0.000000e+00 : f32
      %177 = vector.broadcast %cst_44 : f32 to vector<8x256xf32>
      %c0_45 = arith.constant 0 : index
      %c0_46 = arith.constant 0 : index
      %178 = vector.load %arg4[%c0_45, %c0_46] : memref<8x256xf32, #tpu.memory_space<vmem>>, vector<8x256xf32>
      tpu.vector_store %arg4[%c0_45, %c0_46], %177 {strides = array<i32>} : memref<8x256xf32, #tpu.memory_space<vmem>>, vector<8x256xf32>,
      %cst_47 = arith.constant 0.000000e+00 : f32
      %179 = vector.broadcast %cst_47 : f32 to vector<8x256xf32>
      %c0_48 = arith.constant 0 : index
      %c0_49 = arith.constant 0 : index
      %180 = vector.load %arg5[%c0_48, %c0_49] : memref<8x256xf32, #tpu.memory_space<vmem>>, vector<8x256xf32>
      tpu.vector_store %arg5[%c0_48, %c0_49], %179 {strides = array<i32>} : memref<8x256xf32, #tpu.memory_space<vmem>>, vector<8x256xf32>,
    } else {
    }
    %c0 = arith.constant 0 : index
    %c0_1 = arith.constant 0 : index
    %3 = vector.load %arg2[%c0, %c0_1] : memref<256x1024xf32, #tpu.memory_space<vmem>>, vector<256x1024xf32>
    %c0_2 = arith.constant 0 : index
    %c0_3 = arith.constant 0 : index
    %4 = vector.load %arg4[%c0_2, %c0_3] : memref<8x256xf32, #tpu.memory_space<vmem>>, vector<8x256xf32>
    %c0_4 = arith.constant 0 : index
    %c0_5 = arith.constant 0 : index
    %5 = vector.load %arg5[%c0_4, %c0_5] : memref<8x256xf32, #tpu.memory_space<vmem>>, vector<8x256xf32>
    %c0_i32_6 = arith.constant 0 : i32
    %6 = arith.index_cast %c0_i32_6 : i32 to index
    %c0_7 = arith.constant 0 : index
    %c0_8 = arith.constant 0 : index
    %7 = vector.load %arg1[%6, %c0_7, %c0_8] : memref<8x8x1024xf32, #tpu.memory_space<vmem>>, vector<1x8x1024xf32>
    %8 = vector.shape_cast %7 : vector<1x8x1024xf32> to vector<8x1024xf32>
    %cst = arith.constant dense<0.000000e+00> : vector<8x1024xf32>
    %9 = tpu.matmul %4, %3, %cst {dimension_numbers = #tpu.dot_dimension_numbers<[1], [0], [0], [1], [0, 0, 1, 1], [], []>} : vector<8x256xf32>, vector<256x1024xf32>, vector<8x1024xf32> -> vector<8x1024xf32>
    %10 = arith.addf %8, %9 : vector<8x1024xf32>
    %11 = vector.extract_strided_slice %10 {offsets = [0, 0], sizes = [8, 768], strides = [1, 1]} : vector<8x1024xf32> to vector<8x768xf32>
    %12 = arith.negf %11 : vector<8x768xf32>
    %13 = math.exp %12 : vector<8x768xf32>
    %cst_9 = arith.constant 1.000000e+00 : f32
    %14 = vector.broadcast %cst_9 : f32 to vector<8x768xf32>
    %15 = arith.addf %14, %13 : vector<8x768xf32>
    %16 = arith.divf %14, %15 : vector<8x768xf32>
    %17 = vector.extract_strided_slice %16 {offsets = [0, 0], sizes = [8, 256], strides = [1, 1]} : vector<8x768xf32> to vector<8x256xf32>
    %18 = vector.extract_strided_slice %16 {offsets = [0, 256], sizes = [8, 256], strides = [1, 1]} : vector<8x768xf32> to vector<8x256xf32>
    %19 = vector.extract_strided_slice %16 {offsets = [0, 512], sizes = [8, 256], strides = [1, 1]} : vector<8x768xf32> to vector<8x256xf32>
    %20 = vector.extract_strided_slice %10 {offsets = [0, 768], sizes = [8, 256], strides = [1, 1]} : vector<8x1024xf32> to vector<8x256xf32>
    %21 = math.tanh %20 : vector<8x256xf32>
    %22 = arith.mulf %5, %17 : vector<8x256xf32>
    %23 = arith.mulf %18, %21 : vector<8x256xf32>
    %24 = arith.addf %22, %23 : vector<8x256xf32>
    %25 = math.tanh %24 : vector<8x256xf32>
    %26 = arith.mulf %19, %25 : vector<8x256xf32>
    %c1_i32 = arith.constant 1 : i32
    %27 = arith.index_cast %c1_i32 : i32 to index
    %c0_10 = arith.constant 0 : index
    %c0_11 = arith.constant 0 : index
    %28 = vector.load %arg1[%27, %c0_10, %c0_11] : memref<8x8x1024xf32, #tpu.memory_space<vmem>>, vector<1x8x1024xf32>
    %29 = vector.shape_cast %28 : vector<1x8x1024xf32> to vector<8x1024xf32>
    %cst_12 = arith.constant dense<0.000000e+00> : vector<8x1024xf32>
    %30 = tpu.matmul %26, %3, %cst_12 {dimension_numbers = #tpu.dot_dimension_numbers<[1], [0], [0], [1], [0, 0, 1, 1], [], []>} : vector<8x256xf32>, vector<256x1024xf32>, vector<8x1024xf32> -> vector<8x1024xf32>
    %31 = arith.addf %29, %30 : vector<8x1024xf32>
    %32 = vector.extract_strided_slice %31 {offsets = [0, 0], sizes = [8, 768], strides = [1, 1]} : vector<8x1024xf32> to vector<8x768xf32>
    %33 = arith.negf %32 : vector<8x768xf32>
    %34 = math.exp %33 : vector<8x768xf32>
    %cst_13 = arith.constant 1.000000e+00 : f32
    %35 = vector.broadcast %cst_13 : f32 to vector<8x768xf32>
    %36 = arith.addf %35, %34 : vector<8x768xf32>
    %37 = arith.divf %35, %36 : vector<8x768xf32>
    %38 = vector.extract_strided_slice %37 {offsets = [0, 0], sizes = [8, 256], strides = [1, 1]} : vector<8x768xf32> to vector<8x256xf32>
    %39 = vector.extract_strided_slice %37 {offsets = [0, 256], sizes = [8, 256], strides = [1, 1]} : vector<8x768xf32> to vector<8x256xf32>
    %40 = vector.extract_strided_slice %37 {offsets = [0, 512], sizes = [8, 256], strides = [1, 1]} : vector<8x768xf32> to vector<8x256xf32>
    %41 = vector.extract_strided_slice %31 {offsets = [0, 768], sizes = [8, 256], strides = [1, 1]} : vector<8x1024xf32> to vector<8x256xf32>
    %42 = math.tanh %41 : vector<8x256xf32>
    %43 = arith.mulf %24, %38 : vector<8x256xf32>
    %44 = arith.mulf %39, %42 : vector<8x256xf32>
    %45 = arith.addf %43, %44 : vector<8x256xf32>
    %46 = math.tanh %45 : vector<8x256xf32>
    %47 = arith.mulf %40, %46 : vector<8x256xf32>
    %c2_i32 = arith.constant 2 : i32
    %48 = arith.index_cast %c2_i32 : i32 to index
    %c0_14 = arith.constant 0 : index
    %c0_15 = arith.constant 0 : index
    %49 = vector.load %arg1[%48, %c0_14, %c0_15] : memref<8x8x1024xf32, #tpu.memory_space<vmem>>, vector<1x8x1024xf32>
    %50 = vector.shape_cast %49 : vector<1x8x1024xf32> to vector<8x1024xf32>
    %cst_16 = arith.constant dense<0.000000e+00> : vector<8x1024xf32>
    %51 = tpu.matmul %47, %3, %cst_16 {dimension_numbers = #tpu.dot_dimension_numbers<[1], [0], [0], [1], [0, 0, 1, 1], [], []>} : vector<8x256xf32>, vector<256x1024xf32>, vector<8x1024xf32> -> vector<8x1024xf32>
    %52 = arith.addf %50, %51 : vector<8x1024xf32>
    %53 = vector.extract_strided_slice %52 {offsets = [0, 0], sizes = [8, 768], strides = [1, 1]} : vector<8x1024xf32> to vector<8x768xf32>
    %54 = arith.negf %53 : vector<8x768xf32>
    %55 = math.exp %54 : vector<8x768xf32>
    %cst_17 = arith.constant 1.000000e+00 : f32
    %56 = vector.broadcast %cst_17 : f32 to vector<8x768xf32>
    %57 = arith.addf %56, %55 : vector<8x768xf32>
    %58 = arith.divf %56, %57 : vector<8x768xf32>
    %59 = vector.extract_strided_slice %58 {offsets = [0, 0], sizes = [8, 256], strides = [1, 1]} : vector<8x768xf32> to vector<8x256xf32>
    %60 = vector.extract_strided_slice %58 {offsets = [0, 256], sizes = [8, 256], strides = [1, 1]} : vector<8x768xf32> to vector<8x256xf32>
    %61 = vector.extract_strided_slice %58 {offsets = [0, 512], sizes = [8, 256], strides = [1, 1]} : vector<8x768xf32> to vector<8x256xf32>
    %62 = vector.extract_strided_slice %52 {offsets = [0, 768], sizes = [8, 256], strides = [1, 1]} : vector<8x1024xf32> to vector<8x256xf32>
    %63 = math.tanh %62 : vector<8x256xf32>
    %64 = arith.mulf %45, %59 : vector<8x256xf32>
    %65 = arith.mulf %60, %63 : vector<8x256xf32>
    %66 = arith.addf %64, %65 : vector<8x256xf32>
    %67 = math.tanh %66 : vector<8x256xf32>
    %68 = arith.mulf %61, %67 : vector<8x256xf32>
    %c3_i32 = arith.constant 3 : i32
    %69 = arith.index_cast %c3_i32 : i32 to index
    %c0_18 = arith.constant 0 : index
    %c0_19 = arith.constant 0 : index
    %70 = vector.load %arg1[%69, %c0_18, %c0_19] : memref<8x8x1024xf32, #tpu.memory_space<vmem>>, vector<1x8x1024xf32>
    %71 = vector.shape_cast %70 : vector<1x8x1024xf32> to vector<8x1024xf32>
    %cst_20 = arith.constant dense<0.000000e+00> : vector<8x1024xf32>
    %72 = tpu.matmul %68, %3, %cst_20 {dimension_numbers = #tpu.dot_dimension_numbers<[1], [0], [0], [1], [0, 0, 1, 1], [], []>} : vector<8x256xf32>, vector<256x1024xf32>, vector<8x1024xf32> -> vector<8x1024xf32>
    %73 = arith.addf %71, %72 : vector<8x1024xf32>
    %74 = vector.extract_strided_slice %73 {offsets = [0, 0], sizes = [8, 768], strides = [1, 1]} : vector<8x1024xf32> to vector<8x768xf32>
    %75 = arith.negf %74 : vector<8x768xf32>
    %76 = math.exp %75 : vector<8x768xf32>
    %cst_21 = arith.constant 1.000000e+00 : f32
    %77 = vector.broadcast %cst_21 : f32 to vector<8x768xf32>
    %78 = arith.addf %77, %76 : vector<8x768xf32>
    %79 = arith.divf %77, %78 : vector<8x768xf32>
    %80 = vector.extract_strided_slice %79 {offsets = [0, 0], sizes = [8, 256], strides = [1, 1]} : vector<8x768xf32> to vector<8x256xf32>
    %81 = vector.extract_strided_slice %79 {offsets = [0, 256], sizes = [8, 256], strides = [1, 1]} : vector<8x768xf32> to vector<8x256xf32>
    %82 = vector.extract_strided_slice %79 {offsets = [0, 512], sizes = [8, 256], strides = [1, 1]} : vector<8x768xf32> to vector<8x256xf32>
    %83 = vector.extract_strided_slice %73 {offsets = [0, 768], sizes = [8, 256], strides = [1, 1]} : vector<8x1024xf32> to vector<8x256xf32>
    %84 = math.tanh %83 : vector<8x256xf32>
    %85 = arith.mulf %66, %80 : vector<8x256xf32>
    %86 = arith.mulf %81, %84 : vector<8x256xf32>
    %87 = arith.addf %85, %86 : vector<8x256xf32>
    %88 = math.tanh %87 : vector<8x256xf32>
    %89 = arith.mulf %82, %88 : vector<8x256xf32>
    %c4_i32 = arith.constant 4 : i32
    %90 = arith.index_cast %c4_i32 : i32 to index
    %c0_22 = arith.constant 0 : index
    %c0_23 = arith.constant 0 : index
    %91 = vector.load %arg1[%90, %c0_22, %c0_23] : memref<8x8x1024xf32, #tpu.memory_space<vmem>>, vector<1x8x1024xf32>
    %92 = vector.shape_cast %91 : vector<1x8x1024xf32> to vector<8x1024xf32>
    %cst_24 = arith.constant dense<0.000000e+00> : vector<8x1024xf32>
    %93 = tpu.matmul %89, %3, %cst_24 {dimension_numbers = #tpu.dot_dimension_numbers<[1], [0], [0], [1], [0, 0, 1, 1], [], []>} : vector<8x256xf32>, vector<256x1024xf32>, vector<8x1024xf32> -> vector<8x1024xf32>
    %94 = arith.addf %92, %93 : vector<8x1024xf32>
    %95 = vector.extract_strided_slice %94 {offsets = [0, 0], sizes = [8, 768], strides = [1, 1]} : vector<8x1024xf32> to vector<8x768xf32>
    %96 = arith.negf %95 : vector<8x768xf32>
    %97 = math.exp %96 : vector<8x768xf32>
    %cst_25 = arith.constant 1.000000e+00 : f32
    %98 = vector.broadcast %cst_25 : f32 to vector<8x768xf32>
    %99 = arith.addf %98, %97 : vector<8x768xf32>
    %100 = arith.divf %98, %99 : vector<8x768xf32>
    %101 = vector.extract_strided_slice %100 {offsets = [0, 0], sizes = [8, 256], strides = [1, 1]} : vector<8x768xf32> to vector<8x256xf32>
    %102 = vector.extract_strided_slice %100 {offsets = [0, 256], sizes = [8, 256], strides = [1, 1]} : vector<8x768xf32> to vector<8x256xf32>
    %103 = vector.extract_strided_slice %100 {offsets = [0, 512], sizes = [8, 256], strides = [1, 1]} : vector<8x768xf32> to vector<8x256xf32>
    %104 = vector.extract_strided_slice %94 {offsets = [0, 768], sizes = [8, 256], strides = [1, 1]} : vector<8x1024xf32> to vector<8x256xf32>
    %105 = math.tanh %104 : vector<8x256xf32>
    %106 = arith.mulf %87, %101 : vector<8x256xf32>
    %107 = arith.mulf %102, %105 : vector<8x256xf32>
    %108 = arith.addf %106, %107 : vector<8x256xf32>
    %109 = math.tanh %108 : vector<8x256xf32>
    %110 = arith.mulf %103, %109 : vector<8x256xf32>
    %c5_i32 = arith.constant 5 : i32
    %111 = arith.index_cast %c5_i32 : i32 to index
    %c0_26 = arith.constant 0 : index
    %c0_27 = arith.constant 0 : index
    %112 = vector.load %arg1[%111, %c0_26, %c0_27] : memref<8x8x1024xf32, #tpu.memory_space<vmem>>, vector<1x8x1024xf32>
    %113 = vector.shape_cast %112 : vector<1x8x1024xf32> to vector<8x1024xf32>
    %cst_28 = arith.constant dense<0.000000e+00> : vector<8x1024xf32>
    %114 = tpu.matmul %110, %3, %cst_28 {dimension_numbers = #tpu.dot_dimension_numbers<[1], [0], [0], [1], [0, 0, 1, 1], [], []>} : vector<8x256xf32>, vector<256x1024xf32>, vector<8x1024xf32> -> vector<8x1024xf32>
    %115 = arith.addf %113, %114 : vector<8x1024xf32>
    %116 = vector.extract_strided_slice %115 {offsets = [0, 0], sizes = [8, 768], strides = [1, 1]} : vector<8x1024xf32> to vector<8x768xf32>
    %117 = arith.negf %116 : vector<8x768xf32>
    %118 = math.exp %117 : vector<8x768xf32>
    %cst_29 = arith.constant 1.000000e+00 : f32
    %119 = vector.broadcast %cst_29 : f32 to vector<8x768xf32>
    %120 = arith.addf %119, %118 : vector<8x768xf32>
    %121 = arith.divf %119, %120 : vector<8x768xf32>
    %122 = vector.extract_strided_slice %121 {offsets = [0, 0], sizes = [8, 256], strides = [1, 1]} : vector<8x768xf32> to vector<8x256xf32>
    %123 = vector.extract_strided_slice %121 {offsets = [0, 256], sizes = [8, 256], strides = [1, 1]} : vector<8x768xf32> to vector<8x256xf32>
    %124 = vector.extract_strided_slice %121 {offsets = [0, 512], sizes = [8, 256], strides = [1, 1]} : vector<8x768xf32> to vector<8x256xf32>
    %125 = vector.extract_strided_slice %115 {offsets = [0, 768], sizes = [8, 256], strides = [1, 1]} : vector<8x1024xf32> to vector<8x256xf32>
    %126 = math.tanh %125 : vector<8x256xf32>
    %127 = arith.mulf %108, %122 : vector<8x256xf32>
    %128 = arith.mulf %123, %126 : vector<8x256xf32>
    %129 = arith.addf %127, %128 : vector<8x256xf32>
    %130 = math.tanh %129 : vector<8x256xf32>
    %131 = arith.mulf %124, %130 : vector<8x256xf32>
    %c6_i32 = arith.constant 6 : i32
    %132 = arith.index_cast %c6_i32 : i32 to index
    %c0_30 = arith.constant 0 : index
    %c0_31 = arith.constant 0 : index
    %133 = vector.load %arg1[%132, %c0_30, %c0_31] : memref<8x8x1024xf32, #tpu.memory_space<vmem>>, vector<1x8x1024xf32>
    %134 = vector.shape_cast %133 : vector<1x8x1024xf32> to vector<8x1024xf32>
    %cst_32 = arith.constant dense<0.000000e+00> : vector<8x1024xf32>
    %135 = tpu.matmul %131, %3, %cst_32 {dimension_numbers = #tpu.dot_dimension_numbers<[1], [0], [0], [1], [0, 0, 1, 1], [], []>} : vector<8x256xf32>, vector<256x1024xf32>, vector<8x1024xf32> -> vector<8x1024xf32>
    %136 = arith.addf %134, %135 : vector<8x1024xf32>
    %137 = vector.extract_strided_slice %136 {offsets = [0, 0], sizes = [8, 768], strides = [1, 1]} : vector<8x1024xf32> to vector<8x768xf32>
    %138 = arith.negf %137 : vector<8x768xf32>
    %139 = math.exp %138 : vector<8x768xf32>
    %cst_33 = arith.constant 1.000000e+00 : f32
    %140 = vector.broadcast %cst_33 : f32 to vector<8x768xf32>
    %141 = arith.addf %140, %139 : vector<8x768xf32>
    %142 = arith.divf %140, %141 : vector<8x768xf32>
    %143 = vector.extract_strided_slice %142 {offsets = [0, 0], sizes = [8, 256], strides = [1, 1]} : vector<8x768xf32> to vector<8x256xf32>
    %144 = vector.extract_strided_slice %142 {offsets = [0, 256], sizes = [8, 256], strides = [1, 1]} : vector<8x768xf32> to vector<8x256xf32>
    %145 = vector.extract_strided_slice %142 {offsets = [0, 512], sizes = [8, 256], strides = [1, 1]} : vector<8x768xf32> to vector<8x256xf32>
    %146 = vector.extract_strided_slice %136 {offsets = [0, 768], sizes = [8, 256], strides = [1, 1]} : vector<8x1024xf32> to vector<8x256xf32>
    %147 = math.tanh %146 : vector<8x256xf32>
    %148 = arith.mulf %129, %143 : vector<8x256xf32>
    %149 = arith.mulf %144, %147 : vector<8x256xf32>
    %150 = arith.addf %148, %149 : vector<8x256xf32>
    %151 = math.tanh %150 : vector<8x256xf32>
    %152 = arith.mulf %145, %151 : vector<8x256xf32>
    %c7_i32 = arith.constant 7 : i32
    %153 = arith.index_cast %c7_i32 : i32 to index
    %c0_34 = arith.constant 0 : index
    %c0_35 = arith.constant 0 : index
    %154 = vector.load %arg1[%153, %c0_34, %c0_35] : memref<8x8x1024xf32, #tpu.memory_space<vmem>>, vector<1x8x1024xf32>
    %155 = vector.shape_cast %154 : vector<1x8x1024xf32> to vector<8x1024xf32>
    %cst_36 = arith.constant dense<0.000000e+00> : vector<8x1024xf32>
    %156 = tpu.matmul %152, %3, %cst_36 {dimension_numbers = #tpu.dot_dimension_numbers<[1], [0], [0], [1], [0, 0, 1, 1], [], []>} : vector<8x256xf32>, vector<256x1024xf32>, vector<8x1024xf32> -> vector<8x1024xf32>
    %157 = arith.addf %155, %156 : vector<8x1024xf32>
    %158 = vector.extract_strided_slice %157 {offsets = [0, 0], sizes = [8, 768], strides = [1, 1]} : vector<8x1024xf32> to vector<8x768xf32>
    %159 = arith.negf %158 : vector<8x768xf32>
    %160 = math.exp %159 : vector<8x768xf32>
    %cst_37 = arith.constant 1.000000e+00 : f32
    %161 = vector.broadcast %cst_37 : f32 to vector<8x768xf32>
    %162 = arith.addf %161, %160 : vector<8x768xf32>
    %163 = arith.divf %161, %162 : vector<8x768xf32>
    %164 = vector.extract_strided_slice %163 {offsets = [0, 0], sizes = [8, 256], strides = [1, 1]} : vector<8x768xf32> to vector<8x256xf32>
    %165 = vector.extract_strided_slice %163 {offsets = [0, 256], sizes = [8, 256], strides = [1, 1]} : vector<8x768xf32> to vector<8x256xf32>
    %166 = vector.extract_strided_slice %163 {offsets = [0, 512], sizes = [8, 256], strides = [1, 1]} : vector<8x768xf32> to vector<8x256xf32>
    %167 = vector.extract_strided_slice %157 {offsets = [0, 768], sizes = [8, 256], strides = [1, 1]} : vector<8x1024xf32> to vector<8x256xf32>
    %168 = math.tanh %167 : vector<8x256xf32>
    %169 = arith.mulf %150, %164 : vector<8x256xf32>
    %170 = arith.mulf %165, %168 : vector<8x256xf32>
    %171 = arith.addf %169, %170 : vector<8x256xf32>
    %172 = math.tanh %171 : vector<8x256xf32>
    %173 = arith.mulf %166, %172 : vector<8x256xf32>
    %c8_i32 = arith.constant 8 : i32
    %c0_38 = arith.constant 0 : index
    %c0_39 = arith.constant 0 : index
    %174 = vector.load %arg4[%c0_38, %c0_39] : memref<8x256xf32, #tpu.memory_space<vmem>>, vector<8x256xf32>
    tpu.vector_store %arg4[%c0_38, %c0_39], %173 {strides = array<i32>} : memref<8x256xf32, #tpu.memory_space<vmem>>, vector<8x256xf32>,
    %c0_40 = arith.constant 0 : index
    %c0_41 = arith.constant 0 : index
    %175 = vector.load %arg5[%c0_40, %c0_41] : memref<8x256xf32, #tpu.memory_space<vmem>>, vector<8x256xf32>
    tpu.vector_store %arg5[%c0_40, %c0_41], %171 {strides = array<i32>} : memref<8x256xf32, #tpu.memory_space<vmem>>, vector<8x256xf32>,
    %c0_42 = arith.constant 0 : index
    %c0_43 = arith.constant 0 : index
    %176 = vector.load %arg3[%c0_42, %c0_43] : memref<8x256xf32, #tpu.memory_space<vmem>>, vector<8x256xf32>
    tpu.vector_store %arg3[%c0_42, %c0_43], %173 {strides = array<i32>} : memref<8x256xf32, #tpu.memory_space<vmem>>, vector<8x256xf32>,
    return
  }
  func.func @transform_0(%arg0: i32) -> (i32, i32, i32) {
    %c0_i32 = arith.constant 0 : i32
    %c0_i32_0 = arith.constant 0 : i32
    %c0_i32_1 = arith.constant 0 : i32
    return %arg0, %c0_i32, %c0_i32_0 : i32, i32, i32
  }
  func.func @transform_1(%arg0: i32) -> (i32, i32) {
    %c0_i32 = arith.constant 0 : i32
    %c0_i32_0 = arith.constant 0 : i32
    %c0_i32_1 = arith.constant 0 : i32
    return %c0_i32, %c0_i32_0 : i32, i32
  }
  func.func @transform_2(%arg0: i32) -> (i32, i32) {
    %c0_i32 = arith.constant 0 : i32
    %c0_i32_0 = arith.constant 0 : i32
    %c0_i32_1 = arith.constant 0 : i32
    return %c0_i32, %c0_i32_0 : i32, i32
  }
}

</mosaic_0001>

<llo_original>
// kernel: lstm_forward.1
$region0: #{lstm_forward.1}
  #allocation0 [shape = 'u32[]', space=smem, size = 0x4, offset = 0x4, fixed_abs, tag = 'smem constant byte address 0x4 - core index']
  #allocation1 [shape = 'u32[144,128]{1,0:T(1,128)}', space=vmem, size = 0x12000, scoped, tag = 'internal scratch']
  #allocation2 [shape = 'f32[8,256]{1,0:T(8,128)}', space=vmem, size = 0x2000, scoped, tag = 'scratch operand']
  #allocation3 [shape = 'f32[8,256]{1,0:T(8,128)}', space=vmem, size = 0x2000, scoped, tag = 'scratch operand']
  %s0 = inlined_call_operand.vmem [shape: f32[16,8,1024], index: 0, kind: input, shape index: {}]
  %s1 = inlined_call_operand.vmem [shape: f32[256,1024], index: 1, kind: input, shape index: {}]
  %s2 = inlined_call_operand.hbm [shape: f32[8,256], index: 2, kind: output, shape index: {}]
  %s3 = sld [smem:[#allocation0]]
  $region45: #{lstm_forward.1} parent=0
    _
  %s5 = ssub.s32 1, %s3
  %s6 = scalar_select 0, %s5, %s3
  $region1: #{lstm_forward.1} parent=0
    #allocation4 [shape = 'u8[8192]{0}', space=vmem, size = 0x2000, scoped, tag = 'output window, operand 0, single buffered']
    #allocation5 [shape = 's32[2]{0}', space=sflag, size = 0x8, scoped, tag = 'scoped memory for lstm_forward.1']
    %7 = vsyncpa [#allocation5], 0
    loop: start=0, step=1, limit=4
    $region2: #{lstm_forward.1} parent=1 // loop_pre_header
      _
    $region3: #{lstm_forward.1} parent=1 // loop_header
      %s9 = sphi 0, %s13
      %p10 = scmp.ge.s32.totalorder %s9, 4
      %s19 = sphi 0, %s21
      %s22 = sphi 0, %s19
      %s23 = sphi 0, %s22
      %s39 = sphi 0, %s23
      %s43 = sphi 0, %s43
      %s45 = sphi 0, %s43
      %s46 = sphi 0, %s45
      %s60 = sphi 0, %s46
      %s64 = sphi 0, %s64
      %s66 = sphi 0, %s64
      %s67 = sphi 0, %s66
      %s81 = sphi 0, %s67
    $region4: #{lstm_forward.1} parent=1 // loop_header_branch
      %12 = sbr.rel (%p10) target = $region8
    $region5: #{lstm_forward.1} parent=1 // loop_body
      %s14 = ssub.s32 %s9, 1
      %s15 = ssub.s32 %s9, 2
      %s16 = sadd.s32 %s9, 1
      %s17 = ssub.s32 %s9, %s16
      %p18 = scmp.eq.s32.totalorder %s17, 0
      %s20 = sadd.s32 %s19, 1
      %s21 = scalar_select %p18, %s19, %s20
      %p24 = pneg %p18
      %p25 = scmp.eq.s32.totalorder %s9, 1
      %p26 = por %p24, %p25
      %p27 = scmp.ne.s32.totalorder %s19, %s22
      %p28 = scmp.eq.s32.totalorder %s9, 0
      %p29 = por %p27, %p28
      %p30 = scmp.ne.s32.totalorder %s19, %s22
      %p31 = scmp.eq.s32.totalorder %s14, 1
      %p32 = por %p30, %p31
      %p33 = scmp.ne.s32.totalorder %s22, %s23
      %p34 = scmp.eq.s32.totalorder %s14, 0
      %p35 = por %p33, %p34
      %p36 = scmp.ne.s32.totalorder %s22, %s23
      %p37 = scmp.eq.s32.totalorder %s15, 1
      %p38 = por %p36, %p37
      %p40 = scmp.ne.s32.totalorder %s23, %s39
      %p41 = scmp.eq.s32.totalorder %s15, 0
      %p42 = por %p40, %p41
      %s44 = sadd.s32 %s43, 1
      %p47 = scmp.eq.s32.totalorder %s9, 1
      %p48 = scmp.ne.s32.totalorder %s43, %s45
      %p49 = scmp.eq.s32.totalorder %s9, 0
      %p50 = por %p48, %p49
      %p51 = scmp.ne.s32.totalorder %s43, %s45
      %p52 = scmp.eq.s32.totalorder %s14, 1
      %p53 = por %p51, %p52
      %p54 = scmp.ne.s32.totalorder %s45, %s46
      %p55 = scmp.eq.s32.totalorder %s14, 0
      %p56 = por %p54, %p55
      %p57 = scmp.ne.s32.totalorder %s45, %s46
      %p58 = scmp.eq.s32.totalorder %s15, 1
      %p59 = por %p57, %p58
      %p61 = scmp.ne.s32.totalorder %s46, %s60
      %p62 = scmp.eq.s32.totalorder %s15, 0
      %p63 = por %p61, %p62
      %s65 = sadd.s32 %s64, 1
      %p68 = scmp.eq.s32.totalorder %s9, 1
      %p69 = scmp.ne.s32.totalorder %s64, %s66
      %p70 = scmp.eq.s32.totalorder %s9, 0
      %p71 = por %p69, %p70
      %p72 = scmp.ne.s32.totalorder %s64, %s66
      %p73 = scmp.eq.s32.totalorder %s14, 1
      %p74 = por %p72, %p73
      %p75 = scmp.ne.s32.totalorder %s66, %s67
      %p76 = scmp.eq.s32.totalorder %s14, 0
      %p77 = por %p75, %p76
      %p78 = scmp.ne.s32.totalorder %s66, %s67
      %p79 = scmp.eq.s32.totalorder %s15, 1
      %p80 = por %p78, %p79
      %p82 = scmp.ne.s32.totalorder %s67, %s81
      %p83 = scmp.eq.s32.totalorder %s15, 0
      %p84 = por %p82, %p83
      %p85 = scmp.le.s32.totalorder 1, %s9
      %p86 = scmp.lt.s32.totalorder %s9, 3
      %p87 = pnand %p85, %p86
      %p88 = pneg %p87
      // Predicated region
      $region9: #{lstm_forward.1} parent=5 // pred_check
        _
      $region10: #{lstm_forward.1} parent=5 // pred_check_branch
        %90 = sbr.rel (%p87) target = $region12
      $region11: #{lstm_forward.1} parent=5 // pred_region
        %s91 = ssub.s32 %s9, 1
        // Predicated region
        $region13: #{lstm_forward.1} parent=11 // pred_check
          %p92 = pneg %p56
        $region14: #{lstm_forward.1} parent=11 // pred_check_branch
          %94 = sbr.rel (%p92) target = $region16
        $region15: #{lstm_forward.1} parent=11 // pred_region
          _
        $region16: #{lstm_forward.1} parent=11 // pred_fallthru
          _
      $region12: #{lstm_forward.1} parent=5 // pred_fallthru
        _
      %p95 = scmp.lt.s32.totalorder %s9, 2
      // Predicated region
      $region17: #{lstm_forward.1} parent=5 // pred_check
        %p96 = pneg %p95
      $region18: #{lstm_forward.1} parent=5 // pred_check_branch
        %98 = sbr.rel (%p96) target = $region20
      $region19: #{lstm_forward.1} parent=5 // pred_region
        // Predicated region
        $region21: #{lstm_forward.1} parent=19 // pred_check
          %p99 = pneg %p29
        $region22: #{lstm_forward.1} parent=19 // pred_check_branch
          %101 = sbr.rel (%p99) target = $region24
        $region23: #{lstm_forward.1} parent=19 // pred_region
          %s102 = smul.u32 8, %s9
          %p103 = scmp.lt.s32.totalorder %s102, 15
          %s104 = scalar_select %p103, %s102, 15
          %s105 = smul.addr %s104, 8
          %s106 = smul.addr %s105, 8
          %s107 = scalar_lea.vmem %s0, %s106
          %s108 = smul.u32 8, %s9
        $region24: #{lstm_forward.1} parent=19 // pred_fallthru
          _
      $region20: #{lstm_forward.1} parent=5 // pred_fallthru
        _
      %p109 = scmp.le.s32.totalorder 1, %s9
      %p110 = scmp.lt.s32.totalorder %s9, 3
      %p111 = pnand %p109, %p110
      %p112 = pneg %p111
      // Predicated region
      $region25: #{lstm_forward.1} parent=5 // pred_check
        _
      $region26: #{lstm_forward.1} parent=5 // pred_check_branch
        %114 = sbr.rel (%p111) target = $region28
      $region27: #{lstm_forward.1} parent=5 // pred_region
        %s115 = ssub.s32 %s9, 1
        %s116 = smul.u32 8, %s14
        %p117 = scmp.lt.s32.totalorder %s116, 15
        %s118 = scalar_select %p117, %s116, 15
        %s119 = smul.addr %s118, 8
        %s120 = smul.addr %s119, 8
        %s121 = scalar_lea.vmem %s0, %s120
        %p122 = pneg %p35
        %p123 = pneg %p32
        %p124 = pneg %p56
        %p125 = pneg %p53
        %p126 = pneg %p77
        %p127 = pneg %p74
        %s128 = smul.u32 8, %s14
        %p129 = scmp.lt.s32.totalorder %s128, 15
        %s130 = scalar_select %p129, %s128, 15
        %s131 = smul.addr %s130, 8
        %s132 = smul.addr %s131, 8
        %s133 = scalar_lea.vmem %s0, %s132
        %s134 = smul.u32 8, %s14
        %p135 = scmp.eq.s32.totalorder %s14, 0
        // Predicated region
        $region29: #{lstm_forward.1} parent=27 // pred_check
          %p136 = pneg %p135
        $region30: #{lstm_forward.1} parent=27 // pred_check_branch
          %138 = sbr.rel (%p136) target = $region32
        $region31: #{lstm_forward.1} parent=27 // pred_region
          %139 = vst [vmem:[#allocation2] sm:$0xff] 0.0
          %140 = vst [vmem:[#allocation2 + $0x8] sm:$0xff] 0.0
          %141 = vst [vmem:[#allocation3] sm:$0xff] 0.0
          %142 = vst [vmem:[#allocation3 + $0x8] sm:$0xff] 0.0
        $region32: #{lstm_forward.1} parent=27 // pred_fallthru
          _
        %v143 = vld [vmem:[%s1] sm:$0xff]
        %v144 = vld [vmem:[%s1 + $0x8] sm:$0xff]
        %v145 = vld [vmem:[%s1 + $0x10] sm:$0xff]
        %v146 = vld [vmem:[%s1 + $0x18] sm:$0xff]
        %v147 = vld [vmem:[%s1 + $0x20] sm:$0xff]
        %v148 = vld [vmem:[%s1 + $0x28] sm:$0xff]
        %v149 = vld [vmem:[%s1 + $0x30] sm:$0xff]
        %v150 = vld [vmem:[%s1 + $0x38] sm:$0xff]
        %v151 = vld [vmem:[%s1 + $0x40] sm:$0xff]
        %v152 = vld [vmem:[%s1 + $0x48] sm:$0xff]
        %v153 = vld [vmem:[%s1 + $0x50] sm:$0xff]
        %v154 = vld [vmem:[%s1 + $0x58] sm:$0xff]
        %v155 = vld [vmem:[%s1 + $0x60] sm:$0xff]
        %v156 = vld [vmem:[%s1 + $0x68] sm:$0xff]
        %v157 = vld [vmem:[%s1 + $0x70] sm:$0xff]
        %v158 = vld [vmem:[%s1 + $0x78] sm:$0xff]
        %v159 = vld [vmem:[%s1 + $0x80] sm:$0xff]
        %v160 = vld [vmem:[%s1 + $0x88] sm:$0xff]
        %v161 = vld [vmem:[%s1 + $0x90] sm:$0xff]
        %v162 = vld [vmem:[%s1 + $0x98] sm:$0xff]
        %v163 = vld [vmem:[%s1 + $0xa0] sm:$0xff]
        %v164 = vld [vmem:[%s1 + $0xa8] sm:$0xff]
        %v165 = vld [vmem:[%s1 + $0xb0] sm:$0xff]
        %v166 = vld [vmem:[%s1 + $0xb8] sm:$0xff]
        %v167 = vld [vmem:[%s1 + $0xc0] sm:$0xff]
        %v168 = vld [vmem:[%s1 + $0xc8] sm:$0xff]
        %v169 = vld [vmem:[%s1 + $0xd0] sm:$0xff]
        %v170 = vld [vmem:[%s1 + $0xd8] sm:$0xff]
        %v171 = vld [vmem:[%s1 + $0xe0] sm:$0xff]
        %v172 = vld [vmem:[%s1 + $0xe8] sm:$0xff]
        %v173 = vld [vmem:[%s1 + $0xf0] sm:$0xff]
        %v174 = vld [vmem:[%s1 + $0xf8] sm:$0xff]
        %v175 = vld [vmem:[%s1 + $0x100] sm:$0xff]
        %v176 = vld [vmem:[%s1 + $0x108] sm:$0xff]
        %v177 = vld [vmem:[%s1 + $0x110] sm:$0xff]
        %v178 = vld [vmem:[%s1 + $0x118] sm:$0xff]
        %v179 = vld [vmem:[%s1 + $0x120] sm:$0xff]
        %v180 = vld [vmem:[%s1 + $0x128] sm:$0xff]
        %v181 = vld [vmem:[%s1 + $0x130] sm:$0xff]
        %v182 = vld [vmem:[%s1 + $0x138] sm:$0xff]
        %v183 = vld [vmem:[%s1 + $0x140] sm:$0xff]
        %v184 = vld [vmem:[%s1 + $0x148] sm:$0xff]
        %v185 = vld [vmem:[%s1 + $0x150] sm:$0xff]
        %v186 = vld [vmem:[%s1 + $0x158] sm:$0xff]
        %v187 = vld [vmem:[%s1 + $0x160] sm:$0xff]
        %v188 = vld [vmem:[%s1 + $0x168] sm:$0xff]
        %v189 = vld [vmem:[%s1 + $0x170] sm:$0xff]
        %v190 = vld [vmem:[%s1 + $0x178] sm:$0xff]
        %v191 = vld [vmem:[%s1 + $0x180] sm:$0xff]
        %v192 = vld [vmem:[%s1 + $0x188] sm:$0xff]
        %v193 = vld [vmem:[%s1 + $0x190] sm:$0xff]
        %v194 = vld [vmem:[%s1 + $0x198] sm:$0xff]
        %v195 = vld [vmem:[%s1 + $0x1a0] sm:$0xff]
        %v196 = vld [vmem:[%s1 + $0x1a8] sm:$0xff]
        %v197 = vld [vmem:[%s1 + $0x1b0] sm:$0xff]
        %v198 = vld [vmem:[%s1 + $0x1b8] sm:$0xff]
        %v199 = vld [vmem:[%s1 + $0x1c0] sm:$0xff]
        %v200 = vld [vmem:[%s1 + $0x1c8] sm:$0xff]
        %v201 = vld [vmem:[%s1 + $0x1d0] sm:$0xff]
        %v202 = vld [vmem:[%s1 + $0x1d8] sm:$0xff]
        %v203 = vld [vmem:[%s1 + $0x1e0] sm:$0xff]
        %v204 = vld [vmem:[%s1 + $0x1e8] sm:$0xff]
        %v205 = vld [vmem:[%s1 + $0x1f0] sm:$0xff]
        %v206 = vld [vmem:[%s1 + $0x1f8] sm:$0xff]
        %v207 = vld [vmem:[%s1 + $0x200] sm:$0xff]
        %v208 = vld [vmem:[%s1 + $0x208] sm:$0xff]
        %v209 = vld [vmem:[%s1 + $0x210] sm:$0xff]
        %v210 = vld [vmem:[%s1 + $0x218] sm:$0xff]
        %v211 = vld [vmem:[%s1 + $0x220] sm:$0xff]
        %v212 = vld [vmem:[%s1 + $0x228] sm:$0xff]
        %v213 = vld [vmem:[%s1 + $0x230] sm:$0xff]
        %v214 = vld [vmem:[%s1 + $0x238] sm:$0xff]
        %v215 = vld [vmem:[%s1 + $0x240] sm:$0xff]
        %v216 = vld [vmem:[%s1 + $0x248] sm:$0xff]
        %v217 = vld [vmem:[%s1 + $0x250] sm:$0xff]
        %v218 = vld [vmem:[%s1 + $0x258] sm:$0xff]
        %v219 = vld [vmem:[%s1 + $0x260] sm:$0xff]
        %v220 = vld [vmem:[%s1 + $0x268] sm:$0xff]
        %v221 = vld [vmem:[%s1 + $0x270] sm:$0xff]
        %v222 = vld [vmem:[%s1 + $0x278] sm:$0xff]
        %v223 = vld [vmem:[%s1 + $0x280] sm:$0xff]
        %v224 = vld [vmem:[%s1 + $0x288] sm:$0xff]
        %v225 = vld [vmem:[%s1 + $0x290] sm:$0xff]
        %v226 = vld [vmem:[%s1 + $0x298] sm:$0xff]
        %v227 = vld [vmem:[%s1 + $0x2a0] sm:$0xff]
        %v228 = vld [vmem:[%s1 + $0x2a8] sm:$0xff]
        %v229 = vld [vmem:[%s1 + $0x2b0] sm:$0xff]
        %v230 = vld [vmem:[%s1 + $0x2b8] sm:$0xff]
        %v231 = vld [vmem:[%s1 + $0x2c0] sm:$0xff]
        %v232 = vld [vmem:[%s1 + $0x2c8] sm:$0xff]
        %v233 = vld [vmem:[%s1 + $0x2d0] sm:$0xff]
        %v234 = vld [vmem:[%s1 + $0x2d8] sm:$0xff]
        %v235 = vld [vmem:[%s1 + $0x2e0] sm:$0xff]
        %v236 = vld [vmem:[%s1 + $0x2e8] sm:$0xff]
        %v237 = vld [vmem:[%s1 + $0x2f0] sm:$0xff]
        %v238 = vld [vmem:[%s1 + $0x2f8] sm:$0xff]
        %v239 = vld [vmem:[%s1 + $0x300] sm:$0xff]
        %v240 = vld [vmem:[%s1 + $0x308] sm:$0xff]
        %v241 = vld [vmem:[%s1 + $0x310] sm:$0xff]
        %v242 = vld [vmem:[%s1 + $0x318] sm:$0xff]
        %v243 = vld [vmem:[%s1 + $0x320] sm:$0xff]
        %v244 = vld [vmem:[%s1 + $0x328] sm:$0xff]
        %v245 = vld [vmem:[%s1 + $0x330] sm:$0xff]
        %v246 = vld [vmem:[%s1 + $0x338] sm:$0xff]
        %v247 = vld [vmem:[%s1 + $0x340] sm:$0xff]
        %v248 = vld [vmem:[%s1 + $0x348] sm:$0xff]
        %v249 = vld [vmem:[%s1 + $0x350] sm:$0xff]
        %v250 = vld [vmem:[%s1 + $0x358] sm:$0xff]
        %v251 = vld [vmem:[%s1 + $0x360] sm:$0xff]
        %v252 = vld [vmem:[%s1 + $0x368] sm:$0xff]
        %v253 = vld [vmem:[%s1 + $0x370] sm:$0xff]
        %v254 = vld [vmem:[%s1 + $0x378] sm:$0xff]
        %v255 = vld [vmem:[%s1 + $0x380] sm:$0xff]
        %v256 = vld [vmem:[%s1 + $0x388] sm:$0xff]
        %v257 = vld [vmem:[%s1 + $0x390] sm:$0xff]
        %v258 = vld [vmem:[%s1 + $0x398] sm:$0xff]
        %v259 = vld [vmem:[%s1 + $0x3a0] sm:$0xff]
        %v260 = vld [vmem:[%s1 + $0x3a8] sm:$0xff]
        %v261 = vld [vmem:[%s1 + $0x3b0] sm:$0xff]
        %v262 = vld [vmem:[%s1 + $0x3b8] sm:$0xff]
        %v263 = vld [vmem:[%s1 + $0x3c0] sm:$0xff]
        %v264 = vld [vmem:[%s1 + $0x3c8] sm:$0xff]
        %v265 = vld [vmem:[%s1 + $0x3d0] sm:$0xff]
        %v266 = vld [vmem:[%s1 + $0x3d8] sm:$0xff]
        %v267 = vld [vmem:[%s1 + $0x3e0] sm:$0xff]
        %v268 = vld [vmem:[%s1 + $0x3e8] sm:$0xff]
        %v269 = vld [vmem:[%s1 + $0x3f0] sm:$0xff]
        %v270 = vld [vmem:[%s1 + $0x3f8] sm:$0xff]
        %v271 = vld [vmem:[%s1 + $0x400] sm:$0xff]
        %v272 = vld [vmem:[%s1 + $0x408] sm:$0xff]
        %v273 = vld [vmem:[%s1 + $0x410] sm:$0xff]
        %v274 = vld [vmem:[%s1 + $0x418] sm:$0xff]
        %v275 = vld [vmem:[%s1 + $0x420] sm:$0xff]
        %v276 = vld [vmem:[%s1 + $0x428] sm:$0xff]
        %v277 = vld [vmem:[%s1 + $0x430] sm:$0xff]
        %v278 = vld [vmem:[%s1 + $0x438] sm:$0xff]
        %v279 = vld [vmem:[%s1 + $0x440] sm:$0xff]
        %v280 = vld [vmem:[%s1 + $0x448] sm:$0xff]
        %v281 = vld [vmem:[%s1 + $0x450] sm:$0xff]
        %v282 = vld [vmem:[%s1 + $0x458] sm:$0xff]
        %v283 = vld [vmem:[%s1 + $0x460] sm:$0xff]
        %v284 = vld [vmem:[%s1 + $0x468] sm:$0xff]
        %v285 = vld [vmem:[%s1 + $0x470] sm:$0xff]
        %v286 = vld [vmem:[%s1 + $0x478] sm:$0xff]
        %v287 = vld [vmem:[%s1 + $0x480] sm:$0xff]
        %v288 = vld [vmem:[%s1 + $0x488] sm:$0xff]
        %v289 = vld [vmem:[%s1 + $0x490] sm:$0xff]
        %v290 = vld [vmem:[%s1 + $0x498] sm:$0xff]
        %v291 = vld [vmem:[%s1 + $0x4a0] sm:$0xff]
        %v292 = vld [vmem:[%s1 + $0x4a8] sm:$0xff]
        %v293 = vld [vmem:[%s1 + $0x4b0] sm:$0xff]
        %v294 = vld [vmem:[%s1 + $0x4b8] sm:$0xff]
        %v295 = vld [vmem:[%s1 + $0x4c0] sm:$0xff]
        %v296 = vld [vmem:[%s1 + $0x4c8] sm:$0xff]
        %v297 = vld [vmem:[%s1 + $0x4d0] sm:$0xff]
        %v298 = vld [vmem:[%s1 + $0x4d8] sm:$0xff]
        %v299 = vld [vmem:[%s1 + $0x4e0] sm:$0xff]
        %v300 = vld [vmem:[%s1 + $0x4e8] sm:$0xff]
        %v301 = vld [vmem:[%s1 + $0x4f0] sm:$0xff]
        %v302 = vld [vmem:[%s1 + $0x4f8] sm:$0xff]
        %v303 = vld [vmem:[%s1 + $0x500] sm:$0xff]
        %v304 = vld [vmem:[%s1 + $0x508] sm:$0xff]
        %v305 = vld [vmem:[%s1 + $0x510] sm:$0xff]
        %v306 = vld [vmem:[%s1 + $0x518] sm:$0xff]
        %v307 = vld [vmem:[%s1 + $0x520] sm:$0xff]
        %v308 = vld [vmem:[%s1 + $0x528] sm:$0xff]
        %v309 = vld [vmem:[%s1 + $0x530] sm:$0xff]
        %v310 = vld [vmem:[%s1 + $0x538] sm:$0xff]
        %v311 = vld [vmem:[%s1 + $0x540] sm:$0xff]
        %v312 = vld [vmem:[%s1 + $0x548] sm:$0xff]
        %v313 = vld [vmem:[%s1 + $0x550] sm:$0xff]
        %v314 = vld [vmem:[%s1 + $0x558] sm:$0xff]
        %v315 = vld [vmem:[%s1 + $0x560] sm:$0xff]
        %v316 = vld [vmem:[%s1 + $0x568] sm:$0xff]
        %v317 = vld [vmem:[%s1 + $0x570] sm:$0xff]
        %v318 = vld [vmem:[%s1 + $0x578] sm:$0xff]
        %v319 = vld [vmem:[%s1 + $0x580] sm:$0xff]
        %v320 = vld [vmem:[%s1 + $0x588] sm:$0xff]
        %v321 = vld [vmem:[%s1 + $0x590] sm:$0xff]
        %v322 = vld [vmem:[%s1 + $0x598] sm:$0xff]
        %v323 = vld [vmem:[%s1 + $0x5a0] sm:$0xff]
        %v324 = vld [vmem:[%s1 + $0x5a8] sm:$0xff]
        %v325 = vld [vmem:[%s1 + $0x5b0] sm:$0xff]
        %v326 = vld [vmem:[%s1 + $0x5b8] sm:$0xff]
        %v327 = vld [vmem:[%s1 + $0x5c0] sm:$0xff]
        %v328 = vld [vmem:[%s1 + $0x5c8] sm:$0xff]
        %v329 = vld [vmem:[%s1 + $0x5d0] sm:$0xff]
        %v330 = vld [vmem:[%s1 + $0x5d8] sm:$0xff]
        %v331 = vld [vmem:[%s1 + $0x5e0] sm:$0xff]
        %v332 = vld [vmem:[%s1 + $0x5e8] sm:$0xff]
        %v333 = vld [vmem:[%s1 + $0x5f0] sm:$0xff]
        %v334 = vld [vmem:[%s1 + $0x5f8] sm:$0xff]
        %v335 = vld [vmem:[%s1 + $0x600] sm:$0xff]
        %v336 = vld [vmem:[%s1 + $0x608] sm:$0xff]
        %v337 = vld [vmem:[%s1 + $0x610] sm:$0xff]
        %v338 = vld [vmem:[%s1 + $0x618] sm:$0xff]
        %v339 = vld [vmem:[%s1 + $0x620] sm:$0xff]
        %v340 = vld [vmem:[%s1 + $0x628] sm:$0xff]
        %v341 = vld [vmem:[%s1 + $0x630] sm:$0xff]
        %v342 = vld [vmem:[%s1 + $0x638] sm:$0xff]
        %v343 = vld [vmem:[%s1 + $0x640] sm:$0xff]
        %v344 = vld [vmem:[%s1 + $0x648] sm:$0xff]
        %v345 = vld [vmem:[%s1 + $0x650] sm:$0xff]
        %v346 = vld [vmem:[%s1 + $0x658] sm:$0xff]
        %v347 = vld [vmem:[%s1 + $0x660] sm:$0xff]
        %v348 = vld [vmem:[%s1 + $0x668] sm:$0xff]
        %v349 = vld [vmem:[%s1 + $0x670] sm:$0xff]
        %v350 = vld [vmem:[%s1 + $0x678] sm:$0xff]
        %v351 = vld [vmem:[%s1 + $0x680] sm:$0xff]
        %v352 = vld [vmem:[%s1 + $0x688] sm:$0xff]
        %v353 = vld [vmem:[%s1 + $0x690] sm:$0xff]
        %v354 = vld [vmem:[%s1 + $0x698] sm:$0xff]
        %v355 = vld [vmem:[%s1 + $0x6a0] sm:$0xff]
        %v356 = vld [vmem:[%s1 + $0x6a8] sm:$0xff]
        %v357 = vld [vmem:[%s1 + $0x6b0] sm:$0xff]
        %v358 = vld [vmem:[%s1 + $0x6b8] sm:$0xff]
        %v359 = vld [vmem:[%s1 + $0x6c0] sm:$0xff]
        %v360 = vld [vmem:[%s1 + $0x6c8] sm:$0xff]
        %v361 = vld [vmem:[%s1 + $0x6d0] sm:$0xff]
        %v362 = vld [vmem:[%s1 + $0x6d8] sm:$0xff]
        %v363 = vld [vmem:[%s1 + $0x6e0] sm:$0xff]
        %v364 = vld [vmem:[%s1 + $0x6e8] sm:$0xff]
        %v365 = vld [vmem:[%s1 + $0x6f0] sm:$0xff]
        %v366 = vld [vmem:[%s1 + $0x6f8] sm:$0xff]
        %v367 = vld [vmem:[%s1 + $0x700] sm:$0xff]
        %v368 = vld [vmem:[%s1 + $0x708] sm:$0xff]
        %v369 = vld [vmem:[%s1 + $0x710] sm:$0xff]
        %v370 = vld [vmem:[%s1 + $0x718] sm:$0xff]
        %v371 = vld [vmem:[%s1 + $0x720] sm:$0xff]
        %v372 = vld [vmem:[%s1 + $0x728] sm:$0xff]
        %v373 = vld [vmem:[%s1 + $0x730] sm:$0xff]
        %v374 = vld [vmem:[%s1 + $0x738] sm:$0xff]
        %v375 = vld [vmem:[%s1 + $0x740] sm:$0xff]
        %v376 = vld [vmem:[%s1 + $0x748] sm:$0xff]
        %v377 = vld [vmem:[%s1 + $0x750] sm:$0xff]
        %v378 = vld [vmem:[%s1 + $0x758] sm:$0xff]
        %v379 = vld [vmem:[%s1 + $0x760] sm:$0xff]
        %v380 = vld [vmem:[%s1 + $0x768] sm:$0xff]
        %v381 = vld [vmem:[%s1 + $0x770] sm:$0xff]
        %v382 = vld [vmem:[%s1 + $0x778] sm:$0xff]
        %v383 = vld [vmem:[%s1 + $0x780] sm:$0xff]
        %v384 = vld [vmem:[%s1 + $0x788] sm:$0xff]
        %v385 = vld [vmem:[%s1 + $0x790] sm:$0xff]
        %v386 = vld [vmem:[%s1 + $0x798] sm:$0xff]
        %v387 = vld [vmem:[%s1 + $0x7a0] sm:$0xff]
        %v388 = vld [vmem:[%s1 + $0x7a8] sm:$0xff]
        %v389 = vld [vmem:[%s1 + $0x7b0] sm:$0xff]
        %v390 = vld [vmem:[%s1 + $0x7b8] sm:$0xff]
        %v391 = vld [vmem:[%s1 + $0x7c0] sm:$0xff]
        %v392 = vld [vmem:[%s1 + $0x7c8] sm:$0xff]
        %v393 = vld [vmem:[%s1 + $0x7d0] sm:$0xff]
        %v394 = vld [vmem:[%s1 + $0x7d8] sm:$0xff]
        %v395 = vld [vmem:[%s1 + $0x7e0] sm:$0xff]
        %v396 = vld [vmem:[%s1 + $0x7e8] sm:$0xff]
        %v397 = vld [vmem:[%s1 + $0x7f0] sm:$0xff]
        %v398 = vld [vmem:[%s1 + $0x7f8] sm:$0xff]
        %v399 = vld [vmem:[#allocation2] sm:$0xff]
        %v400 = vld [vmem:[#allocation2 + $0x8] sm:$0xff]
        %v401 = vld [vmem:[#allocation3] sm:$0xff]
        %v402 = vld [vmem:[#allocation3 + $0x8] sm:$0xff]
        %v403 = vld [vmem:[%s133] sm:$0xff]
        %v404 = vld [vmem:[%s133 + $0x8] sm:$0xff]
        %v405 = vld [vmem:[%s133 + $0x10] sm:$0xff]
        %v406 = vld [vmem:[%s133 + $0x18] sm:$0xff]
        %v407 = vld [vmem:[%s133 + $0x20] sm:$0xff]
        %v408 = vld [vmem:[%s133 + $0x28] sm:$0xff]
        %v409 = vld [vmem:[%s133 + $0x30] sm:$0xff]
        %v410 = vld [vmem:[%s133 + $0x38] sm:$0xff]
        %411 = vmatprep.subr.mxu0 %v144
        %412 = vmatpush1.msra.mxu0 %v143
        %413 = vmatprep.subr.mxu0 %v152
        %414 = vmatpush1.msra.mxu0 %v151
        %415 = vmatprep.subr.mxu0 %v160
        %416 = vmatpush1.msra.mxu0 %v159
        %417 = vmatprep.subr.mxu0 %v168
        %418 = vmatpush1.msra.mxu0 %v167
        %419 = vmatprep.subr.mxu0 %v176
        %420 = vmatpush1.msra.mxu0 %v175
        %421 = vmatprep.subr.mxu0 %v184
        %422 = vmatpush1.msra.mxu0 %v183
        %423 = vmatprep.subr.mxu0 %v192
        %424 = vmatpush1.msra.mxu0 %v191
        %425 = vmatprep.subr.mxu0 %v200
        %426 = vmatpush1.msra.mxu0 %v199
        %427 = vmatprep.subr.mxu0 %v208
        %428 = vmatpush1.msra.mxu0 %v207
        %429 = vmatprep.subr.mxu0 %v216
        %430 = vmatpush1.msra.mxu0 %v215
        %431 = vmatprep.subr.mxu0 %v224
        %432 = vmatpush1.msra.mxu0 %v223
        %433 = vmatprep.subr.mxu0 %v232
        %434 = vmatpush1.msra.mxu0 %v231
        %435 = vmatprep.subr.mxu0 %v240
        %436 = vmatpush1.msra.mxu0 %v239
        %437 = vmatprep.subr.mxu0 %v248
        %438 = vmatpush1.msra.mxu0 %v247
        %439 = vmatprep.subr.mxu0 %v256
        %440 = vmatpush1.msra.mxu0 %v255
        %441 = vmatprep.subr.mxu0 %v264
        %442 = vmatpush1.msra.mxu0 %v263
        %443 = vmatprep.subr.mxu0 %v272
        %444 = vmatpush1.msra.mxu0 %v271
        %445 = vmatprep.subr.mxu0 %v280
        %446 = vmatpush1.msra.mxu0 %v279
        %447 = vmatprep.subr.mxu0 %v288
        %448 = vmatpush1.msra.mxu0 %v287
        %449 = vmatprep.subr.mxu0 %v296
        %450 = vmatpush1.msra.mxu0 %v295
        %451 = vmatprep.subr.mxu0 %v304
        %452 = vmatpush1.msra.mxu0 %v303
        %453 = vmatprep.subr.mxu0 %v312
        %454 = vmatpush1.msra.mxu0 %v311
        %455 = vmatprep.subr.mxu0 %v320
        %456 = vmatpush1.msra.mxu0 %v319
        %457 = vmatprep.subr.mxu0 %v328
        %458 = vmatpush1.msra.mxu0 %v327
        %459 = vmatprep.subr.mxu0 %v336
        %460 = vmatpush1.msra.mxu0 %v335
        %461 = vmatprep.subr.mxu0 %v344
        %462 = vmatpush1.msra.mxu0 %v343
        %463 = vmatprep.subr.mxu0 %v352
        %464 = vmatpush1.msra.mxu0 %v351
        %465 = vmatprep.subr.mxu0 %v360
        %466 = vmatpush1.msra.mxu0 %v359
        %467 = vmatprep.subr.mxu0 %v368
        %468 = vmatpush1.msra.mxu0 %v367
        %469 = vmatprep.subr.mxu0 %v376
        %470 = vmatpush1.msra.mxu0 %v375
        %471 = vmatprep.subr.mxu0 %v384
        %472 = vmatpush1.msra.mxu0 %v383
        %473 = vmatprep.subr.mxu0 %v392
        %474 = vmatpush1.msra.mxu0 %v391
        %475 = vmatprep.mubr.f32.mxu0 %v400
        %476 = vmatmul.mubr.f32.gmra.mrb[0].mxu0 %v399
        %v477 = vpop.f32.mrb[0].mxu0
        %v478 = vadd.f32 0.0, %v477
        %v479 = vpop.f32.mrb[0].mxu0
        %v480 = vadd.f32 0.0, %v479
        %481 = vdwg.mxu0
        %482 = vmatprep.subr.mxu0 %v146
        %483 = vmatpush1.msra.mxu0 %v145
        %484 = vmatprep.subr.mxu0 %v154
        %485 = vmatpush1.msra.mxu0 %v153
        %486 = vmatprep.subr.mxu0 %v162
        %487 = vmatpush1.msra.mxu0 %v161
        %488 = vmatprep.subr.mxu0 %v170
        %489 = vmatpush1.msra.mxu0 %v169
        %490 = vmatprep.subr.mxu0 %v178
        %491 = vmatpush1.msra.mxu0 %v177
        %492 = vmatprep.subr.mxu0 %v186
        %493 = vmatpush1.msra.mxu0 %v185
        %494 = vmatprep.subr.mxu0 %v194
        %495 = vmatpush1.msra.mxu0 %v193
        %496 = vmatprep.subr.mxu0 %v202
        %497 = vmatpush1.msra.mxu0 %v201
        %498 = vmatprep.subr.mxu0 %v210
        %499 = vmatpush1.msra.mxu0 %v209
        %500 = vmatprep.subr.mxu0 %v218
        %501 = vmatpush1.msra.mxu0 %v217
        %502 = vmatprep.subr.mxu0 %v226
        %503 = vmatpush1.msra.mxu0 %v225
        %504 = vmatprep.subr.mxu0 %v234
        %505 = vmatpush1.msra.mxu0 %v233
        %506 = vmatprep.subr.mxu0 %v242
        %507 = vmatpush1.msra.mxu0 %v241
        %508 = vmatprep.subr.mxu0 %v250
        %509 = vmatpush1.msra.mxu0 %v249
        %510 = vmatprep.subr.mxu0 %v258
        %511 = vmatpush1.msra.mxu0 %v257
        %512 = vmatprep.subr.mxu0 %v266
        %513 = vmatpush1.msra.mxu0 %v265
        %514 = vmatprep.subr.mxu0 %v274
        %515 = vmatpush1.msra.mxu0 %v273
        %516 = vmatprep.subr.mxu0 %v282
        %517 = vmatpush1.msra.mxu0 %v281
        %518 = vmatprep.subr.mxu0 %v290
        %519 = vmatpush1.msra.mxu0 %v289
        %520 = vmatprep.subr.mxu0 %v298
        %521 = vmatpush1.msra.mxu0 %v297
        %522 = vmatprep.subr.mxu0 %v306
        %523 = vmatpush1.msra.mxu0 %v305
        %524 = vmatprep.subr.mxu0 %v314
        %525 = vmatpush1.msra.mxu0 %v313
        %526 = vmatprep.subr.mxu0 %v322
        %527 = vmatpush1.msra.mxu0 %v321
        %528 = vmatprep.subr.mxu0 %v330
        %529 = vmatpush1.msra.mxu0 %v329
        %530 = vmatprep.subr.mxu0 %v338
        %531 = vmatpush1.msra.mxu0 %v337
        %532 = vmatprep.subr.mxu0 %v346
        %533 = vmatpush1.msra.mxu0 %v345
        %534 = vmatprep.subr.mxu0 %v354
        %535 = vmatpush1.msra.mxu0 %v353
        %536 = vmatprep.subr.mxu0 %v362
        %537 = vmatpush1.msra.mxu0 %v361
        %538 = vmatprep.subr.mxu0 %v370
        %539 = vmatpush1.msra.mxu0 %v369
        %540 = vmatprep.subr.mxu0 %v378
        %541 = vmatpush1.msra.mxu0 %v377
        %542 = vmatprep.subr.mxu0 %v386
        %543 = vmatpush1.msra.mxu0 %v385
        %544 = vmatprep.subr.mxu0 %v394
        %545 = vmatpush1.msra.mxu0 %v393
        %546 = vmatprep.mubr.f32.mxu0 %v400
        %547 = vmatmul.mubr.f32.gmra.mrb[0].mxu0 %v399
        %v548 = vpop.f32.mrb[0].mxu0
        %v549 = vadd.f32 0.0, %v548
        %v550 = vpop.f32.mrb[0].mxu0
        %v551 = vadd.f32 0.0, %v550
        %552 = vdwg.mxu0
        %553 = vmatprep.subr.mxu0 %v148
        %554 = vmatpush1.msra.mxu0 %v147
        %555 = vmatprep.subr.mxu0 %v156
        %556 = vmatpush1.msra.mxu0 %v155
        %557 = vmatprep.subr.mxu0 %v164
        %558 = vmatpush1.msra.mxu0 %v163
        %559 = vmatprep.subr.mxu0 %v172
        %560 = vmatpush1.msra.mxu0 %v171
        %561 = vmatprep.subr.mxu0 %v180
        %562 = vmatpush1.msra.mxu0 %v179
        %563 = vmatprep.subr.mxu0 %v188
        %564 = vmatpush1.msra.mxu0 %v187
        %565 = vmatprep.subr.mxu0 %v196
        %566 = vmatpush1.msra.mxu0 %v195
        %567 = vmatprep.subr.mxu0 %v204
        %568 = vmatpush1.msra.mxu0 %v203
        %569 = vmatprep.subr.mxu0 %v212
        %570 = vmatpush1.msra.mxu0 %v211
        %571 = vmatprep.subr.mxu0 %v220
        %572 = vmatpush1.msra.mxu0 %v219
        %573 = vmatprep.subr.mxu0 %v228
        %574 = vmatpush1.msra.mxu0 %v227
        %575 = vmatprep.subr.mxu0 %v236
        %576 = vmatpush1.msra.mxu0 %v235
        %577 = vmatprep.subr.mxu0 %v244
        %578 = vmatpush1.msra.mxu0 %v243
        %579 = vmatprep.subr.mxu0 %v252
        %580 = vmatpush1.msra.mxu0 %v251
        %581 = vmatprep.subr.mxu0 %v260
        %582 = vmatpush1.msra.mxu0 %v259
        %583 = vmatprep.subr.mxu0 %v268
        %584 = vmatpush1.msra.mxu0 %v267
        %585 = vmatprep.subr.mxu0 %v276
        %586 = vmatpush1.msra.mxu0 %v275
        %587 = vmatprep.subr.mxu0 %v284
        %588 = vmatpush1.msra.mxu0 %v283
        %589 = vmatprep.subr.mxu0 %v292
        %590 = vmatpush1.msra.mxu0 %v291
        %591 = vmatprep.subr.mxu0 %v300
        %592 = vmatpush1.msra.mxu0 %v299
        %593 = vmatprep.subr.mxu0 %v308
        %594 = vmatpush1.msra.mxu0 %v307
        %595 = vmatprep.subr.mxu0 %v316
        %596 = vmatpush1.msra.mxu0 %v315
        %597 = vmatprep.subr.mxu0 %v324
        %598 = vmatpush1.msra.mxu0 %v323
        %599 = vmatprep.subr.mxu0 %v332
        %600 = vmatpush1.msra.mxu0 %v331
        %601 = vmatprep.subr.mxu0 %v340
        %602 = vmatpush1.msra.mxu0 %v339
        %603 = vmatprep.subr.mxu0 %v348
        %604 = vmatpush1.msra.mxu0 %v347
        %605 = vmatprep.subr.mxu0 %v356
        %606 = vmatpush1.msra.mxu0 %v355
        %607 = vmatprep.subr.mxu0 %v364
        %608 = vmatpush1.msra.mxu0 %v363
        %609 = vmatprep.subr.mxu0 %v372
        %610 = vmatpush1.msra.mxu0 %v371
        %611 = vmatprep.subr.mxu0 %v380
        %612 = vmatpush1.msra.mxu0 %v379
        %613 = vmatprep.subr.mxu0 %v388
        %614 = vmatpush1.msra.mxu0 %v387
        %615 = vmatprep.subr.mxu0 %v396
        %616 = vmatpush1.msra.mxu0 %v395
        %617 = vmatprep.mubr.f32.mxu0 %v400
        %618 = vmatmul.mubr.f32.gmra.mrb[0].mxu0 %v399
        %v619 = vpop.f32.mrb[0].mxu0
        %v620 = vadd.f32 0.0, %v619
        %v621 = vpop.f32.mrb[0].mxu0
        %v622 = vadd.f32 0.0, %v621
        %623 = vdwg.mxu0
        %624 = vmatprep.subr.mxu0 %v150
        %625 = vmatpush1.msra.mxu0 %v149
        %626 = vmatprep.subr.mxu0 %v158
        %627 = vmatpush1.msra.mxu0 %v157
        %628 = vmatprep.subr.mxu0 %v166
        %629 = vmatpush1.msra.mxu0 %v165
        %630 = vmatprep.subr.mxu0 %v174
        %631 = vmatpush1.msra.mxu0 %v173
        %632 = vmatprep.subr.mxu0 %v182
        %633 = vmatpush1.msra.mxu0 %v181
        %634 = vmatprep.subr.mxu0 %v190
        %635 = vmatpush1.msra.mxu0 %v189
        %636 = vmatprep.subr.mxu0 %v198
        %637 = vmatpush1.msra.mxu0 %v197
        %638 = vmatprep.subr.mxu0 %v206
        %639 = vmatpush1.msra.mxu0 %v205
        %640 = vmatprep.subr.mxu0 %v214
        %641 = vmatpush1.msra.mxu0 %v213
        %642 = vmatprep.subr.mxu0 %v222
        %643 = vmatpush1.msra.mxu0 %v221
        %644 = vmatprep.subr.mxu0 %v230
        %645 = vmatpush1.msra.mxu0 %v229
        %646 = vmatprep.subr.mxu0 %v238
        %647 = vmatpush1.msra.mxu0 %v237
        %648 = vmatprep.subr.mxu0 %v246
        %649 = vmatpush1.msra.mxu0 %v245
        %650 = vmatprep.subr.mxu0 %v254
        %651 = vmatpush1.msra.mxu0 %v253
        %652 = vmatprep.subr.mxu0 %v262
        %653 = vmatpush1.msra.mxu0 %v261
        %654 = vmatprep.subr.mxu0 %v270
        %655 = vmatpush1.msra.mxu0 %v269
        %656 = vmatprep.subr.mxu0 %v278
        %657 = vmatpush1.msra.mxu0 %v277
        %658 = vmatprep.subr.mxu0 %v286
        %659 = vmatpush1.msra.mxu0 %v285
        %660 = vmatprep.subr.mxu0 %v294
        %661 = vmatpush1.msra.mxu0 %v293
        %662 = vmatprep.subr.mxu0 %v302
        %663 = vmatpush1.msra.mxu0 %v301
        %664 = vmatprep.subr.mxu0 %v310
        %665 = vmatpush1.msra.mxu0 %v309
        %666 = vmatprep.subr.mxu0 %v318
        %667 = vmatpush1.msra.mxu0 %v317
        %668 = vmatprep.subr.mxu0 %v326
        %669 = vmatpush1.msra.mxu0 %v325
        %670 = vmatprep.subr.mxu0 %v334
        %671 = vmatpush1.msra.mxu0 %v333
        %672 = vmatprep.subr.mxu0 %v342
        %673 = vmatpush1.msra.mxu0 %v341
        %674 = vmatprep.subr.mxu0 %v350
        %675 = vmatpush1.msra.mxu0 %v349
        %676 = vmatprep.subr.mxu0 %v358
        %677 = vmatpush1.msra.mxu0 %v357
        %678 = vmatprep.subr.mxu0 %v366
        %679 = vmatpush1.msra.mxu0 %v365
        %680 = vmatprep.subr.mxu0 %v374
        %681 = vmatpush1.msra.mxu0 %v373
        %682 = vmatprep.subr.mxu0 %v382
        %683 = vmatpush1.msra.mxu0 %v381
        %684 = vmatprep.subr.mxu0 %v390
        %685 = vmatpush1.msra.mxu0 %v389
        %686 = vmatprep.subr.mxu0 %v398
        %687 = vmatpush1.msra.mxu0 %v397
        %688 = vmatprep.mubr.f32.mxu0 %v400
        %689 = vmatmul.mubr.f32.gmra.mrb[0].mxu0 %v399
        %v690 = vpop.f32.mrb[0].mxu0
        %v691 = vadd.f32 0.0, %v690
        %v692 = vpop.f32.mrb[0].mxu0
        %v693 = vadd.f32 0.0, %v692
        %694 = vdwg.mxu0
        %v695 = vadd.f32 %v403, %v478
        %v696 = vadd.f32 %v404, %v480
        %v697 = vadd.f32 %v405, %v549
        %v698 = vadd.f32 %v406, %v551
        %v699 = vadd.f32 %v407, %v620
        %v700 = vadd.f32 %v408, %v622
        %v701 = vadd.f32 %v409, %v691
        %v702 = vadd.f32 %v410, %v693
        %v703 = vxor.u32 %v695, 2147483648
        %v704 = vxor.u32 %v696, 2147483648
        %v705 = vxor.u32 %v697, 2147483648
        %v706 = vxor.u32 %v698, 2147483648
        %v707 = vxor.u32 %v699, 2147483648
        %v708 = vxor.u32 %v700, 2147483648
        %v709 = vmul.f32 %v703, 1.442695
        %v710 = vpow.pop %v709
        %v711 = vmul.f32 %v704, 1.442695
        %v712 = vpow.pop %v711
        %v713 = vmul.f32 %v705, 1.442695
        %v714 = vpow.pop %v713
        %v715 = vmul.f32 %v706, 1.442695
        %v716 = vpow.pop %v715
        %v717 = vmul.f32 %v707, 1.442695
        %v718 = vpow.pop %v717
        %v719 = vmul.f32 %v708, 1.442695
        %v720 = vpow.pop %v719
        %v721 = vadd.f32 %v710, 1.0
        %v722 = vadd.f32 %v712, 1.0
        %v723 = vadd.f32 %v714, 1.0
        %v724 = vadd.f32 %v716, 1.0
        %v725 = vadd.f32 %v718, 1.0
        %v726 = vadd.f32 %v720, 1.0
        %v727 = vrcp.pop %v721
        %v728 = vmul.f32 1.0, %v727
        %v729 = vrcp.pop %v722
        %v730 = vmul.f32 1.0, %v729
        %v731 = vrcp.pop %v723
        %v732 = vmul.f32 1.0, %v731
        %v733 = vrcp.pop %v724
        %v734 = vmul.f32 1.0, %v733
        %v735 = vrcp.pop %v725
        %v736 = vmul.f32 1.0, %v735
        %v737 = vrcp.pop %v726
        %v738 = vmul.f32 1.0, %v737
        %v739 = vtanh.pop %v701
        %v740 = vtanh.pop %v702
        %v741 = vmul.f32 %v401, %v728
        %v742 = vmul.f32 %v402, %v730
        %v743 = vmul.f32 %v732, %v739
        %v744 = vmul.f32 %v734, %v740
        %v745 = vadd.f32 %v741, %v743
        %v746 = vadd.f32 %v742, %v744
        %v747 = vtanh.pop %v745
        %v748 = vtanh.pop %v746
        %v749 = vmul.f32 %v736, %v747
        %v750 = vmul.f32 %v738, %v748
        %s751 = scalar_lea.vmem %s133, 64
        %v752 = vld [vmem:[%s751] sm:$0xff]
        %v753 = vld [vmem:[%s751 + $0x8] sm:$0xff]
        %v754 = vld [vmem:[%s751 + $0x10] sm:$0xff]
        %v755 = vld [vmem:[%s751 + $0x18] sm:$0xff]
        %v756 = vld [vmem:[%s751 + $0x20] sm:$0xff]
        %v757 = vld [vmem:[%s751 + $0x28] sm:$0xff]
        %v758 = vld [vmem:[%s751 + $0x30] sm:$0xff]
        %v759 = vld [vmem:[%s751 + $0x38] sm:$0xff]
        %760 = vmatprep.subr.mxu0 %v144
        %761 = vmatpush1.msra.mxu0 %v143
        %762 = vmatprep.subr.mxu0 %v152
        %763 = vmatpush1.msra.mxu0 %v151
        %764 = vmatprep.subr.mxu0 %v160
        %765 = vmatpush1.msra.mxu0 %v159
        %766 = vmatprep.subr.mxu0 %v168
        %767 = vmatpush1.msra.mxu0 %v167
        %768 = vmatprep.subr.mxu0 %v176
        %769 = vmatpush1.msra.mxu0 %v175
        %770 = vmatprep.subr.mxu0 %v184
        %771 = vmatpush1.msra.mxu0 %v183
        %772 = vmatprep.subr.mxu0 %v192
        %773 = vmatpush1.msra.mxu0 %v191
        %774 = vmatprep.subr.mxu0 %v200
        %775 = vmatpush1.msra.mxu0 %v199
        %776 = vmatprep.subr.mxu0 %v208
        %777 = vmatpush1.msra.mxu0 %v207
        %778 = vmatprep.subr.mxu0 %v216
        %779 = vmatpush1.msra.mxu0 %v215
        %780 = vmatprep.subr.mxu0 %v224
        %781 = vmatpush1.msra.mxu0 %v223
        %782 = vmatprep.subr.mxu0 %v232
        %783 = vmatpush1.msra.mxu0 %v231
        %784 = vmatprep.subr.mxu0 %v240
        %785 = vmatpush1.msra.mxu0 %v239
        %786 = vmatprep.subr.mxu0 %v248
        %787 = vmatpush1.msra.mxu0 %v247
        %788 = vmatprep.subr.mxu0 %v256
        %789 = vmatpush1.msra.mxu0 %v255
        %790 = vmatprep.subr.mxu0 %v264
        %791 = vmatpush1.msra.mxu0 %v263
        %792 = vmatprep.subr.mxu0 %v272
        %793 = vmatpush1.msra.mxu0 %v271
        %794 = vmatprep.subr.mxu0 %v280
        %795 = vmatpush1.msra.mxu0 %v279
        %796 = vmatprep.subr.mxu0 %v288
        %797 = vmatpush1.msra.mxu0 %v287
        %798 = vmatprep.subr.mxu0 %v296
        %799 = vmatpush1.msra.mxu0 %v295
        %800 = vmatprep.subr.mxu0 %v304
        %801 = vmatpush1.msra.mxu0 %v303
        %802 = vmatprep.subr.mxu0 %v312
        %803 = vmatpush1.msra.mxu0 %v311
        %804 = vmatprep.subr.mxu0 %v320
        %805 = vmatpush1.msra.mxu0 %v319
        %806 = vmatprep.subr.mxu0 %v328
        %807 = vmatpush1.msra.mxu0 %v327
        %808 = vmatprep.subr.mxu0 %v336
        %809 = vmatpush1.msra.mxu0 %v335
        %810 = vmatprep.subr.mxu0 %v344
        %811 = vmatpush1.msra.mxu0 %v343
        %812 = vmatprep.subr.mxu0 %v352
        %813 = vmatpush1.msra.mxu0 %v351
        %814 = vmatprep.subr.mxu0 %v360
        %815 = vmatpush1.msra.mxu0 %v359
        %816 = vmatprep.subr.mxu0 %v368
        %817 = vmatpush1.msra.mxu0 %v367
        %818 = vmatprep.subr.mxu0 %v376
        %819 = vmatpush1.msra.mxu0 %v375
        %820 = vmatprep.subr.mxu0 %v384
        %821 = vmatpush1.msra.mxu0 %v383
        %822 = vmatprep.subr.mxu0 %v392
        %823 = vmatpush1.msra.mxu0 %v391
        %824 = vmatprep.mubr.f32.mxu0 %v750
        %825 = vmatmul.mubr.f32.gmra.mrb[0].mxu0 %v749
        %v826 = vpop.f32.mrb[0].mxu0
        %v827 = vadd.f32 0.0, %v826
        %v828 = vpop.f32.mrb[0].mxu0
        %v829 = vadd.f32 0.0, %v828
        %830 = vdwg.mxu0
        %831 = vmatprep.subr.mxu0 %v146
        %832 = vmatpush1.msra.mxu0 %v145
        %833 = vmatprep.subr.mxu0 %v154
        %834 = vmatpush1.msra.mxu0 %v153
        %835 = vmatprep.subr.mxu0 %v162
        %836 = vmatpush1.msra.mxu0 %v161
        %837 = vmatprep.subr.mxu0 %v170
        %838 = vmatpush1.msra.mxu0 %v169
        %839 = vmatprep.subr.mxu0 %v178
        %840 = vmatpush1.msra.mxu0 %v177
        %841 = vmatprep.subr.mxu0 %v186
        %842 = vmatpush1.msra.mxu0 %v185
        %843 = vmatprep.subr.mxu0 %v194
        %844 = vmatpush1.msra.mxu0 %v193
        %845 = vmatprep.subr.mxu0 %v202
        %846 = vmatpush1.msra.mxu0 %v201
        %847 = vmatprep.subr.mxu0 %v210
        %848 = vmatpush1.msra.mxu0 %v209
        %849 = vmatprep.subr.mxu0 %v218
        %850 = vmatpush1.msra.mxu0 %v217
        %851 = vmatprep.subr.mxu0 %v226
        %852 = vmatpush1.msra.mxu0 %v225
        %853 = vmatprep.subr.mxu0 %v234
        %854 = vmatpush1.msra.mxu0 %v233
        %855 = vmatprep.subr.mxu0 %v242
        %856 = vmatpush1.msra.mxu0 %v241
        %857 = vmatprep.subr.mxu0 %v250
        %858 = vmatpush1.msra.mxu0 %v249
        %859 = vmatprep.subr.mxu0 %v258
        %860 = vmatpush1.msra.mxu0 %v257
        %861 = vmatprep.subr.mxu0 %v266
        %862 = vmatpush1.msra.mxu0 %v265
        %863 = vmatprep.subr.mxu0 %v274
        %864 = vmatpush1.msra.mxu0 %v273
        %865 = vmatprep.subr.mxu0 %v282
        %866 = vmatpush1.msra.mxu0 %v281
        %867 = vmatprep.subr.mxu0 %v290
        %868 = vmatpush1.msra.mxu0 %v289
        %869 = vmatprep.subr.mxu0 %v298
        %870 = vmatpush1.msra.mxu0 %v297
        %871 = vmatprep.subr.mxu0 %v306
        %872 = vmatpush1.msra.mxu0 %v305
        %873 = vmatprep.subr.mxu0 %v314
        %874 = vmatpush1.msra.mxu0 %v313
        %875 = vmatprep.subr.mxu0 %v322
        %876 = vmatpush1.msra.mxu0 %v321
        %877 = vmatprep.subr.mxu0 %v330
        %878 = vmatpush1.msra.mxu0 %v329
        %879 = vmatprep.subr.mxu0 %v338
        %880 = vmatpush1.msra.mxu0 %v337
        %881 = vmatprep.subr.mxu0 %v346
        %882 = vmatpush1.msra.mxu0 %v345
        %883 = vmatprep.subr.mxu0 %v354
        %884 = vmatpush1.msra.mxu0 %v353
        %885 = vmatprep.subr.mxu0 %v362
        %886 = vmatpush1.msra.mxu0 %v361
        %887 = vmatprep.subr.mxu0 %v370
        %888 = vmatpush1.msra.mxu0 %v369
        %889 = vmatprep.subr.mxu0 %v378
        %890 = vmatpush1.msra.mxu0 %v377
        %891 = vmatprep.subr.mxu0 %v386
        %892 = vmatpush1.msra.mxu0 %v385
        %893 = vmatprep.subr.mxu0 %v394
        %894 = vmatpush1.msra.mxu0 %v393
        %895 = vmatprep.mubr.f32.mxu0 %v750
        %896 = vmatmul.mubr.f32.gmra.mrb[0].mxu0 %v749
        %v897 = vpop.f32.mrb[0].mxu0
        %v898 = vadd.f32 0.0, %v897
        %v899 = vpop.f32.mrb[0].mxu0
        %v900 = vadd.f32 0.0, %v899
        %901 = vdwg.mxu0
        %902 = vmatprep.subr.mxu0 %v148
        %903 = vmatpush1.msra.mxu0 %v147
        %904 = vmatprep.subr.mxu0 %v156
        %905 = vmatpush1.msra.mxu0 %v155
        %906 = vmatprep.subr.mxu0 %v164
        %907 = vmatpush1.msra.mxu0 %v163
        %908 = vmatprep.subr.mxu0 %v172
        %909 = vmatpush1.msra.mxu0 %v171
        %910 = vmatprep.subr.mxu0 %v180
        %911 = vmatpush1.msra.mxu0 %v179
        %912 = vmatprep.subr.mxu0 %v188
        %913 = vmatpush1.msra.mxu0 %v187
        %914 = vmatprep.subr.mxu0 %v196
        %915 = vmatpush1.msra.mxu0 %v195
        %916 = vmatprep.subr.mxu0 %v204
        %917 = vmatpush1.msra.mxu0 %v203
        %918 = vmatprep.subr.mxu0 %v212
        %919 = vmatpush1.msra.mxu0 %v211
        %920 = vmatprep.subr.mxu0 %v220
        %921 = vmatpush1.msra.mxu0 %v219
        %922 = vmatprep.subr.mxu0 %v228
        %923 = vmatpush1.msra.mxu0 %v227
        %924 = vmatprep.subr.mxu0 %v236
        %925 = vmatpush1.msra.mxu0 %v235
        %926 = vmatprep.subr.mxu0 %v244
        %927 = vmatpush1.msra.mxu0 %v243
        %928 = vmatprep.subr.mxu0 %v252
        %929 = vmatpush1.msra.mxu0 %v251
        %930 = vmatprep.subr.mxu0 %v260
        %931 = vmatpush1.msra.mxu0 %v259
        %932 = vmatprep.subr.mxu0 %v268
        %933 = vmatpush1.msra.mxu0 %v267
        %934 = vmatprep.subr.mxu0 %v276
        %935 = vmatpush1.msra.mxu0 %v275
        %936 = vmatprep.subr.mxu0 %v284
        %937 = vmatpush1.msra.mxu0 %v283
        %938 = vmatprep.subr.mxu0 %v292
        %939 = vmatpush1.msra.mxu0 %v291
        %940 = vmatprep.subr.mxu0 %v300
        %941 = vmatpush1.msra.mxu0 %v299
        %942 = vmatprep.subr.mxu0 %v308
        %943 = vmatpush1.msra.mxu0 %v307
        %944 = vmatprep.subr.mxu0 %v316
        %945 = vmatpush1.msra.mxu0 %v315
        %946 = vmatprep.subr.mxu0 %v324
        %947 = vmatpush1.msra.mxu0 %v323
        %948 = vmatprep.subr.mxu0 %v332
        %949 = vmatpush1.msra.mxu0 %v331
        %950 = vmatprep.subr.mxu0 %v340
        %951 = vmatpush1.msra.mxu0 %v339
        %952 = vmatprep.subr.mxu0 %v348
        %953 = vmatpush1.msra.mxu0 %v347
        %954 = vmatprep.subr.mxu0 %v356
        %955 = vmatpush1.msra.mxu0 %v355
        %956 = vmatprep.subr.mxu0 %v364
        %957 = vmatpush1.msra.mxu0 %v363
        %958 = vmatprep.subr.mxu0 %v372
        %959 = vmatpush1.msra.mxu0 %v371
        %960 = vmatprep.subr.mxu0 %v380
        %961 = vmatpush1.msra.mxu0 %v379
        %962 = vmatprep.subr.mxu0 %v388
        %963 = vmatpush1.msra.mxu0 %v387
        %964 = vmatprep.subr.mxu0 %v396
        %965 = vmatpush1.msra.mxu0 %v395
        %966 = vmatprep.mubr.f32.mxu0 %v750
        %967 = vmatmul.mubr.f32.gmra.mrb[0].mxu0 %v749
        %v968 = vpop.f32.mrb[0].mxu0
        %v969 = vadd.f32 0.0, %v968
        %v970 = vpop.f32.mrb[0].mxu0
        %v971 = vadd.f32 0.0, %v970
        %972 = vdwg.mxu0
        %973 = vmatprep.subr.mxu0 %v150
        %974 = vmatpush1.msra.mxu0 %v149
        %975 = vmatprep.subr.mxu0 %v158
        %976 = vmatpush1.msra.mxu0 %v157
        %977 = vmatprep.subr.mxu0 %v166
        %978 = vmatpush1.msra.mxu0 %v165
        %979 = vmatprep.subr.mxu0 %v174
        %980 = vmatpush1.msra.mxu0 %v173
        %981 = vmatprep.subr.mxu0 %v182
        %982 = vmatpush1.msra.mxu0 %v181
        %983 = vmatprep.subr.mxu0 %v190
        %984 = vmatpush1.msra.mxu0 %v189
        %985 = vmatprep.subr.mxu0 %v198
        %986 = vmatpush1.msra.mxu0 %v197
        %987 = vmatprep.subr.mxu0 %v206
        %988 = vmatpush1.msra.mxu0 %v205
        %989 = vmatprep.subr.mxu0 %v214
        %990 = vmatpush1.msra.mxu0 %v213
        %991 = vmatprep.subr.mxu0 %v222
        %992 = vmatpush1.msra.mxu0 %v221
        %993 = vmatprep.subr.mxu0 %v230
        %994 = vmatpush1.msra.mxu0 %v229
        %995 = vmatprep.subr.mxu0 %v238
        %996 = vmatpush1.msra.mxu0 %v237
        %997 = vmatprep.subr.mxu0 %v246
        %998 = vmatpush1.msra.mxu0 %v245
        %999 = vmatprep.subr.mxu0 %v254
        %1000 = vmatpush1.msra.mxu0 %v253
        %1001 = vmatprep.subr.mxu0 %v262
        %1002 = vmatpush1.msra.mxu0 %v261
        %1003 = vmatprep.subr.mxu0 %v270
        %1004 = vmatpush1.msra.mxu0 %v269
        %1005 = vmatprep.subr.mxu0 %v278
        %1006 = vmatpush1.msra.mxu0 %v277
        %1007 = vmatprep.subr.mxu0 %v286
        %1008 = vmatpush1.msra.mxu0 %v285
        %1009 = vmatprep.subr.mxu0 %v294
        %1010 = vmatpush1.msra.mxu0 %v293
        %1011 = vmatprep.subr.mxu0 %v302
        %1012 = vmatpush1.msra.mxu0 %v301
        %1013 = vmatprep.subr.mxu0 %v310
        %1014 = vmatpush1.msra.mxu0 %v309
        %1015 = vmatprep.subr.mxu0 %v318
        %1016 = vmatpush1.msra.mxu0 %v317
        %1017 = vmatprep.subr.mxu0 %v326
        %1018 = vmatpush1.msra.mxu0 %v325
        %1019 = vmatprep.subr.mxu0 %v334
        %1020 = vmatpush1.msra.mxu0 %v333
        %1021 = vmatprep.subr.mxu0 %v342
        %1022 = vmatpush1.msra.mxu0 %v341
        %1023 = vmatprep.subr.mxu0 %v350
        %1024 = vmatpush1.msra.mxu0 %v349
        %1025 = vmatprep.subr.mxu0 %v358
        %1026 = vmatpush1.msra.mxu0 %v357
        %1027 = vmatprep.subr.mxu0 %v366
        %1028 = vmatpush1.msra.mxu0 %v365
        %1029 = vmatprep.subr.mxu0 %v374
        %1030 = vmatpush1.msra.mxu0 %v373
        %1031 = vmatprep.subr.mxu0 %v382
        %1032 = vmatpush1.msra.mxu0 %v381
        %1033 = vmatprep.subr.mxu0 %v390
        %1034 = vmatpush1.msra.mxu0 %v389
        %1035 = vmatprep.subr.mxu0 %v398
        %1036 = vmatpush1.msra.mxu0 %v397
        %1037 = vmatprep.mubr.f32.mxu0 %v750
        %1038 = vmatmul.mubr.f32.gmra.mrb[0].mxu0 %v749
        %v1039 = vpop.f32.mrb[0].mxu0
        %v1040 = vadd.f32 0.0, %v1039
        %v1041 = vpop.f32.mrb[0].mxu0
        %v1042 = vadd.f32 0.0, %v1041
        %1043 = vdwg.mxu0
        %v1044 = vadd.f32 %v752, %v827
        %v1045 = vadd.f32 %v753, %v829
        %v1046 = vadd.f32 %v754, %v898
        %v1047 = vadd.f32 %v755, %v900
        %v1048 = vadd.f32 %v756, %v969
        %v1049 = vadd.f32 %v757, %v971
        %v1050 = vadd.f32 %v758, %v1040
        %v1051 = vadd.f32 %v759, %v1042
        %v1052 = vxor.u32 %v1044, 2147483648
        %v1053 = vxor.u32 %v1045, 2147483648
        %v1054 = vxor.u32 %v1046, 2147483648
        %v1055 = vxor.u32 %v1047, 2147483648
        %v1056 = vxor.u32 %v1048, 2147483648
        %v1057 = vxor.u32 %v1049, 2147483648
        %v1058 = vmul.f32 %v1052, 1.442695
        %v1059 = vpow.pop %v1058
        %v1060 = vmul.f32 %v1053, 1.442695
        %v1061 = vpow.pop %v1060
        %v1062 = vmul.f32 %v1054, 1.442695
        %v1063 = vpow.pop %v1062
        %v1064 = vmul.f32 %v1055, 1.442695
        %v1065 = vpow.pop %v1064
        %v1066 = vmul.f32 %v1056, 1.442695
        %v1067 = vpow.pop %v1066
        %v1068 = vmul.f32 %v1057, 1.442695
        %v1069 = vpow.pop %v1068
        %v1070 = vadd.f32 %v1059, 1.0
        %v1071 = vadd.f32 %v1061, 1.0
        %v1072 = vadd.f32 %v1063, 1.0
        %v1073 = vadd.f32 %v1065, 1.0
        %v1074 = vadd.f32 %v1067, 1.0
        %v1075 = vadd.f32 %v1069, 1.0
        %v1076 = vrcp.pop %v1070
        %v1077 = vmul.f32 1.0, %v1076
        %v1078 = vrcp.pop %v1071
        %v1079 = vmul.f32 1.0, %v1078
        %v1080 = vrcp.pop %v1072
        %v1081 = vmul.f32 1.0, %v1080
        %v1082 = vrcp.pop %v1073
        %v1083 = vmul.f32 1.0, %v1082
        %v1084 = vrcp.pop %v1074
        %v1085 = vmul.f32 1.0, %v1084
        %v1086 = vrcp.pop %v1075
        %v1087 = vmul.f32 1.0, %v1086
        %v1088 = vtanh.pop %v1050
        %v1089 = vtanh.pop %v1051
        %v1090 = vmul.f32 %v745, %v1077
        %v1091 = vmul.f32 %v746, %v1079
        %v1092 = vmul.f32 %v1081, %v1088
        %v1093 = vmul.f32 %v1083, %v1089
        %v1094 = vadd.f32 %v1090, %v1092
        %v1095 = vadd.f32 %v1091, %v1093
        %v1096 = vtanh.pop %v1094
        %v1097 = vtanh.pop %v1095
        %v1098 = vmul.f32 %v1085, %v1096
        %v1099 = vmul.f32 %v1087, %v1097
        %s1100 = scalar_lea.vmem %s133, 128
        %v1101 = vld [vmem:[%s1100] sm:$0xff]
        %v1102 = vld [vmem:[%s1100 + $0x8] sm:$0xff]
        %v1103 = vld [vmem:[%s1100 + $0x10] sm:$0xff]
        %v1104 = vld [vmem:[%s1100 + $0x18] sm:$0xff]
        %v1105 = vld [vmem:[%s1100 + $0x20] sm:$0xff]
        %v1106 = vld [vmem:[%s1100 + $0x28] sm:$0xff]
        %v1107 = vld [vmem:[%s1100 + $0x30] sm:$0xff]
        %v1108 = vld [vmem:[%s1100 + $0x38] sm:$0xff]
        %1109 = vmatprep.subr.mxu0 %v144
        %1110 = vmatpush1.msra.mxu0 %v143
        %1111 = vmatprep.subr.mxu0 %v152
        %1112 = vmatpush1.msra.mxu0 %v151
        %1113 = vmatprep.subr.mxu0 %v160
        %1114 = vmatpush1.msra.mxu0 %v159
        %1115 = vmatprep.subr.mxu0 %v168
        %1116 = vmatpush1.msra.mxu0 %v167
        %1117 = vmatprep.subr.mxu0 %v176
        %1118 = vmatpush1.msra.mxu0 %v175
        %1119 = vmatprep.subr.mxu0 %v184
        %1120 = vmatpush1.msra.mxu0 %v183
        %1121 = vmatprep.subr.mxu0 %v192
        %1122 = vmatpush1.msra.mxu0 %v191
        %1123 = vmatprep.subr.mxu0 %v200
        %1124 = vmatpush1.msra.mxu0 %v199
        %1125 = vmatprep.subr.mxu0 %v208
        %1126 = vmatpush1.msra.mxu0 %v207
        %1127 = vmatprep.subr.mxu0 %v216
        %1128 = vmatpush1.msra.mxu0 %v215
        %1129 = vmatprep.subr.mxu0 %v224
        %1130 = vmatpush1.msra.mxu0 %v223
        %1131 = vmatprep.subr.mxu0 %v232
        %1132 = vmatpush1.msra.mxu0 %v231
        %1133 = vmatprep.subr.mxu0 %v240
        %1134 = vmatpush1.msra.mxu0 %v239
        %1135 = vmatprep.subr.mxu0 %v248
        %1136 = vmatpush1.msra.mxu0 %v247
        %1137 = vmatprep.subr.mxu0 %v256
        %1138 = vmatpush1.msra.mxu0 %v255
        %1139 = vmatprep.subr.mxu0 %v264
        %1140 = vmatpush1.msra.mxu0 %v263
        %1141 = vmatprep.subr.mxu0 %v272
        %1142 = vmatpush1.msra.mxu0 %v271
        %1143 = vmatprep.subr.mxu0 %v280
        %1144 = vmatpush1.msra.mxu0 %v279
        %1145 = vmatprep.subr.mxu0 %v288
        %1146 = vmatpush1.msra.mxu0 %v287
        %1147 = vmatprep.subr.mxu0 %v296
        %1148 = vmatpush1.msra.mxu0 %v295
        %1149 = vmatprep.subr.mxu0 %v304
        %1150 = vmatpush1.msra.mxu0 %v303
        %1151 = vmatprep.subr.mxu0 %v312
        %1152 = vmatpush1.msra.mxu0 %v311
        %1153 = vmatprep.subr.mxu0 %v320
        %1154 = vmatpush1.msra.mxu0 %v319
        %1155 = vmatprep.subr.mxu0 %v328
        %1156 = vmatpush1.msra.mxu0 %v327
        %1157 = vmatprep.subr.mxu0 %v336
        %1158 = vmatpush1.msra.mxu0 %v335
        %1159 = vmatprep.subr.mxu0 %v344
        %1160 = vmatpush1.msra.mxu0 %v343
        %1161 = vmatprep.subr.mxu0 %v352
        %1162 = vmatpush1.msra.mxu0 %v351
        %1163 = vmatprep.subr.mxu0 %v360
        %1164 = vmatpush1.msra.mxu0 %v359
        %1165 = vmatprep.subr.mxu0 %v368
        %1166 = vmatpush1.msra.mxu0 %v367
        %1167 = vmatprep.subr.mxu0 %v376
        %1168 = vmatpush1.msra.mxu0 %v375
        %1169 = vmatprep.subr.mxu0 %v384
        %1170 = vmatpush1.msra.mxu0 %v383
        %1171 = vmatprep.subr.mxu0 %v392
        %1172 = vmatpush1.msra.mxu0 %v391
        %1173 = vmatprep.mubr.f32.mxu0 %v1099
        %1174 = vmatmul.mubr.f32.gmra.mrb[0].mxu0 %v1098
        %v1175 = vpop.f32.mrb[0].mxu0
        %v1176 = vadd.f32 0.0, %v1175
        %v1177 = vpop.f32.mrb[0].mxu0
        %v1178 = vadd.f32 0.0, %v1177
        %1179 = vdwg.mxu0
        %1180 = vmatprep.subr.mxu0 %v146
        %1181 = vmatpush1.msra.mxu0 %v145
        %1182 = vmatprep.subr.mxu0 %v154
        %1183 = vmatpush1.msra.mxu0 %v153
        %1184 = vmatprep.subr.mxu0 %v162
        %1185 = vmatpush1.msra.mxu0 %v161
        %1186 = vmatprep.subr.mxu0 %v170
        %1187 = vmatpush1.msra.mxu0 %v169
        %1188 = vmatprep.subr.mxu0 %v178
        %1189 = vmatpush1.msra.mxu0 %v177
        %1190 = vmatprep.subr.mxu0 %v186
        %1191 = vmatpush1.msra.mxu0 %v185
        %1192 = vmatprep.subr.mxu0 %v194
        %1193 = vmatpush1.msra.mxu0 %v193
        %1194 = vmatprep.subr.mxu0 %v202
        %1195 = vmatpush1.msra.mxu0 %v201
        %1196 = vmatprep.subr.mxu0 %v210
        %1197 = vmatpush1.msra.mxu0 %v209
        %1198 = vmatprep.subr.mxu0 %v218
        %1199 = vmatpush1.msra.mxu0 %v217
        %1200 = vmatprep.subr.mxu0 %v226
        %1201 = vmatpush1.msra.mxu0 %v225
        %1202 = vmatprep.subr.mxu0 %v234
        %1203 = vmatpush1.msra.mxu0 %v233
        %1204 = vmatprep.subr.mxu0 %v242
        %1205 = vmatpush1.msra.mxu0 %v241
        %1206 = vmatprep.subr.mxu0 %v250
        %1207 = vmatpush1.msra.mxu0 %v249
        %1208 = vmatprep.subr.mxu0 %v258
        %1209 = vmatpush1.msra.mxu0 %v257
        %1210 = vmatprep.subr.mxu0 %v266
        %1211 = vmatpush1.msra.mxu0 %v265
        %1212 = vmatprep.subr.mxu0 %v274
        %1213 = vmatpush1.msra.mxu0 %v273
        %1214 = vmatprep.subr.mxu0 %v282
        %1215 = vmatpush1.msra.mxu0 %v281
        %1216 = vmatprep.subr.mxu0 %v290
        %1217 = vmatpush1.msra.mxu0 %v289
        %1218 = vmatprep.subr.mxu0 %v298
        %1219 = vmatpush1.msra.mxu0 %v297
        %1220 = vmatprep.subr.mxu0 %v306
        %1221 = vmatpush1.msra.mxu0 %v305
        %1222 = vmatprep.subr.mxu0 %v314
        %1223 = vmatpush1.msra.mxu0 %v313
        %1224 = vmatprep.subr.mxu0 %v322
        %1225 = vmatpush1.msra.mxu0 %v321
        %1226 = vmatprep.subr.mxu0 %v330
        %1227 = vmatpush1.msra.mxu0 %v329
        %1228 = vmatprep.subr.mxu0 %v338
        %1229 = vmatpush1.msra.mxu0 %v337
        %1230 = vmatprep.subr.mxu0 %v346
        %1231 = vmatpush1.msra.mxu0 %v345
        %1232 = vmatprep.subr.mxu0 %v354
        %1233 = vmatpush1.msra.mxu0 %v353
        %1234 = vmatprep.subr.mxu0 %v362
        %1235 = vmatpush1.msra.mxu0 %v361
        %1236 = vmatprep.subr.mxu0 %v370
        %1237 = vmatpush1.msra.mxu0 %v369
        %1238 = vmatprep.subr.mxu0 %v378
        %1239 = vmatpush1.msra.mxu0 %v377
        %1240 = vmatprep.subr.mxu0 %v386
        %1241 = vmatpush1.msra.mxu0 %v385
        %1242 = vmatprep.subr.mxu0 %v394
        %1243 = vmatpush1.msra.mxu0 %v393
        %1244 = vmatprep.mubr.f32.mxu0 %v1099
        %1245 = vmatmul.mubr.f32.gmra.mrb[0].mxu0 %v1098
        %v1246 = vpop.f32.mrb[0].mxu0
        %v1247 = vadd.f32 0.0, %v1246
        %v1248 = vpop.f32.mrb[0].mxu0
        %v1249 = vadd.f32 0.0, %v1248
        %1250 = vdwg.mxu0
        %1251 = vmatprep.subr.mxu0 %v148
        %1252 = vmatpush1.msra.mxu0 %v147
        %1253 = vmatprep.subr.mxu0 %v156
        %1254 = vmatpush1.msra.mxu0 %v155
        %1255 = vmatprep.subr.mxu0 %v164
        %1256 = vmatpush1.msra.mxu0 %v163
        %1257 = vmatprep.subr.mxu0 %v172
        %1258 = vmatpush1.msra.mxu0 %v171
        %1259 = vmatprep.subr.mxu0 %v180
        %1260 = vmatpush1.msra.mxu0 %v179
        %1261 = vmatprep.subr.mxu0 %v188
        %1262 = vmatpush1.msra.mxu0 %v187
        %1263 = vmatprep.subr.mxu0 %v196
        %1264 = vmatpush1.msra.mxu0 %v195
        %1265 = vmatprep.subr.mxu0 %v204
        %1266 = vmatpush1.msra.mxu0 %v203
        %1267 = vmatprep.subr.mxu0 %v212
        %1268 = vmatpush1.msra.mxu0 %v211
        %1269 = vmatprep.subr.mxu0 %v220
        %1270 = vmatpush1.msra.mxu0 %v219
        %1271 = vmatprep.subr.mxu0 %v228
        %1272 = vmatpush1.msra.mxu0 %v227
        %1273 = vmatprep.subr.mxu0 %v236
        %1274 = vmatpush1.msra.mxu0 %v235
        %1275 = vmatprep.subr.mxu0 %v244
        %1276 = vmatpush1.msra.mxu0 %v243
        %1277 = vmatprep.subr.mxu0 %v252
        %1278 = vmatpush1.msra.mxu0 %v251
        %1279 = vmatprep.subr.mxu0 %v260
        %1280 = vmatpush1.msra.mxu0 %v259
        %1281 = vmatprep.subr.mxu0 %v268
        %1282 = vmatpush1.msra.mxu0 %v267
        %1283 = vmatprep.subr.mxu0 %v276
        %1284 = vmatpush1.msra.mxu0 %v275
        %1285 = vmatprep.subr.mxu0 %v284
        %1286 = vmatpush1.msra.mxu0 %v283
        %1287 = vmatprep.subr.mxu0 %v292
        %1288 = vmatpush1.msra.mxu0 %v291
        %1289 = vmatprep.subr.mxu0 %v300
        %1290 = vmatpush1.msra.mxu0 %v299
        %1291 = vmatprep.subr.mxu0 %v308
        %1292 = vmatpush1.msra.mxu0 %v307
        %1293 = vmatprep.subr.mxu0 %v316
        %1294 = vmatpush1.msra.mxu0 %v315
        %1295 = vmatprep.subr.mxu0 %v324
        %1296 = vmatpush1.msra.mxu0 %v323
        %1297 = vmatprep.subr.mxu0 %v332
        %1298 = vmatpush1.msra.mxu0 %v331
        %1299 = vmatprep.subr.mxu0 %v340
        %1300 = vmatpush1.msra.mxu0 %v339
        %1301 = vmatprep.subr.mxu0 %v348
        %1302 = vmatpush1.msra.mxu0 %v347
        %1303 = vmatprep.subr.mxu0 %v356
        %1304 = vmatpush1.msra.mxu0 %v355
        %1305 = vmatprep.subr.mxu0 %v364
        %1306 = vmatpush1.msra.mxu0 %v363
        %1307 = vmatprep.subr.mxu0 %v372
        %1308 = vmatpush1.msra.mxu0 %v371
        %1309 = vmatprep.subr.mxu0 %v380
        %1310 = vmatpush1.msra.mxu0 %v379
        %1311 = vmatprep.subr.mxu0 %v388
        %1312 = vmatpush1.msra.mxu0 %v387
        %1313 = vmatprep.subr.mxu0 %v396
        %1314 = vmatpush1.msra.mxu0 %v395
        %1315 = vmatprep.mubr.f32.mxu0 %v1099
        %1316 = vmatmul.mubr.f32.gmra.mrb[0].mxu0 %v1098
        %v1317 = vpop.f32.mrb[0].mxu0
        %v1318 = vadd.f32 0.0, %v1317
        %v1319 = vpop.f32.mrb[0].mxu0
        %v1320 = vadd.f32 0.0, %v1319
        %1321 = vdwg.mxu0
        %1322 = vmatprep.subr.mxu0 %v150
        %1323 = vmatpush1.msra.mxu0 %v149
        %1324 = vmatprep.subr.mxu0 %v158
        %1325 = vmatpush1.msra.mxu0 %v157
        %1326 = vmatprep.subr.mxu0 %v166
        %1327 = vmatpush1.msra.mxu0 %v165
        %1328 = vmatprep.subr.mxu0 %v174
        %1329 = vmatpush1.msra.mxu0 %v173
        %1330 = vmatprep.subr.mxu0 %v182
        %1331 = vmatpush1.msra.mxu0 %v181
        %1332 = vmatprep.subr.mxu0 %v190
        %1333 = vmatpush1.msra.mxu0 %v189
        %1334 = vmatprep.subr.mxu0 %v198
        %1335 = vmatpush1.msra.mxu0 %v197
        %1336 = vmatprep.subr.mxu0 %v206
        %1337 = vmatpush1.msra.mxu0 %v205
        %1338 = vmatprep.subr.mxu0 %v214
        %1339 = vmatpush1.msra.mxu0 %v213
        %1340 = vmatprep.subr.mxu0 %v222
        %1341 = vmatpush1.msra.mxu0 %v221
        %1342 = vmatprep.subr.mxu0 %v230
        %1343 = vmatpush1.msra.mxu0 %v229
        %1344 = vmatprep.subr.mxu0 %v238
        %1345 = vmatpush1.msra.mxu0 %v237
        %1346 = vmatprep.subr.mxu0 %v246
        %1347 = vmatpush1.msra.mxu0 %v245
        %1348 = vmatprep.subr.mxu0 %v254
        %1349 = vmatpush1.msra.mxu0 %v253
        %1350 = vmatprep.subr.mxu0 %v262
        %1351 = vmatpush1.msra.mxu0 %v261
        %1352 = vmatprep.subr.mxu0 %v270
        %1353 = vmatpush1.msra.mxu0 %v269
        %1354 = vmatprep.subr.mxu0 %v278
        %1355 = vmatpush1.msra.mxu0 %v277
        %1356 = vmatprep.subr.mxu0 %v286
        %1357 = vmatpush1.msra.mxu0 %v285
        %1358 = vmatprep.subr.mxu0 %v294
        %1359 = vmatpush1.msra.mxu0 %v293
        %1360 = vmatprep.subr.mxu0 %v302
        %1361 = vmatpush1.msra.mxu0 %v301
        %1362 = vmatprep.subr.mxu0 %v310
        %1363 = vmatpush1.msra.mxu0 %v309
        %1364 = vmatprep.subr.mxu0 %v318
        %1365 = vmatpush1.msra.mxu0 %v317
        %1366 = vmatprep.subr.mxu0 %v326
        %1367 = vmatpush1.msra.mxu0 %v325
        %1368 = vmatprep.subr.mxu0 %v334
        %1369 = vmatpush1.msra.mxu0 %v333
        %1370 = vmatprep.subr.mxu0 %v342
        %1371 = vmatpush1.msra.mxu0 %v341
        %1372 = vmatprep.subr.mxu0 %v350
        %1373 = vmatpush1.msra.mxu0 %v349
        %1374 = vmatprep.subr.mxu0 %v358
        %1375 = vmatpush1.msra.mxu0 %v357
        %1376 = vmatprep.subr.mxu0 %v366
        %1377 = vmatpush1.msra.mxu0 %v365
        %1378 = vmatprep.subr.mxu0 %v374
        %1379 = vmatpush1.msra.mxu0 %v373
        %1380 = vmatprep.subr.mxu0 %v382
        %1381 = vmatpush1.msra.mxu0 %v381
        %1382 = vmatprep.subr.mxu0 %v390
        %1383 = vmatpush1.msra.mxu0 %v389
        %1384 = vmatprep.subr.mxu0 %v398
        %1385 = vmatpush1.msra.mxu0 %v397
        %1386 = vmatprep.mubr.f32.mxu0 %v1099
        %1387 = vmatmul.mubr.f32.gmra.mrb[0].mxu0 %v1098
        %v1388 = vpop.f32.mrb[0].mxu0
        %v1389 = vadd.f32 0.0, %v1388
        %v1390 = vpop.f32.mrb[0].mxu0
        %v1391 = vadd.f32 0.0, %v1390
        %1392 = vdwg.mxu0
        %v1393 = vadd.f32 %v1101, %v1176
        %v1394 = vadd.f32 %v1102, %v1178
        %v1395 = vadd.f32 %v1103, %v1247
        %v1396 = vadd.f32 %v1104, %v1249
        %v1397 = vadd.f32 %v1105, %v1318
        %v1398 = vadd.f32 %v1106, %v1320
        %v1399 = vadd.f32 %v1107, %v1389
        %v1400 = vadd.f32 %v1108, %v1391
        %v1401 = vxor.u32 %v1393, 2147483648
        %v1402 = vxor.u32 %v1394, 2147483648
        %v1403 = vxor.u32 %v1395, 2147483648
        %v1404 = vxor.u32 %v1396, 2147483648
        %v1405 = vxor.u32 %v1397, 2147483648
        %v1406 = vxor.u32 %v1398, 2147483648
        %v1407 = vmul.f32 %v1401, 1.442695
        %v1408 = vpow.pop %v1407
        %v1409 = vmul.f32 %v1402, 1.442695
        %v1410 = vpow.pop %v1409
        %v1411 = vmul.f32 %v1403, 1.442695
        %v1412 = vpow.pop %v1411
        %v1413 = vmul.f32 %v1404, 1.442695
        %v1414 = vpow.pop %v1413
        %v1415 = vmul.f32 %v1405, 1.442695
        %v1416 = vpow.pop %v1415
        %v1417 = vmul.f32 %v1406, 1.442695
        %v1418 = vpow.pop %v1417
        %v1419 = vadd.f32 %v1408, 1.0
        %v1420 = vadd.f32 %v1410, 1.0
        %v1421 = vadd.f32 %v1412, 1.0
        %v1422 = vadd.f32 %v1414, 1.0
        %v1423 = vadd.f32 %v1416, 1.0
        %v1424 = vadd.f32 %v1418, 1.0
        %v1425 = vrcp.pop %v1419
        %v1426 = vmul.f32 1.0, %v1425
        %v1427 = vrcp.pop %v1420
        %v1428 = vmul.f32 1.0, %v1427
        %v1429 = vrcp.pop %v1421
        %v1430 = vmul.f32 1.0, %v1429
        %v1431 = vrcp.pop %v1422
        %v1432 = vmul.f32 1.0, %v1431
        %v1433 = vrcp.pop %v1423
        %v1434 = vmul.f32 1.0, %v1433
        %v1435 = vrcp.pop %v1424
        %v1436 = vmul.f32 1.0, %v1435
        %v1437 = vtanh.pop %v1399
        %v1438 = vtanh.pop %v1400
        %v1439 = vmul.f32 %v1094, %v1426
        %v1440 = vmul.f32 %v1095, %v1428
        %v1441 = vmul.f32 %v1430, %v1437
        %v1442 = vmul.f32 %v1432, %v1438
        %v1443 = vadd.f32 %v1439, %v1441
        %v1444 = vadd.f32 %v1440, %v1442
        %v1445 = vtanh.pop %v1443
        %v1446 = vtanh.pop %v1444
        %v1447 = vmul.f32 %v1434, %v1445
        %v1448 = vmul.f32 %v1436, %v1446
        %s1449 = scalar_lea.vmem %s133, 192
        %v1450 = vld [vmem:[%s1449] sm:$0xff]
        %v1451 = vld [vmem:[%s1449 + $0x8] sm:$0xff]
        %v1452 = vld [vmem:[%s1449 + $0x10] sm:$0xff]
        %v1453 = vld [vmem:[%s1449 + $0x18] sm:$0xff]
        %v1454 = vld [vmem:[%s1449 + $0x20] sm:$0xff]
        %v1455 = vld [vmem:[%s1449 + $0x28] sm:$0xff]
        %v1456 = vld [vmem:[%s1449 + $0x30] sm:$0xff]
        %v1457 = vld [vmem:[%s1449 + $0x38] sm:$0xff]
        %1458 = vmatprep.subr.mxu0 %v144
        %1459 = vmatpush1.msra.mxu0 %v143
        %1460 = vmatprep.subr.mxu0 %v152
        %1461 = vmatpush1.msra.mxu0 %v151
        %1462 = vmatprep.subr.mxu0 %v160
        %1463 = vmatpush1.msra.mxu0 %v159
        %1464 = vmatprep.subr.mxu0 %v168
        %1465 = vmatpush1.msra.mxu0 %v167
        %1466 = vmatprep.subr.mxu0 %v176
        %1467 = vmatpush1.msra.mxu0 %v175
        %1468 = vmatprep.subr.mxu0 %v184
        %1469 = vmatpush1.msra.mxu0 %v183
        %1470 = vmatprep.subr.mxu0 %v192
        %1471 = vmatpush1.msra.mxu0 %v191
        %1472 = vmatprep.subr.mxu0 %v200
        %1473 = vmatpush1.msra.mxu0 %v199
        %1474 = vmatprep.subr.mxu0 %v208
        %1475 = vmatpush1.msra.mxu0 %v207
        %1476 = vmatprep.subr.mxu0 %v216
        %1477 = vmatpush1.msra.mxu0 %v215
        %1478 = vmatprep.subr.mxu0 %v224
        %1479 = vmatpush1.msra.mxu0 %v223
        %1480 = vmatprep.subr.mxu0 %v232
        %1481 = vmatpush1.msra.mxu0 %v231
        %1482 = vmatprep.subr.mxu0 %v240
        %1483 = vmatpush1.msra.mxu0 %v239
        %1484 = vmatprep.subr.mxu0 %v248
        %1485 = vmatpush1.msra.mxu0 %v247
        %1486 = vmatprep.subr.mxu0 %v256
        %1487 = vmatpush1.msra.mxu0 %v255
        %1488 = vmatprep.subr.mxu0 %v264
        %1489 = vmatpush1.msra.mxu0 %v263
        %1490 = vmatprep.subr.mxu0 %v272
        %1491 = vmatpush1.msra.mxu0 %v271
        %1492 = vmatprep.subr.mxu0 %v280
        %1493 = vmatpush1.msra.mxu0 %v279
        %1494 = vmatprep.subr.mxu0 %v288
        %1495 = vmatpush1.msra.mxu0 %v287
        %1496 = vmatprep.subr.mxu0 %v296
        %1497 = vmatpush1.msra.mxu0 %v295
        %1498 = vmatprep.subr.mxu0 %v304
        %1499 = vmatpush1.msra.mxu0 %v303
        %1500 = vmatprep.subr.mxu0 %v312
        %1501 = vmatpush1.msra.mxu0 %v311
        %1502 = vmatprep.subr.mxu0 %v320
        %1503 = vmatpush1.msra.mxu0 %v319
        %1504 = vmatprep.subr.mxu0 %v328
        %1505 = vmatpush1.msra.mxu0 %v327
        %1506 = vmatprep.subr.mxu0 %v336
        %1507 = vmatpush1.msra.mxu0 %v335
        %1508 = vmatprep.subr.mxu0 %v344
        %1509 = vmatpush1.msra.mxu0 %v343
        %1510 = vmatprep.subr.mxu0 %v352
        %1511 = vmatpush1.msra.mxu0 %v351
        %1512 = vmatprep.subr.mxu0 %v360
        %1513 = vmatpush1.msra.mxu0 %v359
        %1514 = vmatprep.subr.mxu0 %v368
        %1515 = vmatpush1.msra.mxu0 %v367
        %1516 = vmatprep.subr.mxu0 %v376
        %1517 = vmatpush1.msra.mxu0 %v375
        %1518 = vmatprep.subr.mxu0 %v384
        %1519 = vmatpush1.msra.mxu0 %v383
        %1520 = vmatprep.subr.mxu0 %v392
        %1521 = vmatpush1.msra.mxu0 %v391
        %1522 = vmatprep.mubr.f32.mxu0 %v1448
        %1523 = vmatmul.mubr.f32.gmra.mrb[0].mxu0 %v1447
        %v1524 = vpop.f32.mrb[0].mxu0
        %v1525 = vadd.f32 0.0, %v1524
        %v1526 = vpop.f32.mrb[0].mxu0
        %v1527 = vadd.f32 0.0, %v1526
        %1528 = vdwg.mxu0
        %1529 = vmatprep.subr.mxu0 %v146
        %1530 = vmatpush1.msra.mxu0 %v145
        %1531 = vmatprep.subr.mxu0 %v154
        %1532 = vmatpush1.msra.mxu0 %v153
        %1533 = vmatprep.subr.mxu0 %v162
        %1534 = vmatpush1.msra.mxu0 %v161
        %1535 = vmatprep.subr.mxu0 %v170
        %1536 = vmatpush1.msra.mxu0 %v169
        %1537 = vmatprep.subr.mxu0 %v178
        %1538 = vmatpush1.msra.mxu0 %v177
        %1539 = vmatprep.subr.mxu0 %v186
        %1540 = vmatpush1.msra.mxu0 %v185
        %1541 = vmatprep.subr.mxu0 %v194
        %1542 = vmatpush1.msra.mxu0 %v193
        %1543 = vmatprep.subr.mxu0 %v202
        %1544 = vmatpush1.msra.mxu0 %v201
        %1545 = vmatprep.subr.mxu0 %v210
        %1546 = vmatpush1.msra.mxu0 %v209
        %1547 = vmatprep.subr.mxu0 %v218
        %1548 = vmatpush1.msra.mxu0 %v217
        %1549 = vmatprep.subr.mxu0 %v226
        %1550 = vmatpush1.msra.mxu0 %v225
        %1551 = vmatprep.subr.mxu0 %v234
        %1552 = vmatpush1.msra.mxu0 %v233
        %1553 = vmatprep.subr.mxu0 %v242
        %1554 = vmatpush1.msra.mxu0 %v241
        %1555 = vmatprep.subr.mxu0 %v250
        %1556 = vmatpush1.msra.mxu0 %v249
        %1557 = vmatprep.subr.mxu0 %v258
        %1558 = vmatpush1.msra.mxu0 %v257
        %1559 = vmatprep.subr.mxu0 %v266
        %1560 = vmatpush1.msra.mxu0 %v265
        %1561 = vmatprep.subr.mxu0 %v274
        %1562 = vmatpush1.msra.mxu0 %v273
        %1563 = vmatprep.subr.mxu0 %v282
        %1564 = vmatpush1.msra.mxu0 %v281
        %1565 = vmatprep.subr.mxu0 %v290
        %1566 = vmatpush1.msra.mxu0 %v289
        %1567 = vmatprep.subr.mxu0 %v298
        %1568 = vmatpush1.msra.mxu0 %v297
        %1569 = vmatprep.subr.mxu0 %v306
        %1570 = vmatpush1.msra.mxu0 %v305
        %1571 = vmatprep.subr.mxu0 %v314
        %1572 = vmatpush1.msra.mxu0 %v313
        %1573 = vmatprep.subr.mxu0 %v322
        %1574 = vmatpush1.msra.mxu0 %v321
        %1575 = vmatprep.subr.mxu0 %v330
        %1576 = vmatpush1.msra.mxu0 %v329
        %1577 = vmatprep.subr.mxu0 %v338
        %1578 = vmatpush1.msra.mxu0 %v337
        %1579 = vmatprep.subr.mxu0 %v346
        %1580 = vmatpush1.msra.mxu0 %v345
        %1581 = vmatprep.subr.mxu0 %v354
        %1582 = vmatpush1.msra.mxu0 %v353
        %1583 = vmatprep.subr.mxu0 %v362
        %1584 = vmatpush1.msra.mxu0 %v361
        %1585 = vmatprep.subr.mxu0 %v370
        %1586 = vmatpush1.msra.mxu0 %v369
        %1587 = vmatprep.subr.mxu0 %v378
        %1588 = vmatpush1.msra.mxu0 %v377
        %1589 = vmatprep.subr.mxu0 %v386
        %1590 = vmatpush1.msra.mxu0 %v385
        %1591 = vmatprep.subr.mxu0 %v394
        %1592 = vmatpush1.msra.mxu0 %v393
        %1593 = vmatprep.mubr.f32.mxu0 %v1448
        %1594 = vmatmul.mubr.f32.gmra.mrb[0].mxu0 %v1447
        %v1595 = vpop.f32.mrb[0].mxu0
        %v1596 = vadd.f32 0.0, %v1595
        %v1597 = vpop.f32.mrb[0].mxu0
        %v1598 = vadd.f32 0.0, %v1597
        %1599 = vdwg.mxu0
        %1600 = vmatprep.subr.mxu0 %v148
        %1601 = vmatpush1.msra.mxu0 %v147
        %1602 = vmatprep.subr.mxu0 %v156
        %1603 = vmatpush1.msra.mxu0 %v155
        %1604 = vmatprep.subr.mxu0 %v164
        %1605 = vmatpush1.msra.mxu0 %v163
        %1606 = vmatprep.subr.mxu0 %v172
        %1607 = vmatpush1.msra.mxu0 %v171
        %1608 = vmatprep.subr.mxu0 %v180
        %1609 = vmatpush1.msra.mxu0 %v179
        %1610 = vmatprep.subr.mxu0 %v188
        %1611 = vmatpush1.msra.mxu0 %v187
        %1612 = vmatprep.subr.mxu0 %v196
        %1613 = vmatpush1.msra.mxu0 %v195
        %1614 = vmatprep.subr.mxu0 %v204
        %1615 = vmatpush1.msra.mxu0 %v203
        %1616 = vmatprep.subr.mxu0 %v212
        %1617 = vmatpush1.msra.mxu0 %v211
        %1618 = vmatprep.subr.mxu0 %v220
        %1619 = vmatpush1.msra.mxu0 %v219
        %1620 = vmatprep.subr.mxu0 %v228
        %1621 = vmatpush1.msra.mxu0 %v227
        %1622 = vmatprep.subr.mxu0 %v236
        %1623 = vmatpush1.msra.mxu0 %v235
        %1624 = vmatprep.subr.mxu0 %v244
        %1625 = vmatpush1.msra.mxu0 %v243
        %1626 = vmatprep.subr.mxu0 %v252
        %1627 = vmatpush1.msra.mxu0 %v251
        %1628 = vmatprep.subr.mxu0 %v260
        %1629 = vmatpush1.msra.mxu0 %v259
        %1630 = vmatprep.subr.mxu0 %v268
        %1631 = vmatpush1.msra.mxu0 %v267
        %1632 = vmatprep.subr.mxu0 %v276
        %1633 = vmatpush1.msra.mxu0 %v275
        %1634 = vmatprep.subr.mxu0 %v284
        %1635 = vmatpush1.msra.mxu0 %v283
        %1636 = vmatprep.subr.mxu0 %v292
        %1637 = vmatpush1.msra.mxu0 %v291
        %1638 = vmatprep.subr.mxu0 %v300
        %1639 = vmatpush1.msra.mxu0 %v299
        %1640 = vmatprep.subr.mxu0 %v308
        %1641 = vmatpush1.msra.mxu0 %v307
        %1642 = vmatprep.subr.mxu0 %v316
        %1643 = vmatpush1.msra.mxu0 %v315
        %1644 = vmatprep.subr.mxu0 %v324
        %1645 = vmatpush1.msra.mxu0 %v323
        %1646 = vmatprep.subr.mxu0 %v332
        %1647 = vmatpush1.msra.mxu0 %v331
        %1648 = vmatprep.subr.mxu0 %v340
        %1649 = vmatpush1.msra.mxu0 %v339
        %1650 = vmatprep.subr.mxu0 %v348
        %1651 = vmatpush1.msra.mxu0 %v347
        %1652 = vmatprep.subr.mxu0 %v356
        %1653 = vmatpush1.msra.mxu0 %v355
        %1654 = vmatprep.subr.mxu0 %v364
        %1655 = vmatpush1.msra.mxu0 %v363
        %1656 = vmatprep.subr.mxu0 %v372
        %1657 = vmatpush1.msra.mxu0 %v371
        %1658 = vmatprep.subr.mxu0 %v380
        %1659 = vmatpush1.msra.mxu0 %v379
        %1660 = vmatprep.subr.mxu0 %v388
        %1661 = vmatpush1.msra.mxu0 %v387
        %1662 = vmatprep.subr.mxu0 %v396
        %1663 = vmatpush1.msra.mxu0 %v395
        %1664 = vmatprep.mubr.f32.mxu0 %v1448
        %1665 = vmatmul.mubr.f32.gmra.mrb[0].mxu0 %v1447
        %v1666 = vpop.f32.mrb[0].mxu0
        %v1667 = vadd.f32 0.0, %v1666
        %v1668 = vpop.f32.mrb[0].mxu0
        %v1669 = vadd.f32 0.0, %v1668
        %1670 = vdwg.mxu0
        %1671 = vmatprep.subr.mxu0 %v150
        %1672 = vmatpush1.msra.mxu0 %v149
        %1673 = vmatprep.subr.mxu0 %v158
        %1674 = vmatpush1.msra.mxu0 %v157
        %1675 = vmatprep.subr.mxu0 %v166
        %1676 = vmatpush1.msra.mxu0 %v165
        %1677 = vmatprep.subr.mxu0 %v174
        %1678 = vmatpush1.msra.mxu0 %v173
        %1679 = vmatprep.subr.mxu0 %v182
        %1680 = vmatpush1.msra.mxu0 %v181
        %1681 = vmatprep.subr.mxu0 %v190
        %1682 = vmatpush1.msra.mxu0 %v189
        %1683 = vmatprep.subr.mxu0 %v198
        %1684 = vmatpush1.msra.mxu0 %v197
        %1685 = vmatprep.subr.mxu0 %v206
        %1686 = vmatpush1.msra.mxu0 %v205
        %1687 = vmatprep.subr.mxu0 %v214
        %1688 = vmatpush1.msra.mxu0 %v213
        %1689 = vmatprep.subr.mxu0 %v222
        %1690 = vmatpush1.msra.mxu0 %v221
        %1691 = vmatprep.subr.mxu0 %v230
        %1692 = vmatpush1.msra.mxu0 %v229
        %1693 = vmatprep.subr.mxu0 %v238
        %1694 = vmatpush1.msra.mxu0 %v237
        %1695 = vmatprep.subr.mxu0 %v246
        %1696 = vmatpush1.msra.mxu0 %v245
        %1697 = vmatprep.subr.mxu0 %v254
        %1698 = vmatpush1.msra.mxu0 %v253
        %1699 = vmatprep.subr.mxu0 %v262
        %1700 = vmatpush1.msra.mxu0 %v261
        %1701 = vmatprep.subr.mxu0 %v270
        %1702 = vmatpush1.msra.mxu0 %v269
        %1703 = vmatprep.subr.mxu0 %v278
        %1704 = vmatpush1.msra.mxu0 %v277
        %1705 = vmatprep.subr.mxu0 %v286
        %1706 = vmatpush1.msra.mxu0 %v285
        %1707 = vmatprep.subr.mxu0 %v294
        %1708 = vmatpush1.msra.mxu0 %v293
        %1709 = vmatprep.subr.mxu0 %v302
        %1710 = vmatpush1.msra.mxu0 %v301
        %1711 = vmatprep.subr.mxu0 %v310
        %1712 = vmatpush1.msra.mxu0 %v309
        %1713 = vmatprep.subr.mxu0 %v318
        %1714 = vmatpush1.msra.mxu0 %v317
        %1715 = vmatprep.subr.mxu0 %v326
        %1716 = vmatpush1.msra.mxu0 %v325
        %1717 = vmatprep.subr.mxu0 %v334
        %1718 = vmatpush1.msra.mxu0 %v333
        %1719 = vmatprep.subr.mxu0 %v342
        %1720 = vmatpush1.msra.mxu0 %v341
        %1721 = vmatprep.subr.mxu0 %v350
        %1722 = vmatpush1.msra.mxu0 %v349
        %1723 = vmatprep.subr.mxu0 %v358
        %1724 = vmatpush1.msra.mxu0 %v357
        %1725 = vmatprep.subr.mxu0 %v366
        %1726 = vmatpush1.msra.mxu0 %v365
        %1727 = vmatprep.subr.mxu0 %v374
        %1728 = vmatpush1.msra.mxu0 %v373
        %1729 = vmatprep.subr.mxu0 %v382
        %1730 = vmatpush1.msra.mxu0 %v381
        %1731 = vmatprep.subr.mxu0 %v390
        %1732 = vmatpush1.msra.mxu0 %v389
        %1733 = vmatprep.subr.mxu0 %v398
        %1734 = vmatpush1.msra.mxu0 %v397
        %1735 = vmatprep.mubr.f32.mxu0 %v1448
        %1736 = vmatmul.mubr.f32.gmra.mrb[0].mxu0 %v1447
        %v1737 = vpop.f32.mrb[0].mxu0
        %v1738 = vadd.f32 0.0, %v1737
        %v1739 = vpop.f32.mrb[0].mxu0
        %v1740 = vadd.f32 0.0, %v1739
        %1741 = vdwg.mxu0
        %v1742 = vadd.f32 %v1450, %v1525
        %v1743 = vadd.f32 %v1451, %v1527
        %v1744 = vadd.f32 %v1452, %v1596
        %v1745 = vadd.f32 %v1453, %v1598
        %v1746 = vadd.f32 %v1454, %v1667
        %v1747 = vadd.f32 %v1455, %v1669
        %v1748 = vadd.f32 %v1456, %v1738
        %v1749 = vadd.f32 %v1457, %v1740
        %v1750 = vxor.u32 %v1742, 2147483648
        %v1751 = vxor.u32 %v1743, 2147483648
        %v1752 = vxor.u32 %v1744, 2147483648
        %v1753 = vxor.u32 %v1745, 2147483648
        %v1754 = vxor.u32 %v1746, 2147483648
        %v1755 = vxor.u32 %v1747, 2147483648
        %v1756 = vmul.f32 %v1750, 1.442695
        %v1757 = vpow.pop %v1756
        %v1758 = vmul.f32 %v1751, 1.442695
        %v1759 = vpow.pop %v1758
        %v1760 = vmul.f32 %v1752, 1.442695
        %v1761 = vpow.pop %v1760
        %v1762 = vmul.f32 %v1753, 1.442695
        %v1763 = vpow.pop %v1762
        %v1764 = vmul.f32 %v1754, 1.442695
        %v1765 = vpow.pop %v1764
        %v1766 = vmul.f32 %v1755, 1.442695
        %v1767 = vpow.pop %v1766
        %v1768 = vadd.f32 %v1757, 1.0
        %v1769 = vadd.f32 %v1759, 1.0
        %v1770 = vadd.f32 %v1761, 1.0
        %v1771 = vadd.f32 %v1763, 1.0
        %v1772 = vadd.f32 %v1765, 1.0
        %v1773 = vadd.f32 %v1767, 1.0
        %v1774 = vrcp.pop %v1768
        %v1775 = vmul.f32 1.0, %v1774
        %v1776 = vrcp.pop %v1769
        %v1777 = vmul.f32 1.0, %v1776
        %v1778 = vrcp.pop %v1770
        %v1779 = vmul.f32 1.0, %v1778
        %v1780 = vrcp.pop %v1771
        %v1781 = vmul.f32 1.0, %v1780
        %v1782 = vrcp.pop %v1772
        %v1783 = vmul.f32 1.0, %v1782
        %v1784 = vrcp.pop %v1773
        %v1785 = vmul.f32 1.0, %v1784
        %v1786 = vtanh.pop %v1748
        %v1787 = vtanh.pop %v1749
        %v1788 = vmul.f32 %v1443, %v1775
        %v1789 = vmul.f32 %v1444, %v1777
        %v1790 = vmul.f32 %v1779, %v1786
        %v1791 = vmul.f32 %v1781, %v1787
        %v1792 = vadd.f32 %v1788, %v1790
        %v1793 = vadd.f32 %v1789, %v1791
        %v1794 = vtanh.pop %v1792
        %v1795 = vtanh.pop %v1793
        %v1796 = vmul.f32 %v1783, %v1794
        %v1797 = vmul.f32 %v1785, %v1795
        %s1798 = scalar_lea.vmem %s133, 256
        %v1799 = vld [vmem:[%s1798] sm:$0xff]
        %v1800 = vld [vmem:[%s1798 + $0x8] sm:$0xff]
        %v1801 = vld [vmem:[%s1798 + $0x10] sm:$0xff]
        %v1802 = vld [vmem:[%s1798 + $0x18] sm:$0xff]
        %v1803 = vld [vmem:[%s1798 + $0x20] sm:$0xff]
        %v1804 = vld [vmem:[%s1798 + $0x28] sm:$0xff]
        %v1805 = vld [vmem:[%s1798 + $0x30] sm:$0xff]
        %v1806 = vld [vmem:[%s1798 + $0x38] sm:$0xff]
        %1807 = vmatprep.subr.mxu0 %v144
        %1808 = vmatpush1.msra.mxu0 %v143
        %1809 = vmatprep.subr.mxu0 %v152
        %1810 = vmatpush1.msra.mxu0 %v151
        %1811 = vmatprep.subr.mxu0 %v160
        %1812 = vmatpush1.msra.mxu0 %v159
        %1813 = vmatprep.subr.mxu0 %v168
        %1814 = vmatpush1.msra.mxu0 %v167
        %1815 = vmatprep.subr.mxu0 %v176
        %1816 = vmatpush1.msra.mxu0 %v175
        %1817 = vmatprep.subr.mxu0 %v184
        %1818 = vmatpush1.msra.mxu0 %v183
        %1819 = vmatprep.subr.mxu0 %v192
        %1820 = vmatpush1.msra.mxu0 %v191
        %1821 = vmatprep.subr.mxu0 %v200
        %1822 = vmatpush1.msra.mxu0 %v199
        %1823 = vmatprep.subr.mxu0 %v208
        %1824 = vmatpush1.msra.mxu0 %v207
        %1825 = vmatprep.subr.mxu0 %v216
        %1826 = vmatpush1.msra.mxu0 %v215
        %1827 = vmatprep.subr.mxu0 %v224
        %1828 = vmatpush1.msra.mxu0 %v223
        %1829 = vmatprep.subr.mxu0 %v232
        %1830 = vmatpush1.msra.mxu0 %v231
        %1831 = vmatprep.subr.mxu0 %v240
        %1832 = vmatpush1.msra.mxu0 %v239
        %1833 = vmatprep.subr.mxu0 %v248
        %1834 = vmatpush1.msra.mxu0 %v247
        %1835 = vmatprep.subr.mxu0 %v256
        %1836 = vmatpush1.msra.mxu0 %v255
        %1837 = vmatprep.subr.mxu0 %v264
        %1838 = vmatpush1.msra.mxu0 %v263
        %1839 = vmatprep.subr.mxu0 %v272
        %1840 = vmatpush1.msra.mxu0 %v271
        %1841 = vmatprep.subr.mxu0 %v280
        %1842 = vmatpush1.msra.mxu0 %v279
        %1843 = vmatprep.subr.mxu0 %v288
        %1844 = vmatpush1.msra.mxu0 %v287
        %1845 = vmatprep.subr.mxu0 %v296
        %1846 = vmatpush1.msra.mxu0 %v295
        %1847 = vmatprep.subr.mxu0 %v304
        %1848 = vmatpush1.msra.mxu0 %v303
        %1849 = vmatprep.subr.mxu0 %v312
        %1850 = vmatpush1.msra.mxu0 %v311
        %1851 = vmatprep.subr.mxu0 %v320
        %1852 = vmatpush1.msra.mxu0 %v319
        %1853 = vmatprep.subr.mxu0 %v328
        %1854 = vmatpush1.msra.mxu0 %v327
        %1855 = vmatprep.subr.mxu0 %v336
        %1856 = vmatpush1.msra.mxu0 %v335
        %1857 = vmatprep.subr.mxu0 %v344
        %1858 = vmatpush1.msra.mxu0 %v343
        %1859 = vmatprep.subr.mxu0 %v352
        %1860 = vmatpush1.msra.mxu0 %v351
        %1861 = vmatprep.subr.mxu0 %v360
        %1862 = vmatpush1.msra.mxu0 %v359
        %1863 = vmatprep.subr.mxu0 %v368
        %1864 = vmatpush1.msra.mxu0 %v367
        %1865 = vmatprep.subr.mxu0 %v376
        %1866 = vmatpush1.msra.mxu0 %v375
        %1867 = vmatprep.subr.mxu0 %v384
        %1868 = vmatpush1.msra.mxu0 %v383
        %1869 = vmatprep.subr.mxu0 %v392
        %1870 = vmatpush1.msra.mxu0 %v391
        %1871 = vmatprep.mubr.f32.mxu0 %v1797
        %1872 = vmatmul.mubr.f32.gmra.mrb[0].mxu0 %v1796
        %v1873 = vpop.f32.mrb[0].mxu0
        %v1874 = vadd.f32 0.0, %v1873
        %v1875 = vpop.f32.mrb[0].mxu0
        %v1876 = vadd.f32 0.0, %v1875
        %1877 = vdwg.mxu0
        %1878 = vmatprep.subr.mxu0 %v146
        %1879 = vmatpush1.msra.mxu0 %v145
        %1880 = vmatprep.subr.mxu0 %v154
        %1881 = vmatpush1.msra.mxu0 %v153
        %1882 = vmatprep.subr.mxu0 %v162
        %1883 = vmatpush1.msra.mxu0 %v161
        %1884 = vmatprep.subr.mxu0 %v170
        %1885 = vmatpush1.msra.mxu0 %v169
        %1886 = vmatprep.subr.mxu0 %v178
        %1887 = vmatpush1.msra.mxu0 %v177
        %1888 = vmatprep.subr.mxu0 %v186
        %1889 = vmatpush1.msra.mxu0 %v185
        %1890 = vmatprep.subr.mxu0 %v194
        %1891 = vmatpush1.msra.mxu0 %v193
        %1892 = vmatprep.subr.mxu0 %v202
        %1893 = vmatpush1.msra.mxu0 %v201
        %1894 = vmatprep.subr.mxu0 %v210
        %1895 = vmatpush1.msra.mxu0 %v209
        %1896 = vmatprep.subr.mxu0 %v218
        %1897 = vmatpush1.msra.mxu0 %v217
        %1898 = vmatprep.subr.mxu0 %v226
        %1899 = vmatpush1.msra.mxu0 %v225
        %1900 = vmatprep.subr.mxu0 %v234
        %1901 = vmatpush1.msra.mxu0 %v233
        %1902 = vmatprep.subr.mxu0 %v242
        %1903 = vmatpush1.msra.mxu0 %v241
        %1904 = vmatprep.subr.mxu0 %v250
        %1905 = vmatpush1.msra.mxu0 %v249
        %1906 = vmatprep.subr.mxu0 %v258
        %1907 = vmatpush1.msra.mxu0 %v257
        %1908 = vmatprep.subr.mxu0 %v266
        %1909 = vmatpush1.msra.mxu0 %v265
        %1910 = vmatprep.subr.mxu0 %v274
        %1911 = vmatpush1.msra.mxu0 %v273
        %1912 = vmatprep.subr.mxu0 %v282
        %1913 = vmatpush1.msra.mxu0 %v281
        %1914 = vmatprep.subr.mxu0 %v290
        %1915 = vmatpush1.msra.mxu0 %v289
        %1916 = vmatprep.subr.mxu0 %v298
        %1917 = vmatpush1.msra.mxu0 %v297
        %1918 = vmatprep.subr.mxu0 %v306
        %1919 = vmatpush1.msra.mxu0 %v305
        %1920 = vmatprep.subr.mxu0 %v314
        %1921 = vmatpush1.msra.mxu0 %v313
        %1922 = vmatprep.subr.mxu0 %v322
        %1923 = vmatpush1.msra.mxu0 %v321
        %1924 = vmatprep.subr.mxu0 %v330
        %1925 = vmatpush1.msra.mxu0 %v329
        %1926 = vmatprep.subr.mxu0 %v338
        %1927 = vmatpush1.msra.mxu0 %v337
        %1928 = vmatprep.subr.mxu0 %v346
        %1929 = vmatpush1.msra.mxu0 %v345
        %1930 = vmatprep.subr.mxu0 %v354
        %1931 = vmatpush1.msra.mxu0 %v353
        %1932 = vmatprep.subr.mxu0 %v362
        %1933 = vmatpush1.msra.mxu0 %v361
        %1934 = vmatprep.subr.mxu0 %v370
        %1935 = vmatpush1.msra.mxu0 %v369
        %1936 = vmatprep.subr.mxu0 %v378
        %1937 = vmatpush1.msra.mxu0 %v377
        %1938 = vmatprep.subr.mxu0 %v386
        %1939 = vmatpush1.msra.mxu0 %v385
        %1940 = vmatprep.subr.mxu0 %v394
        %1941 = vmatpush1.msra.mxu0 %v393
        %1942 = vmatprep.mubr.f32.mxu0 %v1797
        %1943 = vmatmul.mubr.f32.gmra.mrb[0].mxu0 %v1796
        %v1944 = vpop.f32.mrb[0].mxu0
        %v1945 = vadd.f32 0.0, %v1944
        %v1946 = vpop.f32.mrb[0].mxu0
        %v1947 = vadd.f32 0.0, %v1946
        %1948 = vdwg.mxu0
        %1949 = vmatprep.subr.mxu0 %v148
        %1950 = vmatpush1.msra.mxu0 %v147
        %1951 = vmatprep.subr.mxu0 %v156
        %1952 = vmatpush1.msra.mxu0 %v155
        %1953 = vmatprep.subr.mxu0 %v164
        %1954 = vmatpush1.msra.mxu0 %v163
        %1955 = vmatprep.subr.mxu0 %v172
        %1956 = vmatpush1.msra.mxu0 %v171
        %1957 = vmatprep.subr.mxu0 %v180
        %1958 = vmatpush1.msra.mxu0 %v179
        %1959 = vmatprep.subr.mxu0 %v188
        %1960 = vmatpush1.msra.mxu0 %v187
        %1961 = vmatprep.subr.mxu0 %v196
        %1962 = vmatpush1.msra.mxu0 %v195
        %1963 = vmatprep.subr.mxu0 %v204
        %1964 = vmatpush1.msra.mxu0 %v203
        %1965 = vmatprep.subr.mxu0 %v212
        %1966 = vmatpush1.msra.mxu0 %v211
        %1967 = vmatprep.subr.mxu0 %v220
        %1968 = vmatpush1.msra.mxu0 %v219
        %1969 = vmatprep.subr.mxu0 %v228
        %1970 = vmatpush1.msra.mxu0 %v227
        %1971 = vmatprep.subr.mxu0 %v236
        %1972 = vmatpush1.msra.mxu0 %v235
        %1973 = vmatprep.subr.mxu0 %v244
        %1974 = vmatpush1.msra.mxu0 %v243
        %1975 = vmatprep.subr.mxu0 %v252
        %1976 = vmatpush1.msra.mxu0 %v251
        %1977 = vmatprep.subr.mxu0 %v260
        %1978 = vmatpush1.msra.mxu0 %v259
        %1979 = vmatprep.subr.mxu0 %v268
        %1980 = vmatpush1.msra.mxu0 %v267
        %1981 = vmatprep.subr.mxu0 %v276
        %1982 = vmatpush1.msra.mxu0 %v275
        %1983 = vmatprep.subr.mxu0 %v284
        %1984 = vmatpush1.msra.mxu0 %v283
        %1985 = vmatprep.subr.mxu0 %v292
        %1986 = vmatpush1.msra.mxu0 %v291
        %1987 = vmatprep.subr.mxu0 %v300
        %1988 = vmatpush1.msra.mxu0 %v299
        %1989 = vmatprep.subr.mxu0 %v308
        %1990 = vmatpush1.msra.mxu0 %v307
        %1991 = vmatprep.subr.mxu0 %v316
        %1992 = vmatpush1.msra.mxu0 %v315
        %1993 = vmatprep.subr.mxu0 %v324
        %1994 = vmatpush1.msra.mxu0 %v323
        %1995 = vmatprep.subr.mxu0 %v332
        %1996 = vmatpush1.msra.mxu0 %v331
        %1997 = vmatprep.subr.mxu0 %v340
        %1998 = vmatpush1.msra.mxu0 %v339
        %1999 = vmatprep.subr.mxu0 %v348
        %2000 = vmatpush1.msra.mxu0 %v347
        %2001 = vmatprep.subr.mxu0 %v356
        %2002 = vmatpush1.msra.mxu0 %v355
        %2003 = vmatprep.subr.mxu0 %v364
        %2004 = vmatpush1.msra.mxu0 %v363
        %2005 = vmatprep.subr.mxu0 %v372
        %2006 = vmatpush1.msra.mxu0 %v371
        %2007 = vmatprep.subr.mxu0 %v380
        %2008 = vmatpush1.msra.mxu0 %v379
        %2009 = vmatprep.subr.mxu0 %v388
        %2010 = vmatpush1.msra.mxu0 %v387
        %2011 = vmatprep.subr.mxu0 %v396
        %2012 = vmatpush1.msra.mxu0 %v395
        %2013 = vmatprep.mubr.f32.mxu0 %v1797
        %2014 = vmatmul.mubr.f32.gmra.mrb[0].mxu0 %v1796
        %v2015 = vpop.f32.mrb[0].mxu0
        %v2016 = vadd.f32 0.0, %v2015
        %v2017 = vpop.f32.mrb[0].mxu0
        %v2018 = vadd.f32 0.0, %v2017
        %2019 = vdwg.mxu0
        %2020 = vmatprep.subr.mxu0 %v150
        %2021 = vmatpush1.msra.mxu0 %v149
        %2022 = vmatprep.subr.mxu0 %v158
        %2023 = vmatpush1.msra.mxu0 %v157
        %2024 = vmatprep.subr.mxu0 %v166
        %2025 = vmatpush1.msra.mxu0 %v165
        %2026 = vmatprep.subr.mxu0 %v174
        %2027 = vmatpush1.msra.mxu0 %v173
        %2028 = vmatprep.subr.mxu0 %v182
        %2029 = vmatpush1.msra.mxu0 %v181
        %2030 = vmatprep.subr.mxu0 %v190
        %2031 = vmatpush1.msra.mxu0 %v189
        %2032 = vmatprep.subr.mxu0 %v198
        %2033 = vmatpush1.msra.mxu0 %v197
        %2034 = vmatprep.subr.mxu0 %v206
        %2035 = vmatpush1.msra.mxu0 %v205
        %2036 = vmatprep.subr.mxu0 %v214
        %2037 = vmatpush1.msra.mxu0 %v213
        %2038 = vmatprep.subr.mxu0 %v222
        %2039 = vmatpush1.msra.mxu0 %v221
        %2040 = vmatprep.subr.mxu0 %v230
        %2041 = vmatpush1.msra.mxu0 %v229
        %2042 = vmatprep.subr.mxu0 %v238
        %2043 = vmatpush1.msra.mxu0 %v237
        %2044 = vmatprep.subr.mxu0 %v246
        %2045 = vmatpush1.msra.mxu0 %v245
        %2046 = vmatprep.subr.mxu0 %v254
        %2047 = vmatpush1.msra.mxu0 %v253
        %2048 = vmatprep.subr.mxu0 %v262
        %2049 = vmatpush1.msra.mxu0 %v261
        %2050 = vmatprep.subr.mxu0 %v270
        %2051 = vmatpush1.msra.mxu0 %v269
        %2052 = vmatprep.subr.mxu0 %v278
        %2053 = vmatpush1.msra.mxu0 %v277
        %2054 = vmatprep.subr.mxu0 %v286
        %2055 = vmatpush1.msra.mxu0 %v285
        %2056 = vmatprep.subr.mxu0 %v294
        %2057 = vmatpush1.msra.mxu0 %v293
        %2058 = vmatprep.subr.mxu0 %v302
        %2059 = vmatpush1.msra.mxu0 %v301
        %2060 = vmatprep.subr.mxu0 %v310
        %2061 = vmatpush1.msra.mxu0 %v309
        %2062 = vmatprep.subr.mxu0 %v318
        %2063 = vmatpush1.msra.mxu0 %v317
        %2064 = vmatprep.subr.mxu0 %v326
        %2065 = vmatpush1.msra.mxu0 %v325
        %2066 = vmatprep.subr.mxu0 %v334
        %2067 = vmatpush1.msra.mxu0 %v333
        %2068 = vmatprep.subr.mxu0 %v342
        %2069 = vmatpush1.msra.mxu0 %v341
        %2070 = vmatprep.subr.mxu0 %v350
        %2071 = vmatpush1.msra.mxu0 %v349
        %2072 = vmatprep.subr.mxu0 %v358
        %2073 = vmatpush1.msra.mxu0 %v357
        %2074 = vmatprep.subr.mxu0 %v366
        %2075 = vmatpush1.msra.mxu0 %v365
        %2076 = vmatprep.subr.mxu0 %v374
        %2077 = vmatpush1.msra.mxu0 %v373
        %2078 = vmatprep.subr.mxu0 %v382
        %2079 = vmatpush1.msra.mxu0 %v381
        %2080 = vmatprep.subr.mxu0 %v390
        %2081 = vmatpush1.msra.mxu0 %v389
        %2082 = vmatprep.subr.mxu0 %v398
        %2083 = vmatpush1.msra.mxu0 %v397
        %2084 = vmatprep.mubr.f32.mxu0 %v1797
        %2085 = vmatmul.mubr.f32.gmra.mrb[0].mxu0 %v1796
        %v2086 = vpop.f32.mrb[0].mxu0
        %v2087 = vadd.f32 0.0, %v2086
        %v2088 = vpop.f32.mrb[0].mxu0
        %v2089 = vadd.f32 0.0, %v2088
        %2090 = vdwg.mxu0
        %v2091 = vadd.f32 %v1799, %v1874
        %v2092 = vadd.f32 %v1800, %v1876
        %v2093 = vadd.f32 %v1801, %v1945
        %v2094 = vadd.f32 %v1802, %v1947
        %v2095 = vadd.f32 %v1803, %v2016
        %v2096 = vadd.f32 %v1804, %v2018
        %v2097 = vadd.f32 %v1805, %v2087
        %v2098 = vadd.f32 %v1806, %v2089
        %v2099 = vxor.u32 %v2091, 2147483648
        %v2100 = vxor.u32 %v2092, 2147483648
        %v2101 = vxor.u32 %v2093, 2147483648
        %v2102 = vxor.u32 %v2094, 2147483648
        %v2103 = vxor.u32 %v2095, 2147483648
        %v2104 = vxor.u32 %v2096, 2147483648
        %v2105 = vmul.f32 %v2099, 1.442695
        %v2106 = vpow.pop %v2105
        %v2107 = vmul.f32 %v2100, 1.442695
        %v2108 = vpow.pop %v2107
        %v2109 = vmul.f32 %v2101, 1.442695
        %v2110 = vpow.pop %v2109
        %v2111 = vmul.f32 %v2102, 1.442695
        %v2112 = vpow.pop %v2111
        %v2113 = vmul.f32 %v2103, 1.442695
        %v2114 = vpow.pop %v2113
        %v2115 = vmul.f32 %v2104, 1.442695
        %v2116 = vpow.pop %v2115
        %v2117 = vadd.f32 %v2106, 1.0
        %v2118 = vadd.f32 %v2108, 1.0
        %v2119 = vadd.f32 %v2110, 1.0
        %v2120 = vadd.f32 %v2112, 1.0
        %v2121 = vadd.f32 %v2114, 1.0
        %v2122 = vadd.f32 %v2116, 1.0
        %v2123 = vrcp.pop %v2117
        %v2124 = vmul.f32 1.0, %v2123
        %v2125 = vrcp.pop %v2118
        %v2126 = vmul.f32 1.0, %v2125
        %v2127 = vrcp.pop %v2119
        %v2128 = vmul.f32 1.0, %v2127
        %v2129 = vrcp.pop %v2120
        %v2130 = vmul.f32 1.0, %v2129
        %v2131 = vrcp.pop %v2121
        %v2132 = vmul.f32 1.0, %v2131
        %v2133 = vrcp.pop %v2122
        %v2134 = vmul.f32 1.0, %v2133
        %v2135 = vtanh.pop %v2097
        %v2136 = vtanh.pop %v2098
        %v2137 = vmul.f32 %v1792, %v2124
        %v2138 = vmul.f32 %v1793, %v2126
        %v2139 = vmul.f32 %v2128, %v2135
        %v2140 = vmul.f32 %v2130, %v2136
        %v2141 = vadd.f32 %v2137, %v2139
        %v2142 = vadd.f32 %v2138, %v2140
        %v2143 = vtanh.pop %v2141
        %v2144 = vtanh.pop %v2142
        %v2145 = vmul.f32 %v2132, %v2143
        %v2146 = vmul.f32 %v2134, %v2144
        %s2147 = scalar_lea.vmem %s133, 320
        %v2148 = vld [vmem:[%s2147] sm:$0xff]
        %v2149 = vld [vmem:[%s2147 + $0x8] sm:$0xff]
        %v2150 = vld [vmem:[%s2147 + $0x10] sm:$0xff]
        %v2151 = vld [vmem:[%s2147 + $0x18] sm:$0xff]
        %v2152 = vld [vmem:[%s2147 + $0x20] sm:$0xff]
        %v2153 = vld [vmem:[%s2147 + $0x28] sm:$0xff]
        %v2154 = vld [vmem:[%s2147 + $0x30] sm:$0xff]
        %v2155 = vld [vmem:[%s2147 + $0x38] sm:$0xff]
        %2156 = vmatprep.subr.mxu0 %v144
        %2157 = vmatpush1.msra.mxu0 %v143
        %2158 = vmatprep.subr.mxu0 %v152
        %2159 = vmatpush1.msra.mxu0 %v151
        %2160 = vmatprep.subr.mxu0 %v160
        %2161 = vmatpush1.msra.mxu0 %v159
        %2162 = vmatprep.subr.mxu0 %v168
        %2163 = vmatpush1.msra.mxu0 %v167
        %2164 = vmatprep.subr.mxu0 %v176
        %2165 = vmatpush1.msra.mxu0 %v175
        %2166 = vmatprep.subr.mxu0 %v184
        %2167 = vmatpush1.msra.mxu0 %v183
        %2168 = vmatprep.subr.mxu0 %v192
        %2169 = vmatpush1.msra.mxu0 %v191
        %2170 = vmatprep.subr.mxu0 %v200
        %2171 = vmatpush1.msra.mxu0 %v199
        %2172 = vmatprep.subr.mxu0 %v208
        %2173 = vmatpush1.msra.mxu0 %v207
        %2174 = vmatprep.subr.mxu0 %v216
        %2175 = vmatpush1.msra.mxu0 %v215
        %2176 = vmatprep.subr.mxu0 %v224
        %2177 = vmatpush1.msra.mxu0 %v223
        %2178 = vmatprep.subr.mxu0 %v232
        %2179 = vmatpush1.msra.mxu0 %v231
        %2180 = vmatprep.subr.mxu0 %v240
        %2181 = vmatpush1.msra.mxu0 %v239
        %2182 = vmatprep.subr.mxu0 %v248
        %2183 = vmatpush1.msra.mxu0 %v247
        %2184 = vmatprep.subr.mxu0 %v256
        %2185 = vmatpush1.msra.mxu0 %v255
        %2186 = vmatprep.subr.mxu0 %v264
        %2187 = vmatpush1.msra.mxu0 %v263
        %2188 = vmatprep.subr.mxu0 %v272
        %2189 = vmatpush1.msra.mxu0 %v271
        %2190 = vmatprep.subr.mxu0 %v280
        %2191 = vmatpush1.msra.mxu0 %v279
        %2192 = vmatprep.subr.mxu0 %v288
        %2193 = vmatpush1.msra.mxu0 %v287
        %2194 = vmatprep.subr.mxu0 %v296
        %2195 = vmatpush1.msra.mxu0 %v295
        %2196 = vmatprep.subr.mxu0 %v304
        %2197 = vmatpush1.msra.mxu0 %v303
        %2198 = vmatprep.subr.mxu0 %v312
        %2199 = vmatpush1.msra.mxu0 %v311
        %2200 = vmatprep.subr.mxu0 %v320
        %2201 = vmatpush1.msra.mxu0 %v319
        %2202 = vmatprep.subr.mxu0 %v328
        %2203 = vmatpush1.msra.mxu0 %v327
        %2204 = vmatprep.subr.mxu0 %v336
        %2205 = vmatpush1.msra.mxu0 %v335
        %2206 = vmatprep.subr.mxu0 %v344
        %2207 = vmatpush1.msra.mxu0 %v343
        %2208 = vmatprep.subr.mxu0 %v352
        %2209 = vmatpush1.msra.mxu0 %v351
        %2210 = vmatprep.subr.mxu0 %v360
        %2211 = vmatpush1.msra.mxu0 %v359
        %2212 = vmatprep.subr.mxu0 %v368
        %2213 = vmatpush1.msra.mxu0 %v367
        %2214 = vmatprep.subr.mxu0 %v376
        %2215 = vmatpush1.msra.mxu0 %v375
        %2216 = vmatprep.subr.mxu0 %v384
        %2217 = vmatpush1.msra.mxu0 %v383
        %2218 = vmatprep.subr.mxu0 %v392
        %2219 = vmatpush1.msra.mxu0 %v391
        %2220 = vmatprep.mubr.f32.mxu0 %v2146
        %2221 = vmatmul.mubr.f32.gmra.mrb[0].mxu0 %v2145
        %v2222 = vpop.f32.mrb[0].mxu0
        %v2223 = vadd.f32 0.0, %v2222
        %v2224 = vpop.f32.mrb[0].mxu0
        %v2225 = vadd.f32 0.0, %v2224
        %2226 = vdwg.mxu0
        %2227 = vmatprep.subr.mxu0 %v146
        %2228 = vmatpush1.msra.mxu0 %v145
        %2229 = vmatprep.subr.mxu0 %v154
        %2230 = vmatpush1.msra.mxu0 %v153
        %2231 = vmatprep.subr.mxu0 %v162
        %2232 = vmatpush1.msra.mxu0 %v161
        %2233 = vmatprep.subr.mxu0 %v170
        %2234 = vmatpush1.msra.mxu0 %v169
        %2235 = vmatprep.subr.mxu0 %v178
        %2236 = vmatpush1.msra.mxu0 %v177
        %2237 = vmatprep.subr.mxu0 %v186
        %2238 = vmatpush1.msra.mxu0 %v185
        %2239 = vmatprep.subr.mxu0 %v194
        %2240 = vmatpush1.msra.mxu0 %v193
        %2241 = vmatprep.subr.mxu0 %v202
        %2242 = vmatpush1.msra.mxu0 %v201
        %2243 = vmatprep.subr.mxu0 %v210
        %2244 = vmatpush1.msra.mxu0 %v209
        %2245 = vmatprep.subr.mxu0 %v218
        %2246 = vmatpush1.msra.mxu0 %v217
        %2247 = vmatprep.subr.mxu0 %v226
        %2248 = vmatpush1.msra.mxu0 %v225
        %2249 = vmatprep.subr.mxu0 %v234
        %2250 = vmatpush1.msra.mxu0 %v233
        %2251 = vmatprep.subr.mxu0 %v242
        %2252 = vmatpush1.msra.mxu0 %v241
        %2253 = vmatprep.subr.mxu0 %v250
        %2254 = vmatpush1.msra.mxu0 %v249
        %2255 = vmatprep.subr.mxu0 %v258
        %2256 = vmatpush1.msra.mxu0 %v257
        %2257 = vmatprep.subr.mxu0 %v266
        %2258 = vmatpush1.msra.mxu0 %v265
        %2259 = vmatprep.subr.mxu0 %v274
        %2260 = vmatpush1.msra.mxu0 %v273
        %2261 = vmatprep.subr.mxu0 %v282
        %2262 = vmatpush1.msra.mxu0 %v281
        %2263 = vmatprep.subr.mxu0 %v290
        %2264 = vmatpush1.msra.mxu0 %v289
        %2265 = vmatprep.subr.mxu0 %v298
        %2266 = vmatpush1.msra.mxu0 %v297
        %2267 = vmatprep.subr.mxu0 %v306
        %2268 = vmatpush1.msra.mxu0 %v305
        %2269 = vmatprep.subr.mxu0 %v314
        %2270 = vmatpush1.msra.mxu0 %v313
        %2271 = vmatprep.subr.mxu0 %v322
        %2272 = vmatpush1.msra.mxu0 %v321
        %2273 = vmatprep.subr.mxu0 %v330
        %2274 = vmatpush1.msra.mxu0 %v329
        %2275 = vmatprep.subr.mxu0 %v338
        %2276 = vmatpush1.msra.mxu0 %v337
        %2277 = vmatprep.subr.mxu0 %v346
        %2278 = vmatpush1.msra.mxu0 %v345
        %2279 = vmatprep.subr.mxu0 %v354
        %2280 = vmatpush1.msra.mxu0 %v353
        %2281 = vmatprep.subr.mxu0 %v362
        %2282 = vmatpush1.msra.mxu0 %v361
        %2283 = vmatprep.subr.mxu0 %v370
        %2284 = vmatpush1.msra.mxu0 %v369
        %2285 = vmatprep.subr.mxu0 %v378
        %2286 = vmatpush1.msra.mxu0 %v377
        %2287 = vmatprep.subr.mxu0 %v386
        %2288 = vmatpush1.msra.mxu0 %v385
        %2289 = vmatprep.subr.mxu0 %v394
        %2290 = vmatpush1.msra.mxu0 %v393
        %2291 = vmatprep.mubr.f32.mxu0 %v2146
        %2292 = vmatmul.mubr.f32.gmra.mrb[0].mxu0 %v2145
        %v2293 = vpop.f32.mrb[0].mxu0
        %v2294 = vadd.f32 0.0, %v2293
        %v2295 = vpop.f32.mrb[0].mxu0
        %v2296 = vadd.f32 0.0, %v2295
        %2297 = vdwg.mxu0
        %2298 = vmatprep.subr.mxu0 %v148
        %2299 = vmatpush1.msra.mxu0 %v147
        %2300 = vmatprep.subr.mxu0 %v156
        %2301 = vmatpush1.msra.mxu0 %v155
        %2302 = vmatprep.subr.mxu0 %v164
        %2303 = vmatpush1.msra.mxu0 %v163
        %2304 = vmatprep.subr.mxu0 %v172
        %2305 = vmatpush1.msra.mxu0 %v171
        %2306 = vmatprep.subr.mxu0 %v180
        %2307 = vmatpush1.msra.mxu0 %v179
        %2308 = vmatprep.subr.mxu0 %v188
        %2309 = vmatpush1.msra.mxu0 %v187
        %2310 = vmatprep.subr.mxu0 %v196
        %2311 = vmatpush1.msra.mxu0 %v195
        %2312 = vmatprep.subr.mxu0 %v204
        %2313 = vmatpush1.msra.mxu0 %v203
        %2314 = vmatprep.subr.mxu0 %v212
        %2315 = vmatpush1.msra.mxu0 %v211
        %2316 = vmatprep.subr.mxu0 %v220
        %2317 = vmatpush1.msra.mxu0 %v219
        %2318 = vmatprep.subr.mxu0 %v228
        %2319 = vmatpush1.msra.mxu0 %v227
        %2320 = vmatprep.subr.mxu0 %v236
        %2321 = vmatpush1.msra.mxu0 %v235
        %2322 = vmatprep.subr.mxu0 %v244
        %2323 = vmatpush1.msra.mxu0 %v243
        %2324 = vmatprep.subr.mxu0 %v252
        %2325 = vmatpush1.msra.mxu0 %v251
        %2326 = vmatprep.subr.mxu0 %v260
        %2327 = vmatpush1.msra.mxu0 %v259
        %2328 = vmatprep.subr.mxu0 %v268
        %2329 = vmatpush1.msra.mxu0 %v267
        %2330 = vmatprep.subr.mxu0 %v276
        %2331 = vmatpush1.msra.mxu0 %v275
        %2332 = vmatprep.subr.mxu0 %v284
        %2333 = vmatpush1.msra.mxu0 %v283
        %2334 = vmatprep.subr.mxu0 %v292
        %2335 = vmatpush1.msra.mxu0 %v291
        %2336 = vmatprep.subr.mxu0 %v300
        %2337 = vmatpush1.msra.mxu0 %v299
        %2338 = vmatprep.subr.mxu0 %v308
        %2339 = vmatpush1.msra.mxu0 %v307
        %2340 = vmatprep.subr.mxu0 %v316
        %2341 = vmatpush1.msra.mxu0 %v315
        %2342 = vmatprep.subr.mxu0 %v324
        %2343 = vmatpush1.msra.mxu0 %v323
        %2344 = vmatprep.subr.mxu0 %v332
        %2345 = vmatpush1.msra.mxu0 %v331
        %2346 = vmatprep.subr.mxu0 %v340
        %2347 = vmatpush1.msra.mxu0 %v339
        %2348 = vmatprep.subr.mxu0 %v348
        %2349 = vmatpush1.msra.mxu0 %v347
        %2350 = vmatprep.subr.mxu0 %v356
        %2351 = vmatpush1.msra.mxu0 %v355
        %2352 = vmatprep.subr.mxu0 %v364
        %2353 = vmatpush1.msra.mxu0 %v363
        %2354 = vmatprep.subr.mxu0 %v372
        %2355 = vmatpush1.msra.mxu0 %v371
        %2356 = vmatprep.subr.mxu0 %v380
        %2357 = vmatpush1.msra.mxu0 %v379
        %2358 = vmatprep.subr.mxu0 %v388
        %2359 = vmatpush1.msra.mxu0 %v387
        %2360 = vmatprep.subr.mxu0 %v396
        %2361 = vmatpush1.msra.mxu0 %v395
        %2362 = vmatprep.mubr.f32.mxu0 %v2146
        %2363 = vmatmul.mubr.f32.gmra.mrb[0].mxu0 %v2145
        %v2364 = vpop.f32.mrb[0].mxu0
        %v2365 = vadd.f32 0.0, %v2364
        %v2366 = vpop.f32.mrb[0].mxu0
        %v2367 = vadd.f32 0.0, %v2366
        %2368 = vdwg.mxu0
        %2369 = vmatprep.subr.mxu0 %v150
        %2370 = vmatpush1.msra.mxu0 %v149
        %2371 = vmatprep.subr.mxu0 %v158
        %2372 = vmatpush1.msra.mxu0 %v157
        %2373 = vmatprep.subr.mxu0 %v166
        %2374 = vmatpush1.msra.mxu0 %v165
        %2375 = vmatprep.subr.mxu0 %v174
        %2376 = vmatpush1.msra.mxu0 %v173
        %2377 = vmatprep.subr.mxu0 %v182
        %2378 = vmatpush1.msra.mxu0 %v181
        %2379 = vmatprep.subr.mxu0 %v190
        %2380 = vmatpush1.msra.mxu0 %v189
        %2381 = vmatprep.subr.mxu0 %v198
        %2382 = vmatpush1.msra.mxu0 %v197
        %2383 = vmatprep.subr.mxu0 %v206
        %2384 = vmatpush1.msra.mxu0 %v205
        %2385 = vmatprep.subr.mxu0 %v214
        %2386 = vmatpush1.msra.mxu0 %v213
        %2387 = vmatprep.subr.mxu0 %v222
        %2388 = vmatpush1.msra.mxu0 %v221
        %2389 = vmatprep.subr.mxu0 %v230
        %2390 = vmatpush1.msra.mxu0 %v229
        %2391 = vmatprep.subr.mxu0 %v238
        %2392 = vmatpush1.msra.mxu0 %v237
        %2393 = vmatprep.subr.mxu0 %v246
        %2394 = vmatpush1.msra.mxu0 %v245
        %2395 = vmatprep.subr.mxu0 %v254
        %2396 = vmatpush1.msra.mxu0 %v253
        %2397 = vmatprep.subr.mxu0 %v262
        %2398 = vmatpush1.msra.mxu0 %v261
        %2399 = vmatprep.subr.mxu0 %v270
        %2400 = vmatpush1.msra.mxu0 %v269
        %2401 = vmatprep.subr.mxu0 %v278
        %2402 = vmatpush1.msra.mxu0 %v277
        %2403 = vmatprep.subr.mxu0 %v286
        %2404 = vmatpush1.msra.mxu0 %v285
        %2405 = vmatprep.subr.mxu0 %v294
        %2406 = vmatpush1.msra.mxu0 %v293
        %2407 = vmatprep.subr.mxu0 %v302
        %2408 = vmatpush1.msra.mxu0 %v301
        %2409 = vmatprep.subr.mxu0 %v310
        %2410 = vmatpush1.msra.mxu0 %v309
        %2411 = vmatprep.subr.mxu0 %v318
        %2412 = vmatpush1.msra.mxu0 %v317
        %2413 = vmatprep.subr.mxu0 %v326
        %2414 = vmatpush1.msra.mxu0 %v325
        %2415 = vmatprep.subr.mxu0 %v334
        %2416 = vmatpush1.msra.mxu0 %v333
        %2417 = vmatprep.subr.mxu0 %v342
        %2418 = vmatpush1.msra.mxu0 %v341
        %2419 = vmatprep.subr.mxu0 %v350
        %2420 = vmatpush1.msra.mxu0 %v349
        %2421 = vmatprep.subr.mxu0 %v358
        %2422 = vmatpush1.msra.mxu0 %v357
        %2423 = vmatprep.subr.mxu0 %v366
        %2424 = vmatpush1.msra.mxu0 %v365
        %2425 = vmatprep.subr.mxu0 %v374
        %2426 = vmatpush1.msra.mxu0 %v373
        %2427 = vmatprep.subr.mxu0 %v382
        %2428 = vmatpush1.msra.mxu0 %v381
        %2429 = vmatprep.subr.mxu0 %v390
        %2430 = vmatpush1.msra.mxu0 %v389
        %2431 = vmatprep.subr.mxu0 %v398
        %2432 = vmatpush1.msra.mxu0 %v397
        %2433 = vmatprep.mubr.f32.mxu0 %v2146
        %2434 = vmatmul.mubr.f32.gmra.mrb[0].mxu0 %v2145
        %v2435 = vpop.f32.mrb[0].mxu0
        %v2436 = vadd.f32 0.0, %v2435
        %v2437 = vpop.f32.mrb[0].mxu0
        %v2438 = vadd.f32 0.0, %v2437
        %2439 = vdwg.mxu0
        %v2440 = vadd.f32 %v2148, %v2223
        %v2441 = vadd.f32 %v2149, %v2225
        %v2442 = vadd.f32 %v2150, %v2294
        %v2443 = vadd.f32 %v2151, %v2296
        %v2444 = vadd.f32 %v2152, %v2365
        %v2445 = vadd.f32 %v2153, %v2367
        %v2446 = vadd.f32 %v2154, %v2436
        %v2447 = vadd.f32 %v2155, %v2438
        %v2448 = vxor.u32 %v2440, 2147483648
        %v2449 = vxor.u32 %v2441, 2147483648
        %v2450 = vxor.u32 %v2442, 2147483648
        %v2451 = vxor.u32 %v2443, 2147483648
        %v2452 = vxor.u32 %v2444, 2147483648
        %v2453 = vxor.u32 %v2445, 2147483648
        %v2454 = vmul.f32 %v2448, 1.442695
        %v2455 = vpow.pop %v2454
        %v2456 = vmul.f32 %v2449, 1.442695
        %v2457 = vpow.pop %v2456
        %v2458 = vmul.f32 %v2450, 1.442695
        %v2459 = vpow.pop %v2458
        %v2460 = vmul.f32 %v2451, 1.442695
        %v2461 = vpow.pop %v2460
        %v2462 = vmul.f32 %v2452, 1.442695
        %v2463 = vpow.pop %v2462
        %v2464 = vmul.f32 %v2453, 1.442695
        %v2465 = vpow.pop %v2464
        %v2466 = vadd.f32 %v2455, 1.0
        %v2467 = vadd.f32 %v2457, 1.0
        %v2468 = vadd.f32 %v2459, 1.0
        %v2469 = vadd.f32 %v2461, 1.0
        %v2470 = vadd.f32 %v2463, 1.0
        %v2471 = vadd.f32 %v2465, 1.0
        %v2472 = vrcp.pop %v2466
        %v2473 = vmul.f32 1.0, %v2472
        %v2474 = vrcp.pop %v2467
        %v2475 = vmul.f32 1.0, %v2474
        %v2476 = vrcp.pop %v2468
        %v2477 = vmul.f32 1.0, %v2476
        %v2478 = vrcp.pop %v2469
        %v2479 = vmul.f32 1.0, %v2478
        %v2480 = vrcp.pop %v2470
        %v2481 = vmul.f32 1.0, %v2480
        %v2482 = vrcp.pop %v2471
        %v2483 = vmul.f32 1.0, %v2482
        %v2484 = vtanh.pop %v2446
        %v2485 = vtanh.pop %v2447
        %v2486 = vmul.f32 %v2141, %v2473
        %v2487 = vmul.f32 %v2142, %v2475
        %v2488 = vmul.f32 %v2477, %v2484
        %v2489 = vmul.f32 %v2479, %v2485
        %v2490 = vadd.f32 %v2486, %v2488
        %v2491 = vadd.f32 %v2487, %v2489
        %v2492 = vtanh.pop %v2490
        %v2493 = vtanh.pop %v2491
        %v2494 = vmul.f32 %v2481, %v2492
        %v2495 = vmul.f32 %v2483, %v2493
        %s2496 = scalar_lea.vmem %s133, 384
        %v2497 = vld [vmem:[%s2496] sm:$0xff]
        %v2498 = vld [vmem:[%s2496 + $0x8] sm:$0xff]
        %v2499 = vld [vmem:[%s2496 + $0x10] sm:$0xff]
        %v2500 = vld [vmem:[%s2496 + $0x18] sm:$0xff]
        %v2501 = vld [vmem:[%s2496 + $0x20] sm:$0xff]
        %v2502 = vld [vmem:[%s2496 + $0x28] sm:$0xff]
        %v2503 = vld [vmem:[%s2496 + $0x30] sm:$0xff]
        %v2504 = vld [vmem:[%s2496 + $0x38] sm:$0xff]
        %2505 = vmatprep.subr.mxu0 %v144
        %2506 = vmatpush1.msra.mxu0 %v143
        %2507 = vmatprep.subr.mxu0 %v152
        %2508 = vmatpush1.msra.mxu0 %v151
        %2509 = vmatprep.subr.mxu0 %v160
        %2510 = vmatpush1.msra.mxu0 %v159
        %2511 = vmatprep.subr.mxu0 %v168
        %2512 = vmatpush1.msra.mxu0 %v167
        %2513 = vmatprep.subr.mxu0 %v176
        %2514 = vmatpush1.msra.mxu0 %v175
        %2515 = vmatprep.subr.mxu0 %v184
        %2516 = vmatpush1.msra.mxu0 %v183
        %2517 = vmatprep.subr.mxu0 %v192
        %2518 = vmatpush1.msra.mxu0 %v191
        %2519 = vmatprep.subr.mxu0 %v200
        %2520 = vmatpush1.msra.mxu0 %v199
        %2521 = vmatprep.subr.mxu0 %v208
        %2522 = vmatpush1.msra.mxu0 %v207
        %2523 = vmatprep.subr.mxu0 %v216
        %2524 = vmatpush1.msra.mxu0 %v215
        %2525 = vmatprep.subr.mxu0 %v224
        %2526 = vmatpush1.msra.mxu0 %v223
        %2527 = vmatprep.subr.mxu0 %v232
        %2528 = vmatpush1.msra.mxu0 %v231
        %2529 = vmatprep.subr.mxu0 %v240
        %2530 = vmatpush1.msra.mxu0 %v239
        %2531 = vmatprep.subr.mxu0 %v248
        %2532 = vmatpush1.msra.mxu0 %v247
        %2533 = vmatprep.subr.mxu0 %v256
        %2534 = vmatpush1.msra.mxu0 %v255
        %2535 = vmatprep.subr.mxu0 %v264
        %2536 = vmatpush1.msra.mxu0 %v263
        %2537 = vmatprep.subr.mxu0 %v272
        %2538 = vmatpush1.msra.mxu0 %v271
        %2539 = vmatprep.subr.mxu0 %v280
        %2540 = vmatpush1.msra.mxu0 %v279
        %2541 = vmatprep.subr.mxu0 %v288
        %2542 = vmatpush1.msra.mxu0 %v287
        %2543 = vmatprep.subr.mxu0 %v296
        %2544 = vmatpush1.msra.mxu0 %v295
        %2545 = vmatprep.subr.mxu0 %v304
        %2546 = vmatpush1.msra.mxu0 %v303
        %2547 = vmatprep.subr.mxu0 %v312
        %2548 = vmatpush1.msra.mxu0 %v311
        %2549 = vmatprep.subr.mxu0 %v320
        %2550 = vmatpush1.msra.mxu0 %v319
        %2551 = vmatprep.subr.mxu0 %v328
        %2552 = vmatpush1.msra.mxu0 %v327
        %2553 = vmatprep.subr.mxu0 %v336
        %2554 = vmatpush1.msra.mxu0 %v335
        %2555 = vmatprep.subr.mxu0 %v344
        %2556 = vmatpush1.msra.mxu0 %v343
        %2557 = vmatprep.subr.mxu0 %v352
        %2558 = vmatpush1.msra.mxu0 %v351
        %2559 = vmatprep.subr.mxu0 %v360
        %2560 = vmatpush1.msra.mxu0 %v359
        %2561 = vmatprep.subr.mxu0 %v368
        %2562 = vmatpush1.msra.mxu0 %v367
        %2563 = vmatprep.subr.mxu0 %v376
        %2564 = vmatpush1.msra.mxu0 %v375
        %2565 = vmatprep.subr.mxu0 %v384
        %2566 = vmatpush1.msra.mxu0 %v383
        %2567 = vmatprep.subr.mxu0 %v392
        %2568 = vmatpush1.msra.mxu0 %v391
        %2569 = vmatprep.mubr.f32.mxu0 %v2495
        %2570 = vmatmul.mubr.f32.gmra.mrb[0].mxu0 %v2494
        %v2571 = vpop.f32.mrb[0].mxu0
        %v2572 = vadd.f32 0.0, %v2571
        %v2573 = vpop.f32.mrb[0].mxu0
        %v2574 = vadd.f32 0.0, %v2573
        %2575 = vdwg.mxu0
        %2576 = vmatprep.subr.mxu0 %v146
        %2577 = vmatpush1.msra.mxu0 %v145
        %2578 = vmatprep.subr.mxu0 %v154
        %2579 = vmatpush1.msra.mxu0 %v153
        %2580 = vmatprep.subr.mxu0 %v162
        %2581 = vmatpush1.msra.mxu0 %v161
        %2582 = vmatprep.subr.mxu0 %v170
        %2583 = vmatpush1.msra.mxu0 %v169
        %2584 = vmatprep.subr.mxu0 %v178
        %2585 = vmatpush1.msra.mxu0 %v177
        %2586 = vmatprep.subr.mxu0 %v186
        %2587 = vmatpush1.msra.mxu0 %v185
        %2588 = vmatprep.subr.mxu0 %v194
        %2589 = vmatpush1.msra.mxu0 %v193
        %2590 = vmatprep.subr.mxu0 %v202
        %2591 = vmatpush1.msra.mxu0 %v201
        %2592 = vmatprep.subr.mxu0 %v210
        %2593 = vmatpush1.msra.mxu0 %v209
        %2594 = vmatprep.subr.mxu0 %v218
        %2595 = vmatpush1.msra.mxu0 %v217
        %2596 = vmatprep.subr.mxu0 %v226
        %2597 = vmatpush1.msra.mxu0 %v225
        %2598 = vmatprep.subr.mxu0 %v234
        %2599 = vmatpush1.msra.mxu0 %v233
        %2600 = vmatprep.subr.mxu0 %v242
        %2601 = vmatpush1.msra.mxu0 %v241
        %2602 = vmatprep.subr.mxu0 %v250
        %2603 = vmatpush1.msra.mxu0 %v249
        %2604 = vmatprep.subr.mxu0 %v258
        %2605 = vmatpush1.msra.mxu0 %v257
        %2606 = vmatprep.subr.mxu0 %v266
        %2607 = vmatpush1.msra.mxu0 %v265
        %2608 = vmatprep.subr.mxu0 %v274
        %2609 = vmatpush1.msra.mxu0 %v273
        %2610 = vmatprep.subr.mxu0 %v282
        %2611 = vmatpush1.msra.mxu0 %v281
        %2612 = vmatprep.subr.mxu0 %v290
        %2613 = vmatpush1.msra.mxu0 %v289
        %2614 = vmatprep.subr.mxu0 %v298
        %2615 = vmatpush1.msra.mxu0 %v297
        %2616 = vmatprep.subr.mxu0 %v306
        %2617 = vmatpush1.msra.mxu0 %v305
        %2618 = vmatprep.subr.mxu0 %v314
        %2619 = vmatpush1.msra.mxu0 %v313
        %2620 = vmatprep.subr.mxu0 %v322
        %2621 = vmatpush1.msra.mxu0 %v321
        %2622 = vmatprep.subr.mxu0 %v330
        %2623 = vmatpush1.msra.mxu0 %v329
        %2624 = vmatprep.subr.mxu0 %v338
        %2625 = vmatpush1.msra.mxu0 %v337
        %2626 = vmatprep.subr.mxu0 %v346
        %2627 = vmatpush1.msra.mxu0 %v345
        %2628 = vmatprep.subr.mxu0 %v354
        %2629 = vmatpush1.msra.mxu0 %v353
        %2630 = vmatprep.subr.mxu0 %v362
        %2631 = vmatpush1.msra.mxu0 %v361
        %2632 = vmatprep.subr.mxu0 %v370
        %2633 = vmatpush1.msra.mxu0 %v369
        %2634 = vmatprep.subr.mxu0 %v378
        %2635 = vmatpush1.msra.mxu0 %v377
        %2636 = vmatprep.subr.mxu0 %v386
        %2637 = vmatpush1.msra.mxu0 %v385
        %2638 = vmatprep.subr.mxu0 %v394
        %2639 = vmatpush1.msra.mxu0 %v393
        %2640 = vmatprep.mubr.f32.mxu0 %v2495
        %2641 = vmatmul.mubr.f32.gmra.mrb[0].mxu0 %v2494
        %v2642 = vpop.f32.mrb[0].mxu0
        %v2643 = vadd.f32 0.0, %v2642
        %v2644 = vpop.f32.mrb[0].mxu0
        %v2645 = vadd.f32 0.0, %v2644
        %2646 = vdwg.mxu0
        %2647 = vmatprep.subr.mxu0 %v148
        %2648 = vmatpush1.msra.mxu0 %v147
        %2649 = vmatprep.subr.mxu0 %v156
        %2650 = vmatpush1.msra.mxu0 %v155
        %2651 = vmatprep.subr.mxu0 %v164
        %2652 = vmatpush1.msra.mxu0 %v163
        %2653 = vmatprep.subr.mxu0 %v172
        %2654 = vmatpush1.msra.mxu0 %v171
        %2655 = vmatprep.subr.mxu0 %v180
        %2656 = vmatpush1.msra.mxu0 %v179
        %2657 = vmatprep.subr.mxu0 %v188
        %2658 = vmatpush1.msra.mxu0 %v187
        %2659 = vmatprep.subr.mxu0 %v196
        %2660 = vmatpush1.msra.mxu0 %v195
        %2661 = vmatprep.subr.mxu0 %v204
        %2662 = vmatpush1.msra.mxu0 %v203
        %2663 = vmatprep.subr.mxu0 %v212
        %2664 = vmatpush1.msra.mxu0 %v211
        %2665 = vmatprep.subr.mxu0 %v220
        %2666 = vmatpush1.msra.mxu0 %v219
        %2667 = vmatprep.subr.mxu0 %v228
        %2668 = vmatpush1.msra.mxu0 %v227
        %2669 = vmatprep.subr.mxu0 %v236
        %2670 = vmatpush1.msra.mxu0 %v235
        %2671 = vmatprep.subr.mxu0 %v244
        %2672 = vmatpush1.msra.mxu0 %v243
        %2673 = vmatprep.subr.mxu0 %v252
        %2674 = vmatpush1.msra.mxu0 %v251
        %2675 = vmatprep.subr.mxu0 %v260
        %2676 = vmatpush1.msra.mxu0 %v259
        %2677 = vmatprep.subr.mxu0 %v268
        %2678 = vmatpush1.msra.mxu0 %v267
        %2679 = vmatprep.subr.mxu0 %v276
        %2680 = vmatpush1.msra.mxu0 %v275
        %2681 = vmatprep.subr.mxu0 %v284
        %2682 = vmatpush1.msra.mxu0 %v283
        %2683 = vmatprep.subr.mxu0 %v292
        %2684 = vmatpush1.msra.mxu0 %v291
        %2685 = vmatprep.subr.mxu0 %v300
        %2686 = vmatpush1.msra.mxu0 %v299
        %2687 = vmatprep.subr.mxu0 %v308
        %2688 = vmatpush1.msra.mxu0 %v307
        %2689 = vmatprep.subr.mxu0 %v316
        %2690 = vmatpush1.msra.mxu0 %v315
        %2691 = vmatprep.subr.mxu0 %v324
        %2692 = vmatpush1.msra.mxu0 %v323
        %2693 = vmatprep.subr.mxu0 %v332
        %2694 = vmatpush1.msra.mxu0 %v331
        %2695 = vmatprep.subr.mxu0 %v340
        %2696 = vmatpush1.msra.mxu0 %v339
        %2697 = vmatprep.subr.mxu0 %v348
        %2698 = vmatpush1.msra.mxu0 %v347
        %2699 = vmatprep.subr.mxu0 %v356
        %2700 = vmatpush1.msra.mxu0 %v355
        %2701 = vmatprep.subr.mxu0 %v364
        %2702 = vmatpush1.msra.mxu0 %v363
        %2703 = vmatprep.subr.mxu0 %v372
        %2704 = vmatpush1.msra.mxu0 %v371
        %2705 = vmatprep.subr.mxu0 %v380
        %2706 = vmatpush1.msra.mxu0 %v379
        %2707 = vmatprep.subr.mxu0 %v388
        %2708 = vmatpush1.msra.mxu0 %v387
        %2709 = vmatprep.subr.mxu0 %v396
        %2710 = vmatpush1.msra.mxu0 %v395
        %2711 = vmatprep.mubr.f32.mxu0 %v2495
        %2712 = vmatmul.mubr.f32.gmra.mrb[0].mxu0 %v2494
        %v2713 = vpop.f32.mrb[0].mxu0
        %v2714 = vadd.f32 0.0, %v2713
        %v2715 = vpop.f32.mrb[0].mxu0
        %v2716 = vadd.f32 0.0, %v2715
        %2717 = vdwg.mxu0
        %2718 = vmatprep.subr.mxu0 %v150
        %2719 = vmatpush1.msra.mxu0 %v149
        %2720 = vmatprep.subr.mxu0 %v158
        %2721 = vmatpush1.msra.mxu0 %v157
        %2722 = vmatprep.subr.mxu0 %v166
        %2723 = vmatpush1.msra.mxu0 %v165
        %2724 = vmatprep.subr.mxu0 %v174
        %2725 = vmatpush1.msra.mxu0 %v173
        %2726 = vmatprep.subr.mxu0 %v182
        %2727 = vmatpush1.msra.mxu0 %v181
        %2728 = vmatprep.subr.mxu0 %v190
        %2729 = vmatpush1.msra.mxu0 %v189
        %2730 = vmatprep.subr.mxu0 %v198
        %2731 = vmatpush1.msra.mxu0 %v197
        %2732 = vmatprep.subr.mxu0 %v206
        %2733 = vmatpush1.msra.mxu0 %v205
        %2734 = vmatprep.subr.mxu0 %v214
        %2735 = vmatpush1.msra.mxu0 %v213
        %2736 = vmatprep.subr.mxu0 %v222
        %2737 = vmatpush1.msra.mxu0 %v221
        %2738 = vmatprep.subr.mxu0 %v230
        %2739 = vmatpush1.msra.mxu0 %v229
        %2740 = vmatprep.subr.mxu0 %v238
        %2741 = vmatpush1.msra.mxu0 %v237
        %2742 = vmatprep.subr.mxu0 %v246
        %2743 = vmatpush1.msra.mxu0 %v245
        %2744 = vmatprep.subr.mxu0 %v254
        %2745 = vmatpush1.msra.mxu0 %v253
        %2746 = vmatprep.subr.mxu0 %v262
        %2747 = vmatpush1.msra.mxu0 %v261
        %2748 = vmatprep.subr.mxu0 %v270
        %2749 = vmatpush1.msra.mxu0 %v269
        %2750 = vmatprep.subr.mxu0 %v278
        %2751 = vmatpush1.msra.mxu0 %v277
        %2752 = vmatprep.subr.mxu0 %v286
        %2753 = vmatpush1.msra.mxu0 %v285
        %2754 = vmatprep.subr.mxu0 %v294
        %2755 = vmatpush1.msra.mxu0 %v293
        %2756 = vmatprep.subr.mxu0 %v302
        %2757 = vmatpush1.msra.mxu0 %v301
        %2758 = vmatprep.subr.mxu0 %v310
        %2759 = vmatpush1.msra.mxu0 %v309
        %2760 = vmatprep.subr.mxu0 %v318
        %2761 = vmatpush1.msra.mxu0 %v317
        %2762 = vmatprep.subr.mxu0 %v326
        %2763 = vmatpush1.msra.mxu0 %v325
        %2764 = vmatprep.subr.mxu0 %v334
        %2765 = vmatpush1.msra.mxu0 %v333
        %2766 = vmatprep.subr.mxu0 %v342
        %2767 = vmatpush1.msra.mxu0 %v341
        %2768 = vmatprep.subr.mxu0 %v350
        %2769 = vmatpush1.msra.mxu0 %v349
        %2770 = vmatprep.subr.mxu0 %v358
        %2771 = vmatpush1.msra.mxu0 %v357
        %2772 = vmatprep.subr.mxu0 %v366
        %2773 = vmatpush1.msra.mxu0 %v365
        %2774 = vmatprep.subr.mxu0 %v374
        %2775 = vmatpush1.msra.mxu0 %v373
        %2776 = vmatprep.subr.mxu0 %v382
        %2777 = vmatpush1.msra.mxu0 %v381
        %2778 = vmatprep.subr.mxu0 %v390
        %2779 = vmatpush1.msra.mxu0 %v389
        %2780 = vmatprep.subr.mxu0 %v398
        %2781 = vmatpush1.msra.mxu0 %v397
        %2782 = vmatprep.mubr.f32.mxu0 %v2495
        %2783 = vmatmul.mubr.f32.gmra.mrb[0].mxu0 %v2494
        %v2784 = vpop.f32.mrb[0].mxu0
        %v2785 = vadd.f32 0.0, %v2784
        %v2786 = vpop.f32.mrb[0].mxu0
        %v2787 = vadd.f32 0.0, %v2786
        %2788 = vdwg.mxu0
        %v2789 = vadd.f32 %v2497, %v2572
        %v2790 = vadd.f32 %v2498, %v2574
        %v2791 = vadd.f32 %v2499, %v2643
        %v2792 = vadd.f32 %v2500, %v2645
        %v2793 = vadd.f32 %v2501, %v2714
        %v2794 = vadd.f32 %v2502, %v2716
        %v2795 = vadd.f32 %v2503, %v2785
        %v2796 = vadd.f32 %v2504, %v2787
        %v2797 = vxor.u32 %v2789, 2147483648
        %v2798 = vxor.u32 %v2790, 2147483648
        %v2799 = vxor.u32 %v2791, 2147483648
        %v2800 = vxor.u32 %v2792, 2147483648
        %v2801 = vxor.u32 %v2793, 2147483648
        %v2802 = vxor.u32 %v2794, 2147483648
        %v2803 = vmul.f32 %v2797, 1.442695
        %v2804 = vpow.pop %v2803
        %v2805 = vmul.f32 %v2798, 1.442695
        %v2806 = vpow.pop %v2805
        %v2807 = vmul.f32 %v2799, 1.442695
        %v2808 = vpow.pop %v2807
        %v2809 = vmul.f32 %v2800, 1.442695
        %v2810 = vpow.pop %v2809
        %v2811 = vmul.f32 %v2801, 1.442695
        %v2812 = vpow.pop %v2811
        %v2813 = vmul.f32 %v2802, 1.442695
        %v2814 = vpow.pop %v2813
        %v2815 = vadd.f32 %v2804, 1.0
        %v2816 = vadd.f32 %v2806, 1.0
        %v2817 = vadd.f32 %v2808, 1.0
        %v2818 = vadd.f32 %v2810, 1.0
        %v2819 = vadd.f32 %v2812, 1.0
        %v2820 = vadd.f32 %v2814, 1.0
        %v2821 = vrcp.pop %v2815
        %v2822 = vmul.f32 1.0, %v2821
        %v2823 = vrcp.pop %v2816
        %v2824 = vmul.f32 1.0, %v2823
        %v2825 = vrcp.pop %v2817
        %v2826 = vmul.f32 1.0, %v2825
        %v2827 = vrcp.pop %v2818
        %v2828 = vmul.f32 1.0, %v2827
        %v2829 = vrcp.pop %v2819
        %v2830 = vmul.f32 1.0, %v2829
        %v2831 = vrcp.pop %v2820
        %v2832 = vmul.f32 1.0, %v2831
        %v2833 = vtanh.pop %v2795
        %v2834 = vtanh.pop %v2796
        %v2835 = vmul.f32 %v2490, %v2822
        %v2836 = vmul.f32 %v2491, %v2824
        %v2837 = vmul.f32 %v2826, %v2833
        %v2838 = vmul.f32 %v2828, %v2834
        %v2839 = vadd.f32 %v2835, %v2837
        %v2840 = vadd.f32 %v2836, %v2838
        %v2841 = vtanh.pop %v2839
        %v2842 = vtanh.pop %v2840
        %v2843 = vmul.f32 %v2830, %v2841
        %v2844 = vmul.f32 %v2832, %v2842
        %s2845 = scalar_lea.vmem %s133, 448
        %v2846 = vld [vmem:[%s2845] sm:$0xff]
        %v2847 = vld [vmem:[%s2845 + $0x8] sm:$0xff]
        %v2848 = vld [vmem:[%s2845 + $0x10] sm:$0xff]
        %v2849 = vld [vmem:[%s2845 + $0x18] sm:$0xff]
        %v2850 = vld [vmem:[%s2845 + $0x20] sm:$0xff]
        %v2851 = vld [vmem:[%s2845 + $0x28] sm:$0xff]
        %v2852 = vld [vmem:[%s2845 + $0x30] sm:$0xff]
        %v2853 = vld [vmem:[%s2845 + $0x38] sm:$0xff]
        %2854 = vmatprep.subr.mxu0 %v144
        %2855 = vmatpush1.msra.mxu0 %v143
        %2856 = vmatprep.subr.mxu0 %v152
        %2857 = vmatpush1.msra.mxu0 %v151
        %2858 = vmatprep.subr.mxu0 %v160
        %2859 = vmatpush1.msra.mxu0 %v159
        %2860 = vmatprep.subr.mxu0 %v168
        %2861 = vmatpush1.msra.mxu0 %v167
        %2862 = vmatprep.subr.mxu0 %v176
        %2863 = vmatpush1.msra.mxu0 %v175
        %2864 = vmatprep.subr.mxu0 %v184
        %2865 = vmatpush1.msra.mxu0 %v183
        %2866 = vmatprep.subr.mxu0 %v192
        %2867 = vmatpush1.msra.mxu0 %v191
        %2868 = vmatprep.subr.mxu0 %v200
        %2869 = vmatpush1.msra.mxu0 %v199
        %2870 = vmatprep.subr.mxu0 %v208
        %2871 = vmatpush1.msra.mxu0 %v207
        %2872 = vmatprep.subr.mxu0 %v216
        %2873 = vmatpush1.msra.mxu0 %v215
        %2874 = vmatprep.subr.mxu0 %v224
        %2875 = vmatpush1.msra.mxu0 %v223
        %2876 = vmatprep.subr.mxu0 %v232
        %2877 = vmatpush1.msra.mxu0 %v231
        %2878 = vmatprep.subr.mxu0 %v240
        %2879 = vmatpush1.msra.mxu0 %v239
        %2880 = vmatprep.subr.mxu0 %v248
        %2881 = vmatpush1.msra.mxu0 %v247
        %2882 = vmatprep.subr.mxu0 %v256
        %2883 = vmatpush1.msra.mxu0 %v255
        %2884 = vmatprep.subr.mxu0 %v264
        %2885 = vmatpush1.msra.mxu0 %v263
        %2886 = vmatprep.subr.mxu0 %v272
        %2887 = vmatpush1.msra.mxu0 %v271
        %2888 = vmatprep.subr.mxu0 %v280
        %2889 = vmatpush1.msra.mxu0 %v279
        %2890 = vmatprep.subr.mxu0 %v288
        %2891 = vmatpush1.msra.mxu0 %v287
        %2892 = vmatprep.subr.mxu0 %v296
        %2893 = vmatpush1.msra.mxu0 %v295
        %2894 = vmatprep.subr.mxu0 %v304
        %2895 = vmatpush1.msra.mxu0 %v303
        %2896 = vmatprep.subr.mxu0 %v312
        %2897 = vmatpush1.msra.mxu0 %v311
        %2898 = vmatprep.subr.mxu0 %v320
        %2899 = vmatpush1.msra.mxu0 %v319
        %2900 = vmatprep.subr.mxu0 %v328
        %2901 = vmatpush1.msra.mxu0 %v327
        %2902 = vmatprep.subr.mxu0 %v336
        %2903 = vmatpush1.msra.mxu0 %v335
        %2904 = vmatprep.subr.mxu0 %v344
        %2905 = vmatpush1.msra.mxu0 %v343
        %2906 = vmatprep.subr.mxu0 %v352
        %2907 = vmatpush1.msra.mxu0 %v351
        %2908 = vmatprep.subr.mxu0 %v360
        %2909 = vmatpush1.msra.mxu0 %v359
        %2910 = vmatprep.subr.mxu0 %v368
        %2911 = vmatpush1.msra.mxu0 %v367
        %2912 = vmatprep.subr.mxu0 %v376
        %2913 = vmatpush1.msra.mxu0 %v375
        %2914 = vmatprep.subr.mxu0 %v384
        %2915 = vmatpush1.msra.mxu0 %v383
        %2916 = vmatprep.subr.mxu0 %v392
        %2917 = vmatpush1.msra.mxu0 %v391
        %2918 = vmatprep.mubr.f32.mxu0 %v2844
        %2919 = vmatmul.mubr.f32.gmra.mrb[0].mxu0 %v2843
        %v2920 = vpop.f32.mrb[0].mxu0
        %v2921 = vadd.f32 0.0, %v2920
        %v2922 = vpop.f32.mrb[0].mxu0
        %v2923 = vadd.f32 0.0, %v2922
        %2924 = vdwg.mxu0
        %2925 = vmatprep.subr.mxu0 %v146
        %2926 = vmatpush1.msra.mxu0 %v145
        %2927 = vmatprep.subr.mxu0 %v154
        %2928 = vmatpush1.msra.mxu0 %v153
        %2929 = vmatprep.subr.mxu0 %v162
        %2930 = vmatpush1.msra.mxu0 %v161
        %2931 = vmatprep.subr.mxu0 %v170
        %2932 = vmatpush1.msra.mxu0 %v169
        %2933 = vmatprep.subr.mxu0 %v178
        %2934 = vmatpush1.msra.mxu0 %v177
        %2935 = vmatprep.subr.mxu0 %v186
        %2936 = vmatpush1.msra.mxu0 %v185
        %2937 = vmatprep.subr.mxu0 %v194
        %2938 = vmatpush1.msra.mxu0 %v193
        %2939 = vmatprep.subr.mxu0 %v202
        %2940 = vmatpush1.msra.mxu0 %v201
        %2941 = vmatprep.subr.mxu0 %v210
        %2942 = vmatpush1.msra.mxu0 %v209
        %2943 = vmatprep.subr.mxu0 %v218
        %2944 = vmatpush1.msra.mxu0 %v217
        %2945 = vmatprep.subr.mxu0 %v226
        %2946 = vmatpush1.msra.mxu0 %v225
        %2947 = vmatprep.subr.mxu0 %v234
        %2948 = vmatpush1.msra.mxu0 %v233
        %2949 = vmatprep.subr.mxu0 %v242
        %2950 = vmatpush1.msra.mxu0 %v241
        %2951 = vmatprep.subr.mxu0 %v250
        %2952 = vmatpush1.msra.mxu0 %v249
        %2953 = vmatprep.subr.mxu0 %v258
        %2954 = vmatpush1.msra.mxu0 %v257
        %2955 = vmatprep.subr.mxu0 %v266
        %2956 = vmatpush1.msra.mxu0 %v265
        %2957 = vmatprep.subr.mxu0 %v274
        %2958 = vmatpush1.msra.mxu0 %v273
        %2959 = vmatprep.subr.mxu0 %v282
        %2960 = vmatpush1.msra.mxu0 %v281
        %2961 = vmatprep.subr.mxu0 %v290
        %2962 = vmatpush1.msra.mxu0 %v289
        %2963 = vmatprep.subr.mxu0 %v298
        %2964 = vmatpush1.msra.mxu0 %v297
        %2965 = vmatprep.subr.mxu0 %v306
        %2966 = vmatpush1.msra.mxu0 %v305
        %2967 = vmatprep.subr.mxu0 %v314
        %2968 = vmatpush1.msra.mxu0 %v313
        %2969 = vmatprep.subr.mxu0 %v322
        %2970 = vmatpush1.msra.mxu0 %v321
        %2971 = vmatprep.subr.mxu0 %v330
        %2972 = vmatpush1.msra.mxu0 %v329
        %2973 = vmatprep.subr.mxu0 %v338
        %2974 = vmatpush1.msra.mxu0 %v337
        %2975 = vmatprep.subr.mxu0 %v346
        %2976 = vmatpush1.msra.mxu0 %v345
        %2977 = vmatprep.subr.mxu0 %v354
        %2978 = vmatpush1.msra.mxu0 %v353
        %2979 = vmatprep.subr.mxu0 %v362
        %2980 = vmatpush1.msra.mxu0 %v361
        %2981 = vmatprep.subr.mxu0 %v370
        %2982 = vmatpush1.msra.mxu0 %v369
        %2983 = vmatprep.subr.mxu0 %v378
        %2984 = vmatpush1.msra.mxu0 %v377
        %2985 = vmatprep.subr.mxu0 %v386
        %2986 = vmatpush1.msra.mxu0 %v385
        %2987 = vmatprep.subr.mxu0 %v394
        %2988 = vmatpush1.msra.mxu0 %v393
        %2989 = vmatprep.mubr.f32.mxu0 %v2844
        %2990 = vmatmul.mubr.f32.gmra.mrb[0].mxu0 %v2843
        %v2991 = vpop.f32.mrb[0].mxu0
        %v2992 = vadd.f32 0.0, %v2991
        %v2993 = vpop.f32.mrb[0].mxu0
        %v2994 = vadd.f32 0.0, %v2993
        %2995 = vdwg.mxu0
        %2996 = vmatprep.subr.mxu0 %v148
        %2997 = vmatpush1.msra.mxu0 %v147
        %2998 = vmatprep.subr.mxu0 %v156
        %2999 = vmatpush1.msra.mxu0 %v155
        %3000 = vmatprep.subr.mxu0 %v164
        %3001 = vmatpush1.msra.mxu0 %v163
        %3002 = vmatprep.subr.mxu0 %v172
        %3003 = vmatpush1.msra.mxu0 %v171
        %3004 = vmatprep.subr.mxu0 %v180
        %3005 = vmatpush1.msra.mxu0 %v179
        %3006 = vmatprep.subr.mxu0 %v188
        %3007 = vmatpush1.msra.mxu0 %v187
        %3008 = vmatprep.subr.mxu0 %v196
        %3009 = vmatpush1.msra.mxu0 %v195
        %3010 = vmatprep.subr.mxu0 %v204
        %3011 = vmatpush1.msra.mxu0 %v203
        %3012 = vmatprep.subr.mxu0 %v212
        %3013 = vmatpush1.msra.mxu0 %v211
        %3014 = vmatprep.subr.mxu0 %v220
        %3015 = vmatpush1.msra.mxu0 %v219
        %3016 = vmatprep.subr.mxu0 %v228
        %3017 = vmatpush1.msra.mxu0 %v227
        %3018 = vmatprep.subr.mxu0 %v236
        %3019 = vmatpush1.msra.mxu0 %v235
        %3020 = vmatprep.subr.mxu0 %v244
        %3021 = vmatpush1.msra.mxu0 %v243
        %3022 = vmatprep.subr.mxu0 %v252
        %3023 = vmatpush1.msra.mxu0 %v251
        %3024 = vmatprep.subr.mxu0 %v260
        %3025 = vmatpush1.msra.mxu0 %v259
        %3026 = vmatprep.subr.mxu0 %v268
        %3027 = vmatpush1.msra.mxu0 %v267
        %3028 = vmatprep.subr.mxu0 %v276
        %3029 = vmatpush1.msra.mxu0 %v275
        %3030 = vmatprep.subr.mxu0 %v284
        %3031 = vmatpush1.msra.mxu0 %v283
        %3032 = vmatprep.subr.mxu0 %v292
        %3033 = vmatpush1.msra.mxu0 %v291
        %3034 = vmatprep.subr.mxu0 %v300
        %3035 = vmatpush1.msra.mxu0 %v299
        %3036 = vmatprep.subr.mxu0 %v308
        %3037 = vmatpush1.msra.mxu0 %v307
        %3038 = vmatprep.subr.mxu0 %v316
        %3039 = vmatpush1.msra.mxu0 %v315
        %3040 = vmatprep.subr.mxu0 %v324
        %3041 = vmatpush1.msra.mxu0 %v323
        %3042 = vmatprep.subr.mxu0 %v332
        %3043 = vmatpush1.msra.mxu0 %v331
        %3044 = vmatprep.subr.mxu0 %v340
        %3045 = vmatpush1.msra.mxu0 %v339
        %3046 = vmatprep.subr.mxu0 %v348
        %3047 = vmatpush1.msra.mxu0 %v347
        %3048 = vmatprep.subr.mxu0 %v356
        %3049 = vmatpush1.msra.mxu0 %v355
        %3050 = vmatprep.subr.mxu0 %v364
        %3051 = vmatpush1.msra.mxu0 %v363
        %3052 = vmatprep.subr.mxu0 %v372
        %3053 = vmatpush1.msra.mxu0 %v371
        %3054 = vmatprep.subr.mxu0 %v380
        %3055 = vmatpush1.msra.mxu0 %v379
        %3056 = vmatprep.subr.mxu0 %v388
        %3057 = vmatpush1.msra.mxu0 %v387
        %3058 = vmatprep.subr.mxu0 %v396
        %3059 = vmatpush1.msra.mxu0 %v395
        %3060 = vmatprep.mubr.f32.mxu0 %v2844
        %3061 = vmatmul.mubr.f32.gmra.mrb[0].mxu0 %v2843
        %v3062 = vpop.f32.mrb[0].mxu0
        %v3063 = vadd.f32 0.0, %v3062
        %v3064 = vpop.f32.mrb[0].mxu0
        %v3065 = vadd.f32 0.0, %v3064
        %3066 = vdwg.mxu0
        %3067 = vmatprep.subr.mxu0 %v150
        %3068 = vmatpush1.msra.mxu0 %v149
        %3069 = vmatprep.subr.mxu0 %v158
        %3070 = vmatpush1.msra.mxu0 %v157
        %3071 = vmatprep.subr.mxu0 %v166
        %3072 = vmatpush1.msra.mxu0 %v165
        %3073 = vmatprep.subr.mxu0 %v174
        %3074 = vmatpush1.msra.mxu0 %v173
        %3075 = vmatprep.subr.mxu0 %v182
        %3076 = vmatpush1.msra.mxu0 %v181
        %3077 = vmatprep.subr.mxu0 %v190
        %3078 = vmatpush1.msra.mxu0 %v189
        %3079 = vmatprep.subr.mxu0 %v198
        %3080 = vmatpush1.msra.mxu0 %v197
        %3081 = vmatprep.subr.mxu0 %v206
        %3082 = vmatpush1.msra.mxu0 %v205
        %3083 = vmatprep.subr.mxu0 %v214
        %3084 = vmatpush1.msra.mxu0 %v213
        %3085 = vmatprep.subr.mxu0 %v222
        %3086 = vmatpush1.msra.mxu0 %v221
        %3087 = vmatprep.subr.mxu0 %v230
        %3088 = vmatpush1.msra.mxu0 %v229
        %3089 = vmatprep.subr.mxu0 %v238
        %3090 = vmatpush1.msra.mxu0 %v237
        %3091 = vmatprep.subr.mxu0 %v246
        %3092 = vmatpush1.msra.mxu0 %v245
        %3093 = vmatprep.subr.mxu0 %v254
        %3094 = vmatpush1.msra.mxu0 %v253
        %3095 = vmatprep.subr.mxu0 %v262
        %3096 = vmatpush1.msra.mxu0 %v261
        %3097 = vmatprep.subr.mxu0 %v270
        %3098 = vmatpush1.msra.mxu0 %v269
        %3099 = vmatprep.subr.mxu0 %v278
        %3100 = vmatpush1.msra.mxu0 %v277
        %3101 = vmatprep.subr.mxu0 %v286
        %3102 = vmatpush1.msra.mxu0 %v285
        %3103 = vmatprep.subr.mxu0 %v294
        %3104 = vmatpush1.msra.mxu0 %v293
        %3105 = vmatprep.subr.mxu0 %v302
        %3106 = vmatpush1.msra.mxu0 %v301
        %3107 = vmatprep.subr.mxu0 %v310
        %3108 = vmatpush1.msra.mxu0 %v309
        %3109 = vmatprep.subr.mxu0 %v318
        %3110 = vmatpush1.msra.mxu0 %v317
        %3111 = vmatprep.subr.mxu0 %v326
        %3112 = vmatpush1.msra.mxu0 %v325
        %3113 = vmatprep.subr.mxu0 %v334
        %3114 = vmatpush1.msra.mxu0 %v333
        %3115 = vmatprep.subr.mxu0 %v342
        %3116 = vmatpush1.msra.mxu0 %v341
        %3117 = vmatprep.subr.mxu0 %v350
        %3118 = vmatpush1.msra.mxu0 %v349
        %3119 = vmatprep.subr.mxu0 %v358
        %3120 = vmatpush1.msra.mxu0 %v357
        %3121 = vmatprep.subr.mxu0 %v366
        %3122 = vmatpush1.msra.mxu0 %v365
        %3123 = vmatprep.subr.mxu0 %v374
        %3124 = vmatpush1.msra.mxu0 %v373
        %3125 = vmatprep.subr.mxu0 %v382
        %3126 = vmatpush1.msra.mxu0 %v381
        %3127 = vmatprep.subr.mxu0 %v390
        %3128 = vmatpush1.msra.mxu0 %v389
        %3129 = vmatprep.subr.mxu0 %v398
        %3130 = vmatpush1.msra.mxu0 %v397
        %3131 = vmatprep.mubr.f32.mxu0 %v2844
        %3132 = vmatmul.mubr.f32.gmra.mrb[0].mxu0 %v2843
        %v3133 = vpop.f32.mrb[0].mxu0
        %v3134 = vadd.f32 0.0, %v3133
        %v3135 = vpop.f32.mrb[0].mxu0
        %v3136 = vadd.f32 0.0, %v3135
        %3137 = vdwg.mxu0
        %v3138 = vadd.f32 %v2846, %v2921
        %v3139 = vadd.f32 %v2847, %v2923
        %v3140 = vadd.f32 %v2848, %v2992
        %v3141 = vadd.f32 %v2849, %v2994
        %v3142 = vadd.f32 %v2850, %v3063
        %v3143 = vadd.f32 %v2851, %v3065
        %v3144 = vadd.f32 %v2852, %v3134
        %v3145 = vadd.f32 %v2853, %v3136
        %v3146 = vxor.u32 %v3138, 2147483648
        %v3147 = vxor.u32 %v3139, 2147483648
        %v3148 = vxor.u32 %v3140, 2147483648
        %v3149 = vxor.u32 %v3141, 2147483648
        %v3150 = vxor.u32 %v3142, 2147483648
        %v3151 = vxor.u32 %v3143, 2147483648
        %v3152 = vmul.f32 %v3146, 1.442695
        %v3153 = vpow.pop %v3152
        %v3154 = vmul.f32 %v3147, 1.442695
        %v3155 = vpow.pop %v3154
        %v3156 = vmul.f32 %v3148, 1.442695
        %v3157 = vpow.pop %v3156
        %v3158 = vmul.f32 %v3149, 1.442695
        %v3159 = vpow.pop %v3158
        %v3160 = vmul.f32 %v3150, 1.442695
        %v3161 = vpow.pop %v3160
        %v3162 = vmul.f32 %v3151, 1.442695
        %v3163 = vpow.pop %v3162
        %v3164 = vadd.f32 %v3153, 1.0
        %v3165 = vadd.f32 %v3155, 1.0
        %v3166 = vadd.f32 %v3157, 1.0
        %v3167 = vadd.f32 %v3159, 1.0
        %v3168 = vadd.f32 %v3161, 1.0
        %v3169 = vadd.f32 %v3163, 1.0
        %v3170 = vrcp.pop %v3164
        %v3171 = vmul.f32 1.0, %v3170
        %v3172 = vrcp.pop %v3165
        %v3173 = vmul.f32 1.0, %v3172
        %v3174 = vrcp.pop %v3166
        %v3175 = vmul.f32 1.0, %v3174
        %v3176 = vrcp.pop %v3167
        %v3177 = vmul.f32 1.0, %v3176
        %v3178 = vrcp.pop %v3168
        %v3179 = vmul.f32 1.0, %v3178
        %v3180 = vrcp.pop %v3169
        %v3181 = vmul.f32 1.0, %v3180
        %v3182 = vtanh.pop %v3144
        %v3183 = vtanh.pop %v3145
        %v3184 = vmul.f32 %v2839, %v3171
        %v3185 = vmul.f32 %v2840, %v3173
        %v3186 = vmul.f32 %v3175, %v3182
        %v3187 = vmul.f32 %v3177, %v3183
        %v3188 = vadd.f32 %v3184, %v3186
        %v3189 = vadd.f32 %v3185, %v3187
        %v3190 = vtanh.pop %v3188
        %v3191 = vtanh.pop %v3189
        %v3192 = vmul.f32 %v3179, %v3190
        %v3193 = vmul.f32 %v3181, %v3191
        %3194 = vst [vmem:[#allocation2] sm:$0xff] %v3192
        %3195 = vst [vmem:[#allocation2 + $0x8] sm:$0xff] %v3193
        %3196 = vst [vmem:[#allocation3] sm:$0xff] %v3188
        %3197 = vst [vmem:[#allocation3 + $0x8] sm:$0xff] %v3189
        %3198 = vst [vmem:[#allocation4] sm:$0xff] %v3192
        %3199 = vst [vmem:[#allocation4 + $0x8] sm:$0xff] %v3193
        // Predicated region
        $region33: #{lstm_forward.1} parent=27 // pred_check
          %p3200 = pneg %p74
        $region34: #{lstm_forward.1} parent=27 // pred_check_branch
          %3202 = sbr.rel (%p3200) target = $region36
        $region35: #{lstm_forward.1} parent=27 // pred_region
          %s3204 = ssub.s32 256, 256
          %3205 = vsyncadd [#allocation5], %s3204
          %s3207 = sshll.u32 [#allocation4], 4
          %s3208 = int_to_ptr.vmem [resolvable:$true] %s3207
          %3210 = dma.vmem_to_hbm [thread:$0]  %s3208, 256, %s2, [#allocation5]
        $region36: #{lstm_forward.1} parent=27 // pred_fallthru
          _
        // Predicated region
        $region37: #{lstm_forward.1} parent=27 // pred_check
          %p3211 = pneg %p74
        $region38: #{lstm_forward.1} parent=27 // pred_check_branch
          %3213 = sbr.rel (%p3211) target = $region40
        $region39: #{lstm_forward.1} parent=27 // pred_region
          %3214 = dma.done [#allocation5], 256
        $region40: #{lstm_forward.1} parent=27 // pred_fallthru
          _
      $region28: #{lstm_forward.1} parent=5 // pred_fallthru
        _
      %p3215 = scmp.le.s32.totalorder 2, %s9
      // Predicated region
      $region41: #{lstm_forward.1} parent=5 // pred_check
        %p3216 = pneg %p3215
      $region42: #{lstm_forward.1} parent=5 // pred_check_branch
        %3218 = sbr.rel (%p3216) target = $region44
      $region43: #{lstm_forward.1} parent=5 // pred_region
        %s3219 = ssub.s32 %s9, 2
      $region44: #{lstm_forward.1} parent=5 // pred_fallthru
        _
    $region6: #{lstm_forward.1} parent=1 // loop_footer
      %s13 = sadd.s32 1, %s9
    $region7: #{lstm_forward.1} parent=1 // loop_footer_branch
      %8 = sbr.rel target = $region3
    $region8: #{lstm_forward.1} parent=1 // loop_exit
      _
    %3220 = vsyncpa [#allocation5], 1
    %s3221 = scalar_lea.sflag [#allocation5], 1
    %3222 = vsyncpa %s3221, 1

</llo_original>
